<compile_context>
chip_gen: v5e
topology: v5e:2x2
jax: 0.10.0
libtpu: 0.0.40
codegen_flags: <defaults>
</compile_context>

<pallas_src>
import functools

import jax
import jax.numpy as jnp
from jax.experimental import pallas as pl
from jax.experimental.pallas import tpu as pltpu


def _round_up(x, m):
    return (x + m - 1) // m * m


def _vmem_limit_bytes():
    """Per-generation VMEM limit: ~3/4 of capacity, capped for v5e/v6e."""
    cap = 64 * 1024 * 1024
    try:
        info = pltpu.get_tpu_info()
        c = int(getattr(info, "vmem_capacity_bytes", cap))
        if c >= 16 * 1024 * 1024:
            cap = c
    except Exception:
        pass
    return min(cap * 3 // 4, 100 * 1024 * 1024)


def _choose_time_chunk(T, Bp, Din, Hp, L, budget_bytes):
    """Largest time chunk whose per-chunk VMEM (incl. double buffering and the
    resident, double-buffered weights) fits the per-generation budget."""
    w_bytes = 0
    for layer in range(L):
        din = Din if layer == 0 else Hp
        # bf16 weights + f32 bias; x2 for default BlockSpec double buffering.
        w_bytes += ((din + Hp) * 4 * Hp * 2 + 4 * Hp * 4) * 2
    state_bytes = 2 * L * Bp * Hp * 4
    if T <= 8:
        return T
    for tc in (512, 256, 128, 64, 32, 16, 8):
        if tc > T:
            continue
        per_chunk = (2 * tc * Bp * Din * 2      # x blocks (bf16, double-buffered)
                     + 2 * tc * Bp * Hp * 4     # y blocks (f32, double-buffered)
                     + tc * Bp * 4 * Hp * 4     # hoisted gate-projection scratch
                     + tc * Bp * Hp * 4)        # inter-layer activation scratch
        if w_bytes + state_bytes + per_chunk <= budget_bytes:
            return tc
    return 8


def _make_fused_lstm_kernel(num_layers, total_steps, padded_steps,
                            time_chunk, sub_steps, b_pad, h_pad):
    """Fused multi-layer LSTM kernel over one time chunk per grid step.

    Kernel args (in order):
      x_ref                     (TC*Bp, Din)        bf16   input chunk (time-major)
      [wih_l, whh_l, b_l] * L   (Din_l,4Hp)/(Hp,4Hp)/(1,4Hp)   gates [i|f|o|g]
      y_ref                     (TC*Bp, Hp)   f32   last-layer hidden states
      hn_ref, cn_ref            (L, Bp, Hp)   f32   final states
      h_s, c_s                  (L, Bp, Hp)   f32   recurrent state (persists)
      act_s                     (TC*Bp, Hp)   f32   inter-layer activations
      g_s                       (TC*Bp, 4Hp)  f32   hoisted x @ W_ih + bias
    """
    L = num_layers
    TC = time_chunk
    SUB = sub_steps
    NSUB = TC // SUB
    Bp = b_pad
    Hp = h_pad
    need_mask = padded_steps != total_steps
    unroll = True if SUB <= 8 else 8

    def kernel(*args):
        x_ref = args[0]
        w_refs = args[1:1 + 3 * L]
        y_ref, hn_ref, cn_ref = args[1 + 3 * L:4 + 3 * L]
        h_s, c_s, act_s, g_s = args[4 + 3 * L:]

        @pl.when(pl.program_id(0) == 0)
        def _init():
            h_s[...] = jnp.zeros_like(h_s)
            c_s[...] = jnp.zeros_like(c_s)

        chunk_t0 = pl.program_id(0) * TC

        for layer in range(L):
            wih_ref = w_refs[3 * layer]
            whh_ref = w_refs[3 * layer + 1]
            b_ref = w_refs[3 * layer + 2]
            is_last_layer = layer == L - 1

            def project(k, layer=layer, wih_ref=wih_ref, b_ref=b_ref):
                # Hoisted input projection for one sub-tile: one large MXU
                # matmul plus a single bias broadcast.
                rows = pl.ds(k * SUB * Bp, SUB * Bp)
                if layer == 0:
                    inp = x_ref[rows, :]
                else:
                    inp = act_s[rows, :].astype(jnp.bfloat16)
                g_s[rows, :] = (jnp.dot(inp, wih_ref[...],
                                        preferred_element_type=jnp.float32)
                                + b_ref[...])

            # Recurrent state carried in vregs across the whole chunk; written
            # back to the persistent VMEM scratch once per layer.
            h = h_s[layer]
            c = c_s[layer]

            project(0)
            for k in range(NSUB):
                if k + 1 < NSUB:
                    # Issue the next sub-tile's MXU-bound projection before
                    # the latency-bound recurrence of this sub-tile so the
                    # scheduler can overlap them.
                    project(k + 1)

                base_row = k * SUB * Bp
                tb = (chunk_t0 + k * SUB) if need_mask else None

                def step(t, carry, base_row=base_row, whh_ref=whh_ref,
                         is_last_layer=is_last_layer, tb=tb):
                    h, c = carry
                    row = pl.multiple_of(base_row + t * Bp, Bp)
                    # Only the small h @ W_hh matmul is on the serial path.
                    gates = g_s[pl.ds(row, Bp), :] + jnp.dot(
                        h.astype(jnp.bfloat16), whh_ref[...],
                        preferred_element_type=jnp.float32)
                    # Gates packed as [i | f | o | g]: one wide sigmoid over
                    # the 3 sigmoid gates + one tanh.
                    sg = jax.nn.sigmoid(gates[:, 0:3 * Hp])
                    i_g = sg[:, 0 * Hp:1 * Hp]
                    f_g = sg[:, 1 * Hp:2 * Hp]
                    o_g = sg[:, 2 * Hp:3 * Hp]
                    g_g = jnp.tanh(gates[:, 3 * Hp:4 * Hp])
                    c_new = f_g * c + i_g * g_g
                    h_new = o_g * jnp.tanh(c_new)
                    if tb is not None:
                        valid = (tb + t) < total_steps
                        h_new = jnp.where(valid, h_new, h)
                        c_new = jnp.where(valid, c_new, c)
                    if is_last_layer:
                        y_ref[pl.ds(row, Bp), :] = h_new.astype(y_ref.dtype)
                    else:
                        act_s[pl.ds(row, Bp), :] = h_new
                    return h_new, c_new

                h, c = jax.lax.fori_loop(0, SUB, step, (h, c), unroll=unroll)

            h_s[layer] = h
            c_s[layer] = c

        # Final-state blocks use constant index maps: only the last chunk's
        # values matter, so skip the store on earlier grid steps.
        @pl.when(pl.program_id(0) == pl.num_programs(0) - 1)
        def _finalize():
            hn_ref[...] = h_s[...].astype(hn_ref.dtype)
            cn_ref[...] = c_s[...].astype(cn_ref.dtype)

    return kernel


class TEncoderPallas:
    """JAX/Pallas TPU port of TEncoder: multi-layer LSTM temporal encoder."""

    def __init__(self, inp_dim, out_dim, num_layers=2, dropout=0.2, key=None):
        self.inp_dim = inp_dim
        self.out_dim = out_dim
        self.num_layers = num_layers
        self.dropout = dropout  # identity at inference time

        if key is None:
            key = jax.random.PRNGKey(0)
        k = 1.0 / float(out_dim) ** 0.5
        self.params = []        # raw PyTorch-layout params (for reference check)
        for layer in range(num_layers):
            din = inp_dim if layer == 0 else out_dim
            key, k1, k2, k3, k4 = jax.random.split(key, 5)
            w_ih = jax.random.uniform(k1, (4 * out_dim, din), jnp.float32, -k, k)
            w_hh = jax.random.uniform(k2, (4 * out_dim, out_dim), jnp.float32, -k, k)
            b_ih = jax.random.uniform(k3, (4 * out_dim,), jnp.float32, -k, k)
            b_hh = jax.random.uniform(k4, (4 * out_dim,), jnp.float32, -k, k)
            self.params.append((w_ih, w_hh, b_ih, b_hh))

        # Per-generation VMEM budget (queried once, not per forward call).
        self._vmem_limit = _vmem_limit_bytes()
        self._chunk_budget = int(self._vmem_limit * 0.8)

        # Pre-transpose / pad / cast weights ONCE (not per forward call):
        #   W_ih -> (Din_l, 4*Hp) bf16, W_hh -> (Hp, 4*Hp) bf16,
        #   bias = b_ih + b_hh -> (1, 4*Hp) f32; each gate padded to Hp lanes,
        #   gate blocks reordered from (i,f,g,o) to [i | f | o | g].
        H = out_dim
        Hp = _round_up(H, 128)
        self._h_pad = Hp
        self._packed = []
        for layer, (w_ih, w_hh, b_ih, b_hh) in enumerate(self.params):
            din = inp_dim if layer == 0 else out_dim
            din_p = din if layer == 0 else Hp
            self._packed.append((
                self._pack_weight(w_ih, H, Hp, din, din_p),
                self._pack_weight(w_hh, H, Hp, out_dim, Hp),
                self._pack_bias(b_ih + b_hh, H, Hp),
            ))

    @staticmethod
    def _pack_weight(w, H, Hp, din, din_p):
        # (4H, din) gate-row-major (i,f,g,o) -> (din_p, 4*Hp) with gate blocks
        # reordered to [i | f | o | g] (sigmoid gates contiguous).
        w4 = w.reshape(4, H, din)[jnp.array([0, 1, 3, 2])]
        w4 = jnp.pad(w4, ((0, 0), (0, Hp - H), (0, din_p - din)))
        return (jnp.transpose(w4, (2, 0, 1))
                .reshape(din_p, 4 * Hp).astype(jnp.bfloat16))

    @staticmethod
    def _pack_bias(b, H, Hp):
        b4 = b.reshape(4, H)[jnp.array([0, 1, 3, 2])]
        b4 = jnp.pad(b4, ((0, 0), (0, Hp - H)))
        return b4.reshape(1, 4 * Hp).astype(jnp.float32)

    @functools.partial(jax.jit, static_argnums=0)
    def __call__(self, x):
        """x: (B, T, inp_dim) batch-first.  Returns (output, (h_n, c_n))."""
        B, T, Din = x.shape
        L = self.num_layers
        H = self.out_dim
        Hp = self._h_pad
        Bp = _round_up(B, 8)                      # sublane alignment
        TC = _choose_time_chunk(T, Bp, Din, Hp, L, self._chunk_budget)
        Tp = _round_up(T, TC)
        SUB = TC // 4 if TC >= 32 else TC         # projection sub-tile steps

        # batch-first -> time-major, pad batch / time, flatten to 2-D.
        xt = jnp.transpose(x, (1, 0, 2)).astype(jnp.bfloat16)   # (T, B, Din)
        xt = jnp.pad(xt, ((0, Tp - T), (0, Bp - B), (0, 0)))
        x2 = xt.reshape(Tp * Bp, Din)

        kernel = _make_fused_lstm_kernel(L, T, Tp, TC, SUB, Bp, Hp)

        in_specs = [pl.BlockSpec((TC * Bp, Din), lambda t: (t, 0))]
        flat_w = []
        for (wih, whh, bias) in self._packed:
            for arr in (wih, whh, bias):
                in_specs.append(pl.BlockSpec(arr.shape, lambda t: (0, 0)))
                flat_w.append(arr)

        grid_spec = pltpu.PrefetchScalarGridSpec(
            num_scalar_prefetch=0,
            grid=(Tp // TC,),
            in_specs=in_specs,
            out_specs=(
                pl.BlockSpec((TC * Bp, Hp), lambda t: (t, 0)),
                pl.BlockSpec((L, Bp, Hp), lambda t: (0, 0, 0)),
                pl.BlockSpec((L, Bp, Hp), lambda t: (0, 0, 0)),
            ),
            scratch_shapes=[
                pltpu.VMEM((L, Bp, Hp), jnp.float32),        # h state
                pltpu.VMEM((L, Bp, Hp), jnp.float32),        # c state
                pltpu.VMEM((TC * Bp, Hp), jnp.float32),      # inter-layer acts
                pltpu.VMEM((TC * Bp, 4 * Hp), jnp.float32),  # hoisted gate proj
            ],
        )

        y2, hn, cn = pl.pallas_call(
            kernel,
            out_shape=(
                jax.ShapeDtypeStruct((Tp * Bp, Hp), jnp.float32),
                jax.ShapeDtypeStruct((L, Bp, Hp), jnp.float32),
                jax.ShapeDtypeStruct((L, Bp, Hp), jnp.float32),
            ),
            grid_spec=grid_spec,
            compiler_params=pltpu.CompilerParams(
                # Time chunks carry the recurrence -> must run in order.
                dimension_semantics=("arbitrary",),
                vmem_limit_bytes=self._vmem_limit,
            ),
        )(x2, *flat_w)

        y = y2.reshape(Tp, Bp, Hp)[:T, :B, :H]
        out = jnp.transpose(y, (1, 0, 2))                    # (B, T, H)
        h_n = hn[:, :B, :H]                                  # (L, B, H)
        c_n = cn[:, :B, :H]                                  # (L, B, H)
        return out, (h_n, c_n)

    def get_output_dim(self):
        return self.out_dim


def _lstm_reference(x, params):
    """Pure-JAX reference with matching bf16-matmul / f32-state numerics."""
    cur = jnp.transpose(x, (1, 0, 2)).astype(jnp.float32)
    h_fin, c_fin = [], []
    for (w_ih, w_hh, b_ih, b_hh) in params:
        T, B, _ = cur.shape
        H = w_hh.shape[1]
        wih_t = jnp.transpose(w_ih).astype(jnp.bfloat16)
        whh_t = jnp.transpose(w_hh).astype(jnp.bfloat16)
        bias = (b_ih + b_hh).astype(jnp.float32)
        h = jnp.zeros((B, H), jnp.float32)
        c = jnp.zeros((B, H), jnp.float32)
        ys = []
        for t in range(T):
            gates = (jnp.dot(cur[t].astype(jnp.bfloat16), wih_t,
                             preferred_element_type=jnp.float32)
                     + jnp.dot(h.astype(jnp.bfloat16), whh_t,
                               preferred_element_type=jnp.float32)
                     + bias)
            i = jax.nn.sigmoid(gates[:, 0 * H:1 * H])
            f = jax.nn.sigmoid(gates[:, 1 * H:2 * H])
            g = jnp.tanh(gates[:, 2 * H:3 * H])
            o = jax.nn.sigmoid(gates[:, 3 * H:4 * H])
            c = f * c + i * g
            h = o * jnp.tanh(c)
            ys.append(h)
        cur = jnp.stack(ys, axis=0)
        h_fin.append(h)
        c_fin.append(c)
    return (jnp.transpose(cur, (1, 0, 2)),
            jnp.stack(h_fin, axis=0), jnp.stack(c_fin, axis=0))


if __name__ == "__main__":
    B, T = 2, 8
    INP_DIM, OUT_DIM, NUM_LAYERS = 16, 32, 2

    key = jax.random.PRNGKey(0)
    key_x, key_p = jax.random.split(key)
    x = jax.random.normal(key_x, (B, T, INP_DIM), jnp.float32)

    enc = TEncoderPallas(INP_DIM, OUT_DIM, num_layers=NUM_LAYERS,
                         dropout=0.2, key=key_p)

    out, (h_n, c_n) = enc(x)
    out = jax.block_until_ready(out)
    h_n = jax.block_until_ready(h_n)
    c_n = jax.block_until_ready(c_n)

    assert out.shape == (B, T, OUT_DIM)
    assert h_n.shape == (NUM_LAYERS, B, OUT_DIM)
    assert c_n.shape == (NUM_LAYERS, B, OUT_DIM)
    assert bool(jnp.all(jnp.isfinite(out)))

    ref_out, ref_hn, ref_cn = _lstm_reference(x, enc.params)
    assert jnp.allclose(out, ref_out, atol=5e-3, rtol=5e-3), "output mismatch"
    assert jnp.allclose(h_n, ref_hn, atol=5e-3, rtol=5e-3), "h_n mismatch"
    assert jnp.allclose(c_n, ref_cn, atol=5e-3, rtol=5e-3), "c_n mismatch"

    print("KERNEL_OK")
</pallas_src>

<mosaic_0001>
module attributes {stable_mosaic.version = 11 : i64} {
  func.func @kernel(%arg0: i32, %arg1: memref<64x16xbf16, #tpu.memory_space<vmem>>, %arg2: memref<16x512xbf16, #tpu.memory_space<vmem>>, %arg3: memref<128x512xbf16, #tpu.memory_space<vmem>>, %arg4: memref<1x512xf32, #tpu.memory_space<vmem>>, %arg5: memref<128x512xbf16, #tpu.memory_space<vmem>>, %arg6: memref<128x512xbf16, #tpu.memory_space<vmem>>, %arg7: memref<1x512xf32, #tpu.memory_space<vmem>>, %arg8: memref<64x128xf32, #tpu.memory_space<vmem>>, %arg9: memref<2x8x128xf32, #tpu.memory_space<vmem>>, %arg10: memref<2x8x128xf32, #tpu.memory_space<vmem>>, %arg11: memref<2x8x128xf32, #tpu.memory_space<vmem>>, %arg12: memref<2x8x128xf32, #tpu.memory_space<vmem>>, %arg13: memref<64x128xf32, #tpu.memory_space<vmem>>, %arg14: memref<64x512xf32, #tpu.memory_space<vmem>>) attributes {dimension_semantics = [#tpu.dimension_semantics<arbitrary>], iteration_bounds = array<i64: 1>, scalar_prefetch = 0 : i64, scratch_operands = 4 : i64, tpu.core_type = #tpu.core_type<tc>, window_params = [{transform_indices = @transform_0, window_bounds = array<i64: 64, 16>}, {pipeline_mode = #tpu.pipeline_mode<synchronous>, transform_indices = @transform_1, window_bounds = array<i64: 16, 512>}, {pipeline_mode = #tpu.pipeline_mode<synchronous>, transform_indices = @transform_2, window_bounds = array<i64: 128, 512>}, {pipeline_mode = #tpu.pipeline_mode<synchronous>, transform_indices = @transform_3, window_bounds = array<i64: 1, 512>}, {pipeline_mode = #tpu.pipeline_mode<synchronous>, transform_indices = @transform_4, window_bounds = array<i64: 128, 512>}, {pipeline_mode = #tpu.pipeline_mode<synchronous>, transform_indices = @transform_5, window_bounds = array<i64: 128, 512>}, {pipeline_mode = #tpu.pipeline_mode<synchronous>, transform_indices = @transform_6, window_bounds = array<i64: 1, 512>}, {transform_indices = @transform_7, window_bounds = array<i64: 64, 128>}, {pipeline_mode = #tpu.pipeline_mode<synchronous>, transform_indices = @transform_8, window_bounds = array<i64: 2, 8, 128>}, {pipeline_mode = #tpu.pipeline_mode<synchronous>, transform_indices = @transform_9, window_bounds = array<i64: 2, 8, 128>}]} {
    %c0_i32 = arith.constant 0 : i32
    %0 = arith.cmpi eq, %arg0, %c0_i32 : i32
    %1 = arith.extui %0 : i1 to i32
    %c0_i32_0 = arith.constant 0 : i32
    %2 = arith.cmpi ne, %1, %c0_i32_0 : i32
    scf.if %2 {
      %cst_180 = arith.constant 0.000000e+00 : f32
      %473 = vector.broadcast %cst_180 : f32 to vector<2x8x128xf32>
      %c0_181 = arith.constant 0 : index
      %c0_182 = arith.constant 0 : index
      %c0_183 = arith.constant 0 : index
      %474 = vector.load %arg11[%c0_181, %c0_182, %c0_183] : memref<2x8x128xf32, #tpu.memory_space<vmem>>, vector<2x8x128xf32>
      tpu.vector_store %arg11[%c0_181, %c0_182, %c0_183], %473 {strides = array<i32>} : memref<2x8x128xf32, #tpu.memory_space<vmem>>, vector<2x8x128xf32>,
      %cst_184 = arith.constant 0.000000e+00 : f32
      %475 = vector.broadcast %cst_184 : f32 to vector<2x8x128xf32>
      %c0_185 = arith.constant 0 : index
      %c0_186 = arith.constant 0 : index
      %c0_187 = arith.constant 0 : index
      %476 = vector.load %arg12[%c0_185, %c0_186, %c0_187] : memref<2x8x128xf32, #tpu.memory_space<vmem>>, vector<2x8x128xf32>
      tpu.vector_store %arg12[%c0_185, %c0_186, %c0_187], %475 {strides = array<i32>} : memref<2x8x128xf32, #tpu.memory_space<vmem>>, vector<2x8x128xf32>,
    } else {
    }
    %c0 = arith.constant 0 : index
    %c0_1 = arith.constant 0 : index
    %c0_2 = arith.constant 0 : index
    %3 = vector.load %arg11[%c0, %c0_1, %c0_2] : memref<2x8x128xf32, #tpu.memory_space<vmem>>, vector<1x8x128xf32>
    %4 = vector.shape_cast %3 : vector<1x8x128xf32> to vector<8x128xf32>
    %c0_3 = arith.constant 0 : index
    %c0_4 = arith.constant 0 : index
    %c0_5 = arith.constant 0 : index
    %5 = vector.load %arg12[%c0_3, %c0_4, %c0_5] : memref<2x8x128xf32, #tpu.memory_space<vmem>>, vector<1x8x128xf32>
    %6 = vector.shape_cast %5 : vector<1x8x128xf32> to vector<8x128xf32>
    %c0_6 = arith.constant 0 : index
    %c0_7 = arith.constant 0 : index
    %7 = vector.load %arg1[%c0_6, %c0_7] : memref<64x16xbf16, #tpu.memory_space<vmem>>, vector<64x16xbf16>
    %c0_8 = arith.constant 0 : index
    %c0_9 = arith.constant 0 : index
    %8 = vector.load %arg2[%c0_8, %c0_9] : memref<16x512xbf16, #tpu.memory_space<vmem>>, vector<16x512xbf16>
    %cst = arith.constant dense<0.000000e+00> : vector<64x512xf32>
    %9 = tpu.matmul %7, %8, %cst {dimension_numbers = #tpu.dot_dimension_numbers<[1], [0], [0], [1], [0, 0, 1, 1], [], []>} : vector<64x16xbf16>, vector<16x512xbf16>, vector<64x512xf32> -> vector<64x512xf32>
    %c0_10 = arith.constant 0 : index
    %c0_11 = arith.constant 0 : index
    %10 = vector.load %arg4[%c0_10, %c0_11] : memref<1x512xf32, #tpu.memory_space<vmem>>, vector<1x512xf32>
    %11 = vector.broadcast %10 : vector<1x512xf32> to vector<64x512xf32>
    %12 = arith.addf %9, %11 : vector<64x512xf32>
    %c0_12 = arith.constant 0 : index
    %c0_13 = arith.constant 0 : index
    %13 = vector.load %arg14[%c0_12, %c0_13] : memref<64x512xf32, #tpu.memory_space<vmem>>, vector<64x512xf32>
    tpu.vector_store %arg14[%c0_12, %c0_13], %12 {strides = array<i32>} : memref<64x512xf32, #tpu.memory_space<vmem>>, vector<64x512xf32>,
    %c0_i32_14 = arith.constant 0 : i32
    %c8_i32 = arith.constant 8 : i32
    %14 = arith.muli %c0_i32_14, %c8_i32 : i32
    %c0_i32_15 = arith.constant 0 : i32
    %15 = arith.addi %c0_i32_15, %14 : i32
    %16 = tpu.assume_multiple %15, 8 : i32
    %17 = arith.index_cast %16 : i32 to index
    %c0_16 = arith.constant 0 : index
    %18 = vector.load %arg14[%17, %c0_16] : memref<64x512xf32, #tpu.memory_space<vmem>>, vector<8x512xf32>
    %19 = arith.truncf %4 : vector<8x128xf32> to vector<8x128xbf16>
    %c0_17 = arith.constant 0 : index
    %c0_18 = arith.constant 0 : index
    %20 = vector.load %arg3[%c0_17, %c0_18] : memref<128x512xbf16, #tpu.memory_space<vmem>>, vector<128x512xbf16>
    %cst_19 = arith.constant dense<0.000000e+00> : vector<8x512xf32>
    %21 = tpu.matmul %19, %20, %cst_19 {dimension_numbers = #tpu.dot_dimension_numbers<[1], [0], [0], [1], [0, 0, 1, 1], [], []>} : vector<8x128xbf16>, vector<128x512xbf16>, vector<8x512xf32> -> vector<8x512xf32>
    %22 = arith.addf %18, %21 : vector<8x512xf32>
    %23 = vector.extract_strided_slice %22 {offsets = [0, 0], sizes = [8, 384], strides = [1, 1]} : vector<8x512xf32> to vector<8x384xf32>
    %24 = arith.negf %23 : vector<8x384xf32>
    %25 = math.exp %24 : vector<8x384xf32>
    %cst_20 = arith.constant 1.000000e+00 : f32
    %26 = vector.broadcast %cst_20 : f32 to vector<8x384xf32>
    %27 = arith.addf %26, %25 : vector<8x384xf32>
    %28 = arith.divf %26, %27 : vector<8x384xf32>
    %29 = vector.extract_strided_slice %28 {offsets = [0, 0], sizes = [8, 128], strides = [1, 1]} : vector<8x384xf32> to vector<8x128xf32>
    %30 = vector.extract_strided_slice %28 {offsets = [0, 128], sizes = [8, 128], strides = [1, 1]} : vector<8x384xf32> to vector<8x128xf32>
    %31 = vector.extract_strided_slice %28 {offsets = [0, 256], sizes = [8, 128], strides = [1, 1]} : vector<8x384xf32> to vector<8x128xf32>
    %32 = vector.extract_strided_slice %22 {offsets = [0, 384], sizes = [8, 128], strides = [1, 1]} : vector<8x512xf32> to vector<8x128xf32>
    %33 = math.tanh %32 : vector<8x128xf32>
    %34 = arith.mulf %30, %6 : vector<8x128xf32>
    %35 = arith.mulf %29, %33 : vector<8x128xf32>
    %36 = arith.addf %34, %35 : vector<8x128xf32>
    %37 = math.tanh %36 : vector<8x128xf32>
    %38 = arith.mulf %31, %37 : vector<8x128xf32>
    %39 = arith.index_cast %16 : i32 to index
    %c0_21 = arith.constant 0 : index
    %40 = vector.load %arg13[%39, %c0_21] : memref<64x128xf32, #tpu.memory_space<vmem>>, vector<8x128xf32>
    tpu.vector_store %arg13[%39, %c0_21], %38 {strides = array<i32>} : memref<64x128xf32, #tpu.memory_space<vmem>>, vector<8x128xf32>,
    %c1_i32 = arith.constant 1 : i32
    %c8_i32_22 = arith.constant 8 : i32
    %41 = arith.muli %c1_i32, %c8_i32_22 : i32
    %c0_i32_23 = arith.constant 0 : i32
    %42 = arith.addi %c0_i32_23, %41 : i32
    %43 = tpu.assume_multiple %42, 8 : i32
    %44 = arith.index_cast %43 : i32 to index
    %c0_24 = arith.constant 0 : index
    %45 = vector.load %arg14[%44, %c0_24] : memref<64x512xf32, #tpu.memory_space<vmem>>, vector<8x512xf32>
    %46 = arith.truncf %38 : vector<8x128xf32> to vector<8x128xbf16>
    %c0_25 = arith.constant 0 : index
    %c0_26 = arith.constant 0 : index
    %47 = vector.load %arg3[%c0_25, %c0_26] : memref<128x512xbf16, #tpu.memory_space<vmem>>, vector<128x512xbf16>
    %cst_27 = arith.constant dense<0.000000e+00> : vector<8x512xf32>
    %48 = tpu.matmul %46, %47, %cst_27 {dimension_numbers = #tpu.dot_dimension_numbers<[1], [0], [0], [1], [0, 0, 1, 1], [], []>} : vector<8x128xbf16>, vector<128x512xbf16>, vector<8x512xf32> -> vector<8x512xf32>
    %49 = arith.addf %45, %48 : vector<8x512xf32>
    %50 = vector.extract_strided_slice %49 {offsets = [0, 0], sizes = [8, 384], strides = [1, 1]} : vector<8x512xf32> to vector<8x384xf32>
    %51 = arith.negf %50 : vector<8x384xf32>
    %52 = math.exp %51 : vector<8x384xf32>
    %cst_28 = arith.constant 1.000000e+00 : f32
    %53 = vector.broadcast %cst_28 : f32 to vector<8x384xf32>
    %54 = arith.addf %53, %52 : vector<8x384xf32>
    %55 = arith.divf %53, %54 : vector<8x384xf32>
    %56 = vector.extract_strided_slice %55 {offsets = [0, 0], sizes = [8, 128], strides = [1, 1]} : vector<8x384xf32> to vector<8x128xf32>
    %57 = vector.extract_strided_slice %55 {offsets = [0, 128], sizes = [8, 128], strides = [1, 1]} : vector<8x384xf32> to vector<8x128xf32>
    %58 = vector.extract_strided_slice %55 {offsets = [0, 256], sizes = [8, 128], strides = [1, 1]} : vector<8x384xf32> to vector<8x128xf32>
    %59 = vector.extract_strided_slice %49 {offsets = [0, 384], sizes = [8, 128], strides = [1, 1]} : vector<8x512xf32> to vector<8x128xf32>
    %60 = math.tanh %59 : vector<8x128xf32>
    %61 = arith.mulf %57, %36 : vector<8x128xf32>
    %62 = arith.mulf %56, %60 : vector<8x128xf32>
    %63 = arith.addf %61, %62 : vector<8x128xf32>
    %64 = math.tanh %63 : vector<8x128xf32>
    %65 = arith.mulf %58, %64 : vector<8x128xf32>
    %66 = arith.index_cast %43 : i32 to index
    %c0_29 = arith.constant 0 : index
    %67 = vector.load %arg13[%66, %c0_29] : memref<64x128xf32, #tpu.memory_space<vmem>>, vector<8x128xf32>
    tpu.vector_store %arg13[%66, %c0_29], %65 {strides = array<i32>} : memref<64x128xf32, #tpu.memory_space<vmem>>, vector<8x128xf32>,
    %c2_i32 = arith.constant 2 : i32
    %c8_i32_30 = arith.constant 8 : i32
    %68 = arith.muli %c2_i32, %c8_i32_30 : i32
    %c0_i32_31 = arith.constant 0 : i32
    %69 = arith.addi %c0_i32_31, %68 : i32
    %70 = tpu.assume_multiple %69, 8 : i32
    %71 = arith.index_cast %70 : i32 to index
    %c0_32 = arith.constant 0 : index
    %72 = vector.load %arg14[%71, %c0_32] : memref<64x512xf32, #tpu.memory_space<vmem>>, vector<8x512xf32>
    %73 = arith.truncf %65 : vector<8x128xf32> to vector<8x128xbf16>
    %c0_33 = arith.constant 0 : index
    %c0_34 = arith.constant 0 : index
    %74 = vector.load %arg3[%c0_33, %c0_34] : memref<128x512xbf16, #tpu.memory_space<vmem>>, vector<128x512xbf16>
    %cst_35 = arith.constant dense<0.000000e+00> : vector<8x512xf32>
    %75 = tpu.matmul %73, %74, %cst_35 {dimension_numbers = #tpu.dot_dimension_numbers<[1], [0], [0], [1], [0, 0, 1, 1], [], []>} : vector<8x128xbf16>, vector<128x512xbf16>, vector<8x512xf32> -> vector<8x512xf32>
    %76 = arith.addf %72, %75 : vector<8x512xf32>
    %77 = vector.extract_strided_slice %76 {offsets = [0, 0], sizes = [8, 384], strides = [1, 1]} : vector<8x512xf32> to vector<8x384xf32>
    %78 = arith.negf %77 : vector<8x384xf32>
    %79 = math.exp %78 : vector<8x384xf32>
    %cst_36 = arith.constant 1.000000e+00 : f32
    %80 = vector.broadcast %cst_36 : f32 to vector<8x384xf32>
    %81 = arith.addf %80, %79 : vector<8x384xf32>
    %82 = arith.divf %80, %81 : vector<8x384xf32>
    %83 = vector.extract_strided_slice %82 {offsets = [0, 0], sizes = [8, 128], strides = [1, 1]} : vector<8x384xf32> to vector<8x128xf32>
    %84 = vector.extract_strided_slice %82 {offsets = [0, 128], sizes = [8, 128], strides = [1, 1]} : vector<8x384xf32> to vector<8x128xf32>
    %85 = vector.extract_strided_slice %82 {offsets = [0, 256], sizes = [8, 128], strides = [1, 1]} : vector<8x384xf32> to vector<8x128xf32>
    %86 = vector.extract_strided_slice %76 {offsets = [0, 384], sizes = [8, 128], strides = [1, 1]} : vector<8x512xf32> to vector<8x128xf32>
    %87 = math.tanh %86 : vector<8x128xf32>
    %88 = arith.mulf %84, %63 : vector<8x128xf32>
    %89 = arith.mulf %83, %87 : vector<8x128xf32>
    %90 = arith.addf %88, %89 : vector<8x128xf32>
    %91 = math.tanh %90 : vector<8x128xf32>
    %92 = arith.mulf %85, %91 : vector<8x128xf32>
    %93 = arith.index_cast %70 : i32 to index
    %c0_37 = arith.constant 0 : index
    %94 = vector.load %arg13[%93, %c0_37] : memref<64x128xf32, #tpu.memory_space<vmem>>, vector<8x128xf32>
    tpu.vector_store %arg13[%93, %c0_37], %92 {strides = array<i32>} : memref<64x128xf32, #tpu.memory_space<vmem>>, vector<8x128xf32>,
    %c3_i32 = arith.constant 3 : i32
    %c8_i32_38 = arith.constant 8 : i32
    %95 = arith.muli %c3_i32, %c8_i32_38 : i32
    %c0_i32_39 = arith.constant 0 : i32
    %96 = arith.addi %c0_i32_39, %95 : i32
    %97 = tpu.assume_multiple %96, 8 : i32
    %98 = arith.index_cast %97 : i32 to index
    %c0_40 = arith.constant 0 : index
    %99 = vector.load %arg14[%98, %c0_40] : memref<64x512xf32, #tpu.memory_space<vmem>>, vector<8x512xf32>
    %100 = arith.truncf %92 : vector<8x128xf32> to vector<8x128xbf16>
    %c0_41 = arith.constant 0 : index
    %c0_42 = arith.constant 0 : index
    %101 = vector.load %arg3[%c0_41, %c0_42] : memref<128x512xbf16, #tpu.memory_space<vmem>>, vector<128x512xbf16>
    %cst_43 = arith.constant dense<0.000000e+00> : vector<8x512xf32>
    %102 = tpu.matmul %100, %101, %cst_43 {dimension_numbers = #tpu.dot_dimension_numbers<[1], [0], [0], [1], [0, 0, 1, 1], [], []>} : vector<8x128xbf16>, vector<128x512xbf16>, vector<8x512xf32> -> vector<8x512xf32>
    %103 = arith.addf %99, %102 : vector<8x512xf32>
    %104 = vector.extract_strided_slice %103 {offsets = [0, 0], sizes = [8, 384], strides = [1, 1]} : vector<8x512xf32> to vector<8x384xf32>
    %105 = arith.negf %104 : vector<8x384xf32>
    %106 = math.exp %105 : vector<8x384xf32>
    %cst_44 = arith.constant 1.000000e+00 : f32
    %107 = vector.broadcast %cst_44 : f32 to vector<8x384xf32>
    %108 = arith.addf %107, %106 : vector<8x384xf32>
    %109 = arith.divf %107, %108 : vector<8x384xf32>
    %110 = vector.extract_strided_slice %109 {offsets = [0, 0], sizes = [8, 128], strides = [1, 1]} : vector<8x384xf32> to vector<8x128xf32>
    %111 = vector.extract_strided_slice %109 {offsets = [0, 128], sizes = [8, 128], strides = [1, 1]} : vector<8x384xf32> to vector<8x128xf32>
    %112 = vector.extract_strided_slice %109 {offsets = [0, 256], sizes = [8, 128], strides = [1, 1]} : vector<8x384xf32> to vector<8x128xf32>
    %113 = vector.extract_strided_slice %103 {offsets = [0, 384], sizes = [8, 128], strides = [1, 1]} : vector<8x512xf32> to vector<8x128xf32>
    %114 = math.tanh %113 : vector<8x128xf32>
    %115 = arith.mulf %111, %90 : vector<8x128xf32>
    %116 = arith.mulf %110, %114 : vector<8x128xf32>
    %117 = arith.addf %115, %116 : vector<8x128xf32>
    %118 = math.tanh %117 : vector<8x128xf32>
    %119 = arith.mulf %112, %118 : vector<8x128xf32>
    %120 = arith.index_cast %97 : i32 to index
    %c0_45 = arith.constant 0 : index
    %121 = vector.load %arg13[%120, %c0_45] : memref<64x128xf32, #tpu.memory_space<vmem>>, vector<8x128xf32>
    tpu.vector_store %arg13[%120, %c0_45], %119 {strides = array<i32>} : memref<64x128xf32, #tpu.memory_space<vmem>>, vector<8x128xf32>,
    %c4_i32 = arith.constant 4 : i32
    %c8_i32_46 = arith.constant 8 : i32
    %122 = arith.muli %c4_i32, %c8_i32_46 : i32
    %c0_i32_47 = arith.constant 0 : i32
    %123 = arith.addi %c0_i32_47, %122 : i32
    %124 = tpu.assume_multiple %123, 8 : i32
    %125 = arith.index_cast %124 : i32 to index
    %c0_48 = arith.constant 0 : index
    %126 = vector.load %arg14[%125, %c0_48] : memref<64x512xf32, #tpu.memory_space<vmem>>, vector<8x512xf32>
    %127 = arith.truncf %119 : vector<8x128xf32> to vector<8x128xbf16>
    %c0_49 = arith.constant 0 : index
    %c0_50 = arith.constant 0 : index
    %128 = vector.load %arg3[%c0_49, %c0_50] : memref<128x512xbf16, #tpu.memory_space<vmem>>, vector<128x512xbf16>
    %cst_51 = arith.constant dense<0.000000e+00> : vector<8x512xf32>
    %129 = tpu.matmul %127, %128, %cst_51 {dimension_numbers = #tpu.dot_dimension_numbers<[1], [0], [0], [1], [0, 0, 1, 1], [], []>} : vector<8x128xbf16>, vector<128x512xbf16>, vector<8x512xf32> -> vector<8x512xf32>
    %130 = arith.addf %126, %129 : vector<8x512xf32>
    %131 = vector.extract_strided_slice %130 {offsets = [0, 0], sizes = [8, 384], strides = [1, 1]} : vector<8x512xf32> to vector<8x384xf32>
    %132 = arith.negf %131 : vector<8x384xf32>
    %133 = math.exp %132 : vector<8x384xf32>
    %cst_52 = arith.constant 1.000000e+00 : f32
    %134 = vector.broadcast %cst_52 : f32 to vector<8x384xf32>
    %135 = arith.addf %134, %133 : vector<8x384xf32>
    %136 = arith.divf %134, %135 : vector<8x384xf32>
    %137 = vector.extract_strided_slice %136 {offsets = [0, 0], sizes = [8, 128], strides = [1, 1]} : vector<8x384xf32> to vector<8x128xf32>
    %138 = vector.extract_strided_slice %136 {offsets = [0, 128], sizes = [8, 128], strides = [1, 1]} : vector<8x384xf32> to vector<8x128xf32>
    %139 = vector.extract_strided_slice %136 {offsets = [0, 256], sizes = [8, 128], strides = [1, 1]} : vector<8x384xf32> to vector<8x128xf32>
    %140 = vector.extract_strided_slice %130 {offsets = [0, 384], sizes = [8, 128], strides = [1, 1]} : vector<8x512xf32> to vector<8x128xf32>
    %141 = math.tanh %140 : vector<8x128xf32>
    %142 = arith.mulf %138, %117 : vector<8x128xf32>
    %143 = arith.mulf %137, %141 : vector<8x128xf32>
    %144 = arith.addf %142, %143 : vector<8x128xf32>
    %145 = math.tanh %144 : vector<8x128xf32>
    %146 = arith.mulf %139, %145 : vector<8x128xf32>
    %147 = arith.index_cast %124 : i32 to index
    %c0_53 = arith.constant 0 : index
    %148 = vector.load %arg13[%147, %c0_53] : memref<64x128xf32, #tpu.memory_space<vmem>>, vector<8x128xf32>
    tpu.vector_store %arg13[%147, %c0_53], %146 {strides = array<i32>} : memref<64x128xf32, #tpu.memory_space<vmem>>, vector<8x128xf32>,
    %c5_i32 = arith.constant 5 : i32
    %c8_i32_54 = arith.constant 8 : i32
    %149 = arith.muli %c5_i32, %c8_i32_54 : i32
    %c0_i32_55 = arith.constant 0 : i32
    %150 = arith.addi %c0_i32_55, %149 : i32
    %151 = tpu.assume_multiple %150, 8 : i32
    %152 = arith.index_cast %151 : i32 to index
    %c0_56 = arith.constant 0 : index
    %153 = vector.load %arg14[%152, %c0_56] : memref<64x512xf32, #tpu.memory_space<vmem>>, vector<8x512xf32>
    %154 = arith.truncf %146 : vector<8x128xf32> to vector<8x128xbf16>
    %c0_57 = arith.constant 0 : index
    %c0_58 = arith.constant 0 : index
    %155 = vector.load %arg3[%c0_57, %c0_58] : memref<128x512xbf16, #tpu.memory_space<vmem>>, vector<128x512xbf16>
    %cst_59 = arith.constant dense<0.000000e+00> : vector<8x512xf32>
    %156 = tpu.matmul %154, %155, %cst_59 {dimension_numbers = #tpu.dot_dimension_numbers<[1], [0], [0], [1], [0, 0, 1, 1], [], []>} : vector<8x128xbf16>, vector<128x512xbf16>, vector<8x512xf32> -> vector<8x512xf32>
    %157 = arith.addf %153, %156 : vector<8x512xf32>
    %158 = vector.extract_strided_slice %157 {offsets = [0, 0], sizes = [8, 384], strides = [1, 1]} : vector<8x512xf32> to vector<8x384xf32>
    %159 = arith.negf %158 : vector<8x384xf32>
    %160 = math.exp %159 : vector<8x384xf32>
    %cst_60 = arith.constant 1.000000e+00 : f32
    %161 = vector.broadcast %cst_60 : f32 to vector<8x384xf32>
    %162 = arith.addf %161, %160 : vector<8x384xf32>
    %163 = arith.divf %161, %162 : vector<8x384xf32>
    %164 = vector.extract_strided_slice %163 {offsets = [0, 0], sizes = [8, 128], strides = [1, 1]} : vector<8x384xf32> to vector<8x128xf32>
    %165 = vector.extract_strided_slice %163 {offsets = [0, 128], sizes = [8, 128], strides = [1, 1]} : vector<8x384xf32> to vector<8x128xf32>
    %166 = vector.extract_strided_slice %163 {offsets = [0, 256], sizes = [8, 128], strides = [1, 1]} : vector<8x384xf32> to vector<8x128xf32>
    %167 = vector.extract_strided_slice %157 {offsets = [0, 384], sizes = [8, 128], strides = [1, 1]} : vector<8x512xf32> to vector<8x128xf32>
    %168 = math.tanh %167 : vector<8x128xf32>
    %169 = arith.mulf %165, %144 : vector<8x128xf32>
    %170 = arith.mulf %164, %168 : vector<8x128xf32>
    %171 = arith.addf %169, %170 : vector<8x128xf32>
    %172 = math.tanh %171 : vector<8x128xf32>
    %173 = arith.mulf %166, %172 : vector<8x128xf32>
    %174 = arith.index_cast %151 : i32 to index
    %c0_61 = arith.constant 0 : index
    %175 = vector.load %arg13[%174, %c0_61] : memref<64x128xf32, #tpu.memory_space<vmem>>, vector<8x128xf32>
    tpu.vector_store %arg13[%174, %c0_61], %173 {strides = array<i32>} : memref<64x128xf32, #tpu.memory_space<vmem>>, vector<8x128xf32>,
    %c6_i32 = arith.constant 6 : i32
    %c8_i32_62 = arith.constant 8 : i32
    %176 = arith.muli %c6_i32, %c8_i32_62 : i32
    %c0_i32_63 = arith.constant 0 : i32
    %177 = arith.addi %c0_i32_63, %176 : i32
    %178 = tpu.assume_multiple %177, 8 : i32
    %179 = arith.index_cast %178 : i32 to index
    %c0_64 = arith.constant 0 : index
    %180 = vector.load %arg14[%179, %c0_64] : memref<64x512xf32, #tpu.memory_space<vmem>>, vector<8x512xf32>
    %181 = arith.truncf %173 : vector<8x128xf32> to vector<8x128xbf16>
    %c0_65 = arith.constant 0 : index
    %c0_66 = arith.constant 0 : index
    %182 = vector.load %arg3[%c0_65, %c0_66] : memref<128x512xbf16, #tpu.memory_space<vmem>>, vector<128x512xbf16>
    %cst_67 = arith.constant dense<0.000000e+00> : vector<8x512xf32>
    %183 = tpu.matmul %181, %182, %cst_67 {dimension_numbers = #tpu.dot_dimension_numbers<[1], [0], [0], [1], [0, 0, 1, 1], [], []>} : vector<8x128xbf16>, vector<128x512xbf16>, vector<8x512xf32> -> vector<8x512xf32>
    %184 = arith.addf %180, %183 : vector<8x512xf32>
    %185 = vector.extract_strided_slice %184 {offsets = [0, 0], sizes = [8, 384], strides = [1, 1]} : vector<8x512xf32> to vector<8x384xf32>
    %186 = arith.negf %185 : vector<8x384xf32>
    %187 = math.exp %186 : vector<8x384xf32>
    %cst_68 = arith.constant 1.000000e+00 : f32
    %188 = vector.broadcast %cst_68 : f32 to vector<8x384xf32>
    %189 = arith.addf %188, %187 : vector<8x384xf32>
    %190 = arith.divf %188, %189 : vector<8x384xf32>
    %191 = vector.extract_strided_slice %190 {offsets = [0, 0], sizes = [8, 128], strides = [1, 1]} : vector<8x384xf32> to vector<8x128xf32>
    %192 = vector.extract_strided_slice %190 {offsets = [0, 128], sizes = [8, 128], strides = [1, 1]} : vector<8x384xf32> to vector<8x128xf32>
    %193 = vector.extract_strided_slice %190 {offsets = [0, 256], sizes = [8, 128], strides = [1, 1]} : vector<8x384xf32> to vector<8x128xf32>
    %194 = vector.extract_strided_slice %184 {offsets = [0, 384], sizes = [8, 128], strides = [1, 1]} : vector<8x512xf32> to vector<8x128xf32>
    %195 = math.tanh %194 : vector<8x128xf32>
    %196 = arith.mulf %192, %171 : vector<8x128xf32>
    %197 = arith.mulf %191, %195 : vector<8x128xf32>
    %198 = arith.addf %196, %197 : vector<8x128xf32>
    %199 = math.tanh %198 : vector<8x128xf32>
    %200 = arith.mulf %193, %199 : vector<8x128xf32>
    %201 = arith.index_cast %178 : i32 to index
    %c0_69 = arith.constant 0 : index
    %202 = vector.load %arg13[%201, %c0_69] : memref<64x128xf32, #tpu.memory_space<vmem>>, vector<8x128xf32>
    tpu.vector_store %arg13[%201, %c0_69], %200 {strides = array<i32>} : memref<64x128xf32, #tpu.memory_space<vmem>>, vector<8x128xf32>,
    %c7_i32 = arith.constant 7 : i32
    %c8_i32_70 = arith.constant 8 : i32
    %203 = arith.muli %c7_i32, %c8_i32_70 : i32
    %c0_i32_71 = arith.constant 0 : i32
    %204 = arith.addi %c0_i32_71, %203 : i32
    %205 = tpu.assume_multiple %204, 8 : i32
    %206 = arith.index_cast %205 : i32 to index
    %c0_72 = arith.constant 0 : index
    %207 = vector.load %arg14[%206, %c0_72] : memref<64x512xf32, #tpu.memory_space<vmem>>, vector<8x512xf32>
    %208 = arith.truncf %200 : vector<8x128xf32> to vector<8x128xbf16>
    %c0_73 = arith.constant 0 : index
    %c0_74 = arith.constant 0 : index
    %209 = vector.load %arg3[%c0_73, %c0_74] : memref<128x512xbf16, #tpu.memory_space<vmem>>, vector<128x512xbf16>
    %cst_75 = arith.constant dense<0.000000e+00> : vector<8x512xf32>
    %210 = tpu.matmul %208, %209, %cst_75 {dimension_numbers = #tpu.dot_dimension_numbers<[1], [0], [0], [1], [0, 0, 1, 1], [], []>} : vector<8x128xbf16>, vector<128x512xbf16>, vector<8x512xf32> -> vector<8x512xf32>
    %211 = arith.addf %207, %210 : vector<8x512xf32>
    %212 = vector.extract_strided_slice %211 {offsets = [0, 0], sizes = [8, 384], strides = [1, 1]} : vector<8x512xf32> to vector<8x384xf32>
    %213 = arith.negf %212 : vector<8x384xf32>
    %214 = math.exp %213 : vector<8x384xf32>
    %cst_76 = arith.constant 1.000000e+00 : f32
    %215 = vector.broadcast %cst_76 : f32 to vector<8x384xf32>
    %216 = arith.addf %215, %214 : vector<8x384xf32>
    %217 = arith.divf %215, %216 : vector<8x384xf32>
    %218 = vector.extract_strided_slice %217 {offsets = [0, 0], sizes = [8, 128], strides = [1, 1]} : vector<8x384xf32> to vector<8x128xf32>
    %219 = vector.extract_strided_slice %217 {offsets = [0, 128], sizes = [8, 128], strides = [1, 1]} : vector<8x384xf32> to vector<8x128xf32>
    %220 = vector.extract_strided_slice %217 {offsets = [0, 256], sizes = [8, 128], strides = [1, 1]} : vector<8x384xf32> to vector<8x128xf32>
    %221 = vector.extract_strided_slice %211 {offsets = [0, 384], sizes = [8, 128], strides = [1, 1]} : vector<8x512xf32> to vector<8x128xf32>
    %222 = math.tanh %221 : vector<8x128xf32>
    %223 = arith.mulf %219, %198 : vector<8x128xf32>
    %224 = arith.mulf %218, %222 : vector<8x128xf32>
    %225 = arith.addf %223, %224 : vector<8x128xf32>
    %226 = math.tanh %225 : vector<8x128xf32>
    %227 = arith.mulf %220, %226 : vector<8x128xf32>
    %228 = arith.index_cast %205 : i32 to index
    %c0_77 = arith.constant 0 : index
    %229 = vector.load %arg13[%228, %c0_77] : memref<64x128xf32, #tpu.memory_space<vmem>>, vector<8x128xf32>
    tpu.vector_store %arg13[%228, %c0_77], %227 {strides = array<i32>} : memref<64x128xf32, #tpu.memory_space<vmem>>, vector<8x128xf32>,
    %c8_i32_78 = arith.constant 8 : i32
    %c0_79 = arith.constant 0 : index
    %c0_80 = arith.constant 0 : index
    %c0_81 = arith.constant 0 : index
    %230 = vector.load %arg11[%c0_79, %c0_80, %c0_81] : memref<2x8x128xf32, #tpu.memory_space<vmem>>, vector<1x8x128xf32>
    %231 = vector.shape_cast %230 : vector<1x8x128xf32> to vector<8x128xf32>
    %232 = vector.shape_cast %227 : vector<8x128xf32> to vector<1x8x128xf32>
    tpu.vector_store %arg11[%c0_79, %c0_80, %c0_81], %232 {strides = array<i32>} : memref<2x8x128xf32, #tpu.memory_space<vmem>>, vector<1x8x128xf32>,
    %c0_82 = arith.constant 0 : index
    %c0_83 = arith.constant 0 : index
    %c0_84 = arith.constant 0 : index
    %233 = vector.load %arg12[%c0_82, %c0_83, %c0_84] : memref<2x8x128xf32, #tpu.memory_space<vmem>>, vector<1x8x128xf32>
    %234 = vector.shape_cast %233 : vector<1x8x128xf32> to vector<8x128xf32>
    %235 = vector.shape_cast %225 : vector<8x128xf32> to vector<1x8x128xf32>
    tpu.vector_store %arg12[%c0_82, %c0_83, %c0_84], %235 {strides = array<i32>} : memref<2x8x128xf32, #tpu.memory_space<vmem>>, vector<1x8x128xf32>,
    %c1 = arith.constant 1 : index
    %c0_85 = arith.constant 0 : index
    %c0_86 = arith.constant 0 : index
    %236 = vector.load %arg11[%c1, %c0_85, %c0_86] : memref<2x8x128xf32, #tpu.memory_space<vmem>>, vector<1x8x128xf32>
    %237 = vector.shape_cast %236 : vector<1x8x128xf32> to vector<8x128xf32>
    %c1_87 = arith.constant 1 : index
    %c0_88 = arith.constant 0 : index
    %c0_89 = arith.constant 0 : index
    %238 = vector.load %arg12[%c1_87, %c0_88, %c0_89] : memref<2x8x128xf32, #tpu.memory_space<vmem>>, vector<1x8x128xf32>
    %239 = vector.shape_cast %238 : vector<1x8x128xf32> to vector<8x128xf32>
    %c0_90 = arith.constant 0 : index
    %c0_91 = arith.constant 0 : index
    %240 = vector.load %arg13[%c0_90, %c0_91] : memref<64x128xf32, #tpu.memory_space<vmem>>, vector<64x128xf32>
    %241 = arith.truncf %240 : vector<64x128xf32> to vector<64x128xbf16>
    %c0_92 = arith.constant 0 : index
    %c0_93 = arith.constant 0 : index
    %242 = vector.load %arg5[%c0_92, %c0_93] : memref<128x512xbf16, #tpu.memory_space<vmem>>, vector<128x512xbf16>
    %cst_94 = arith.constant dense<0.000000e+00> : vector<64x512xf32>
    %243 = tpu.matmul %241, %242, %cst_94 {dimension_numbers = #tpu.dot_dimension_numbers<[1], [0], [0], [1], [0, 0, 1, 1], [], []>} : vector<64x128xbf16>, vector<128x512xbf16>, vector<64x512xf32> -> vector<64x512xf32>
    %c0_95 = arith.constant 0 : index
    %c0_96 = arith.constant 0 : index
    %244 = vector.load %arg7[%c0_95, %c0_96] : memref<1x512xf32, #tpu.memory_space<vmem>>, vector<1x512xf32>
    %245 = vector.broadcast %244 : vector<1x512xf32> to vector<64x512xf32>
    %246 = arith.addf %243, %245 : vector<64x512xf32>
    %c0_97 = arith.constant 0 : index
    %c0_98 = arith.constant 0 : index
    %247 = vector.load %arg14[%c0_97, %c0_98] : memref<64x512xf32, #tpu.memory_space<vmem>>, vector<64x512xf32>
    tpu.vector_store %arg14[%c0_97, %c0_98], %246 {strides = array<i32>} : memref<64x512xf32, #tpu.memory_space<vmem>>, vector<64x512xf32>,
    %c0_i32_99 = arith.constant 0 : i32
    %c8_i32_100 = arith.constant 8 : i32
    %248 = arith.muli %c0_i32_99, %c8_i32_100 : i32
    %c0_i32_101 = arith.constant 0 : i32
    %249 = arith.addi %c0_i32_101, %248 : i32
    %250 = tpu.assume_multiple %249, 8 : i32
    %251 = arith.index_cast %250 : i32 to index
    %c0_102 = arith.constant 0 : index
    %252 = vector.load %arg14[%251, %c0_102] : memref<64x512xf32, #tpu.memory_space<vmem>>, vector<8x512xf32>
    %253 = arith.truncf %237 : vector<8x128xf32> to vector<8x128xbf16>
    %c0_103 = arith.constant 0 : index
    %c0_104 = arith.constant 0 : index
    %254 = vector.load %arg6[%c0_103, %c0_104] : memref<128x512xbf16, #tpu.memory_space<vmem>>, vector<128x512xbf16>
    %cst_105 = arith.constant dense<0.000000e+00> : vector<8x512xf32>
    %255 = tpu.matmul %253, %254, %cst_105 {dimension_numbers = #tpu.dot_dimension_numbers<[1], [0], [0], [1], [0, 0, 1, 1], [], []>} : vector<8x128xbf16>, vector<128x512xbf16>, vector<8x512xf32> -> vector<8x512xf32>
    %256 = arith.addf %252, %255 : vector<8x512xf32>
    %257 = vector.extract_strided_slice %256 {offsets = [0, 0], sizes = [8, 384], strides = [1, 1]} : vector<8x512xf32> to vector<8x384xf32>
    %258 = arith.negf %257 : vector<8x384xf32>
    %259 = math.exp %258 : vector<8x384xf32>
    %cst_106 = arith.constant 1.000000e+00 : f32
    %260 = vector.broadcast %cst_106 : f32 to vector<8x384xf32>
    %261 = arith.addf %260, %259 : vector<8x384xf32>
    %262 = arith.divf %260, %261 : vector<8x384xf32>
    %263 = vector.extract_strided_slice %262 {offsets = [0, 0], sizes = [8, 128], strides = [1, 1]} : vector<8x384xf32> to vector<8x128xf32>
    %264 = vector.extract_strided_slice %262 {offsets = [0, 128], sizes = [8, 128], strides = [1, 1]} : vector<8x384xf32> to vector<8x128xf32>
    %265 = vector.extract_strided_slice %262 {offsets = [0, 256], sizes = [8, 128], strides = [1, 1]} : vector<8x384xf32> to vector<8x128xf32>
    %266 = vector.extract_strided_slice %256 {offsets = [0, 384], sizes = [8, 128], strides = [1, 1]} : vector<8x512xf32> to vector<8x128xf32>
    %267 = math.tanh %266 : vector<8x128xf32>
    %268 = arith.mulf %264, %239 : vector<8x128xf32>
    %269 = arith.mulf %263, %267 : vector<8x128xf32>
    %270 = arith.addf %268, %269 : vector<8x128xf32>
    %271 = math.tanh %270 : vector<8x128xf32>
    %272 = arith.mulf %265, %271 : vector<8x128xf32>
    %273 = arith.index_cast %250 : i32 to index
    %c0_107 = arith.constant 0 : index
    %274 = vector.load %arg8[%273, %c0_107] : memref<64x128xf32, #tpu.memory_space<vmem>>, vector<8x128xf32>
    tpu.vector_store %arg8[%273, %c0_107], %272 {strides = array<i32>} : memref<64x128xf32, #tpu.memory_space<vmem>>, vector<8x128xf32>,
    %c1_i32_108 = arith.constant 1 : i32
    %c8_i32_109 = arith.constant 8 : i32
    %275 = arith.muli %c1_i32_108, %c8_i32_109 : i32
    %c0_i32_110 = arith.constant 0 : i32
    %276 = arith.addi %c0_i32_110, %275 : i32
    %277 = tpu.assume_multiple %276, 8 : i32
    %278 = arith.index_cast %277 : i32 to index
    %c0_111 = arith.constant 0 : index
    %279 = vector.load %arg14[%278, %c0_111] : memref<64x512xf32, #tpu.memory_space<vmem>>, vector<8x512xf32>
    %280 = arith.truncf %272 : vector<8x128xf32> to vector<8x128xbf16>
    %c0_112 = arith.constant 0 : index
    %c0_113 = arith.constant 0 : index
    %281 = vector.load %arg6[%c0_112, %c0_113] : memref<128x512xbf16, #tpu.memory_space<vmem>>, vector<128x512xbf16>
    %cst_114 = arith.constant dense<0.000000e+00> : vector<8x512xf32>
    %282 = tpu.matmul %280, %281, %cst_114 {dimension_numbers = #tpu.dot_dimension_numbers<[1], [0], [0], [1], [0, 0, 1, 1], [], []>} : vector<8x128xbf16>, vector<128x512xbf16>, vector<8x512xf32> -> vector<8x512xf32>
    %283 = arith.addf %279, %282 : vector<8x512xf32>
    %284 = vector.extract_strided_slice %283 {offsets = [0, 0], sizes = [8, 384], strides = [1, 1]} : vector<8x512xf32> to vector<8x384xf32>
    %285 = arith.negf %284 : vector<8x384xf32>
    %286 = math.exp %285 : vector<8x384xf32>
    %cst_115 = arith.constant 1.000000e+00 : f32
    %287 = vector.broadcast %cst_115 : f32 to vector<8x384xf32>
    %288 = arith.addf %287, %286 : vector<8x384xf32>
    %289 = arith.divf %287, %288 : vector<8x384xf32>
    %290 = vector.extract_strided_slice %289 {offsets = [0, 0], sizes = [8, 128], strides = [1, 1]} : vector<8x384xf32> to vector<8x128xf32>
    %291 = vector.extract_strided_slice %289 {offsets = [0, 128], sizes = [8, 128], strides = [1, 1]} : vector<8x384xf32> to vector<8x128xf32>
    %292 = vector.extract_strided_slice %289 {offsets = [0, 256], sizes = [8, 128], strides = [1, 1]} : vector<8x384xf32> to vector<8x128xf32>
    %293 = vector.extract_strided_slice %283 {offsets = [0, 384], sizes = [8, 128], strides = [1, 1]} : vector<8x512xf32> to vector<8x128xf32>
    %294 = math.tanh %293 : vector<8x128xf32>
    %295 = arith.mulf %291, %270 : vector<8x128xf32>
    %296 = arith.mulf %290, %294 : vector<8x128xf32>
    %297 = arith.addf %295, %296 : vector<8x128xf32>
    %298 = math.tanh %297 : vector<8x128xf32>
    %299 = arith.mulf %292, %298 : vector<8x128xf32>
    %300 = arith.index_cast %277 : i32 to index
    %c0_116 = arith.constant 0 : index
    %301 = vector.load %arg8[%300, %c0_116] : memref<64x128xf32, #tpu.memory_space<vmem>>, vector<8x128xf32>
    tpu.vector_store %arg8[%300, %c0_116], %299 {strides = array<i32>} : memref<64x128xf32, #tpu.memory_space<vmem>>, vector<8x128xf32>,
    %c2_i32_117 = arith.constant 2 : i32
    %c8_i32_118 = arith.constant 8 : i32
    %302 = arith.muli %c2_i32_117, %c8_i32_118 : i32
    %c0_i32_119 = arith.constant 0 : i32
    %303 = arith.addi %c0_i32_119, %302 : i32
    %304 = tpu.assume_multiple %303, 8 : i32
    %305 = arith.index_cast %304 : i32 to index
    %c0_120 = arith.constant 0 : index
    %306 = vector.load %arg14[%305, %c0_120] : memref<64x512xf32, #tpu.memory_space<vmem>>, vector<8x512xf32>
    %307 = arith.truncf %299 : vector<8x128xf32> to vector<8x128xbf16>
    %c0_121 = arith.constant 0 : index
    %c0_122 = arith.constant 0 : index
    %308 = vector.load %arg6[%c0_121, %c0_122] : memref<128x512xbf16, #tpu.memory_space<vmem>>, vector<128x512xbf16>
    %cst_123 = arith.constant dense<0.000000e+00> : vector<8x512xf32>
    %309 = tpu.matmul %307, %308, %cst_123 {dimension_numbers = #tpu.dot_dimension_numbers<[1], [0], [0], [1], [0, 0, 1, 1], [], []>} : vector<8x128xbf16>, vector<128x512xbf16>, vector<8x512xf32> -> vector<8x512xf32>
    %310 = arith.addf %306, %309 : vector<8x512xf32>
    %311 = vector.extract_strided_slice %310 {offsets = [0, 0], sizes = [8, 384], strides = [1, 1]} : vector<8x512xf32> to vector<8x384xf32>
    %312 = arith.negf %311 : vector<8x384xf32>
    %313 = math.exp %312 : vector<8x384xf32>
    %cst_124 = arith.constant 1.000000e+00 : f32
    %314 = vector.broadcast %cst_124 : f32 to vector<8x384xf32>
    %315 = arith.addf %314, %313 : vector<8x384xf32>
    %316 = arith.divf %314, %315 : vector<8x384xf32>
    %317 = vector.extract_strided_slice %316 {offsets = [0, 0], sizes = [8, 128], strides = [1, 1]} : vector<8x384xf32> to vector<8x128xf32>
    %318 = vector.extract_strided_slice %316 {offsets = [0, 128], sizes = [8, 128], strides = [1, 1]} : vector<8x384xf32> to vector<8x128xf32>
    %319 = vector.extract_strided_slice %316 {offsets = [0, 256], sizes = [8, 128], strides = [1, 1]} : vector<8x384xf32> to vector<8x128xf32>
    %320 = vector.extract_strided_slice %310 {offsets = [0, 384], sizes = [8, 128], strides = [1, 1]} : vector<8x512xf32> to vector<8x128xf32>
    %321 = math.tanh %320 : vector<8x128xf32>
    %322 = arith.mulf %318, %297 : vector<8x128xf32>
    %323 = arith.mulf %317, %321 : vector<8x128xf32>
    %324 = arith.addf %322, %323 : vector<8x128xf32>
    %325 = math.tanh %324 : vector<8x128xf32>
    %326 = arith.mulf %319, %325 : vector<8x128xf32>
    %327 = arith.index_cast %304 : i32 to index
    %c0_125 = arith.constant 0 : index
    %328 = vector.load %arg8[%327, %c0_125] : memref<64x128xf32, #tpu.memory_space<vmem>>, vector<8x128xf32>
    tpu.vector_store %arg8[%327, %c0_125], %326 {strides = array<i32>} : memref<64x128xf32, #tpu.memory_space<vmem>>, vector<8x128xf32>,
    %c3_i32_126 = arith.constant 3 : i32
    %c8_i32_127 = arith.constant 8 : i32
    %329 = arith.muli %c3_i32_126, %c8_i32_127 : i32
    %c0_i32_128 = arith.constant 0 : i32
    %330 = arith.addi %c0_i32_128, %329 : i32
    %331 = tpu.assume_multiple %330, 8 : i32
    %332 = arith.index_cast %331 : i32 to index
    %c0_129 = arith.constant 0 : index
    %333 = vector.load %arg14[%332, %c0_129] : memref<64x512xf32, #tpu.memory_space<vmem>>, vector<8x512xf32>
    %334 = arith.truncf %326 : vector<8x128xf32> to vector<8x128xbf16>
    %c0_130 = arith.constant 0 : index
    %c0_131 = arith.constant 0 : index
    %335 = vector.load %arg6[%c0_130, %c0_131] : memref<128x512xbf16, #tpu.memory_space<vmem>>, vector<128x512xbf16>
    %cst_132 = arith.constant dense<0.000000e+00> : vector<8x512xf32>
    %336 = tpu.matmul %334, %335, %cst_132 {dimension_numbers = #tpu.dot_dimension_numbers<[1], [0], [0], [1], [0, 0, 1, 1], [], []>} : vector<8x128xbf16>, vector<128x512xbf16>, vector<8x512xf32> -> vector<8x512xf32>
    %337 = arith.addf %333, %336 : vector<8x512xf32>
    %338 = vector.extract_strided_slice %337 {offsets = [0, 0], sizes = [8, 384], strides = [1, 1]} : vector<8x512xf32> to vector<8x384xf32>
    %339 = arith.negf %338 : vector<8x384xf32>
    %340 = math.exp %339 : vector<8x384xf32>
    %cst_133 = arith.constant 1.000000e+00 : f32
    %341 = vector.broadcast %cst_133 : f32 to vector<8x384xf32>
    %342 = arith.addf %341, %340 : vector<8x384xf32>
    %343 = arith.divf %341, %342 : vector<8x384xf32>
    %344 = vector.extract_strided_slice %343 {offsets = [0, 0], sizes = [8, 128], strides = [1, 1]} : vector<8x384xf32> to vector<8x128xf32>
    %345 = vector.extract_strided_slice %343 {offsets = [0, 128], sizes = [8, 128], strides = [1, 1]} : vector<8x384xf32> to vector<8x128xf32>
    %346 = vector.extract_strided_slice %343 {offsets = [0, 256], sizes = [8, 128], strides = [1, 1]} : vector<8x384xf32> to vector<8x128xf32>
    %347 = vector.extract_strided_slice %337 {offsets = [0, 384], sizes = [8, 128], strides = [1, 1]} : vector<8x512xf32> to vector<8x128xf32>
    %348 = math.tanh %347 : vector<8x128xf32>
    %349 = arith.mulf %345, %324 : vector<8x128xf32>
    %350 = arith.mulf %344, %348 : vector<8x128xf32>
    %351 = arith.addf %349, %350 : vector<8x128xf32>
    %352 = math.tanh %351 : vector<8x128xf32>
    %353 = arith.mulf %346, %352 : vector<8x128xf32>
    %354 = arith.index_cast %331 : i32 to index
    %c0_134 = arith.constant 0 : index
    %355 = vector.load %arg8[%354, %c0_134] : memref<64x128xf32, #tpu.memory_space<vmem>>, vector<8x128xf32>
    tpu.vector_store %arg8[%354, %c0_134], %353 {strides = array<i32>} : memref<64x128xf32, #tpu.memory_space<vmem>>, vector<8x128xf32>,
    %c4_i32_135 = arith.constant 4 : i32
    %c8_i32_136 = arith.constant 8 : i32
    %356 = arith.muli %c4_i32_135, %c8_i32_136 : i32
    %c0_i32_137 = arith.constant 0 : i32
    %357 = arith.addi %c0_i32_137, %356 : i32
    %358 = tpu.assume_multiple %357, 8 : i32
    %359 = arith.index_cast %358 : i32 to index
    %c0_138 = arith.constant 0 : index
    %360 = vector.load %arg14[%359, %c0_138] : memref<64x512xf32, #tpu.memory_space<vmem>>, vector<8x512xf32>
    %361 = arith.truncf %353 : vector<8x128xf32> to vector<8x128xbf16>
    %c0_139 = arith.constant 0 : index
    %c0_140 = arith.constant 0 : index
    %362 = vector.load %arg6[%c0_139, %c0_140] : memref<128x512xbf16, #tpu.memory_space<vmem>>, vector<128x512xbf16>
    %cst_141 = arith.constant dense<0.000000e+00> : vector<8x512xf32>
    %363 = tpu.matmul %361, %362, %cst_141 {dimension_numbers = #tpu.dot_dimension_numbers<[1], [0], [0], [1], [0, 0, 1, 1], [], []>} : vector<8x128xbf16>, vector<128x512xbf16>, vector<8x512xf32> -> vector<8x512xf32>
    %364 = arith.addf %360, %363 : vector<8x512xf32>
    %365 = vector.extract_strided_slice %364 {offsets = [0, 0], sizes = [8, 384], strides = [1, 1]} : vector<8x512xf32> to vector<8x384xf32>
    %366 = arith.negf %365 : vector<8x384xf32>
    %367 = math.exp %366 : vector<8x384xf32>
    %cst_142 = arith.constant 1.000000e+00 : f32
    %368 = vector.broadcast %cst_142 : f32 to vector<8x384xf32>
    %369 = arith.addf %368, %367 : vector<8x384xf32>
    %370 = arith.divf %368, %369 : vector<8x384xf32>
    %371 = vector.extract_strided_slice %370 {offsets = [0, 0], sizes = [8, 128], strides = [1, 1]} : vector<8x384xf32> to vector<8x128xf32>
    %372 = vector.extract_strided_slice %370 {offsets = [0, 128], sizes = [8, 128], strides = [1, 1]} : vector<8x384xf32> to vector<8x128xf32>
    %373 = vector.extract_strided_slice %370 {offsets = [0, 256], sizes = [8, 128], strides = [1, 1]} : vector<8x384xf32> to vector<8x128xf32>
    %374 = vector.extract_strided_slice %364 {offsets = [0, 384], sizes = [8, 128], strides = [1, 1]} : vector<8x512xf32> to vector<8x128xf32>
    %375 = math.tanh %374 : vector<8x128xf32>
    %376 = arith.mulf %372, %351 : vector<8x128xf32>
    %377 = arith.mulf %371, %375 : vector<8x128xf32>
    %378 = arith.addf %376, %377 : vector<8x128xf32>
    %379 = math.tanh %378 : vector<8x128xf32>
    %380 = arith.mulf %373, %379 : vector<8x128xf32>
    %381 = arith.index_cast %358 : i32 to index
    %c0_143 = arith.constant 0 : index
    %382 = vector.load %arg8[%381, %c0_143] : memref<64x128xf32, #tpu.memory_space<vmem>>, vector<8x128xf32>
    tpu.vector_store %arg8[%381, %c0_143], %380 {strides = array<i32>} : memref<64x128xf32, #tpu.memory_space<vmem>>, vector<8x128xf32>,
    %c5_i32_144 = arith.constant 5 : i32
    %c8_i32_145 = arith.constant 8 : i32
    %383 = arith.muli %c5_i32_144, %c8_i32_145 : i32
    %c0_i32_146 = arith.constant 0 : i32
    %384 = arith.addi %c0_i32_146, %383 : i32
    %385 = tpu.assume_multiple %384, 8 : i32
    %386 = arith.index_cast %385 : i32 to index
    %c0_147 = arith.constant 0 : index
    %387 = vector.load %arg14[%386, %c0_147] : memref<64x512xf32, #tpu.memory_space<vmem>>, vector<8x512xf32>
    %388 = arith.truncf %380 : vector<8x128xf32> to vector<8x128xbf16>
    %c0_148 = arith.constant 0 : index
    %c0_149 = arith.constant 0 : index
    %389 = vector.load %arg6[%c0_148, %c0_149] : memref<128x512xbf16, #tpu.memory_space<vmem>>, vector<128x512xbf16>
    %cst_150 = arith.constant dense<0.000000e+00> : vector<8x512xf32>
    %390 = tpu.matmul %388, %389, %cst_150 {dimension_numbers = #tpu.dot_dimension_numbers<[1], [0], [0], [1], [0, 0, 1, 1], [], []>} : vector<8x128xbf16>, vector<128x512xbf16>, vector<8x512xf32> -> vector<8x512xf32>
    %391 = arith.addf %387, %390 : vector<8x512xf32>
    %392 = vector.extract_strided_slice %391 {offsets = [0, 0], sizes = [8, 384], strides = [1, 1]} : vector<8x512xf32> to vector<8x384xf32>
    %393 = arith.negf %392 : vector<8x384xf32>
    %394 = math.exp %393 : vector<8x384xf32>
    %cst_151 = arith.constant 1.000000e+00 : f32
    %395 = vector.broadcast %cst_151 : f32 to vector<8x384xf32>
    %396 = arith.addf %395, %394 : vector<8x384xf32>
    %397 = arith.divf %395, %396 : vector<8x384xf32>
    %398 = vector.extract_strided_slice %397 {offsets = [0, 0], sizes = [8, 128], strides = [1, 1]} : vector<8x384xf32> to vector<8x128xf32>
    %399 = vector.extract_strided_slice %397 {offsets = [0, 128], sizes = [8, 128], strides = [1, 1]} : vector<8x384xf32> to vector<8x128xf32>
    %400 = vector.extract_strided_slice %397 {offsets = [0, 256], sizes = [8, 128], strides = [1, 1]} : vector<8x384xf32> to vector<8x128xf32>
    %401 = vector.extract_strided_slice %391 {offsets = [0, 384], sizes = [8, 128], strides = [1, 1]} : vector<8x512xf32> to vector<8x128xf32>
    %402 = math.tanh %401 : vector<8x128xf32>
    %403 = arith.mulf %399, %378 : vector<8x128xf32>
    %404 = arith.mulf %398, %402 : vector<8x128xf32>
    %405 = arith.addf %403, %404 : vector<8x128xf32>
    %406 = math.tanh %405 : vector<8x128xf32>
    %407 = arith.mulf %400, %406 : vector<8x128xf32>
    %408 = arith.index_cast %385 : i32 to index
    %c0_152 = arith.constant 0 : index
    %409 = vector.load %arg8[%408, %c0_152] : memref<64x128xf32, #tpu.memory_space<vmem>>, vector<8x128xf32>
    tpu.vector_store %arg8[%408, %c0_152], %407 {strides = array<i32>} : memref<64x128xf32, #tpu.memory_space<vmem>>, vector<8x128xf32>,
    %c6_i32_153 = arith.constant 6 : i32
    %c8_i32_154 = arith.constant 8 : i32
    %410 = arith.muli %c6_i32_153, %c8_i32_154 : i32
    %c0_i32_155 = arith.constant 0 : i32
    %411 = arith.addi %c0_i32_155, %410 : i32
    %412 = tpu.assume_multiple %411, 8 : i32
    %413 = arith.index_cast %412 : i32 to index
    %c0_156 = arith.constant 0 : index
    %414 = vector.load %arg14[%413, %c0_156] : memref<64x512xf32, #tpu.memory_space<vmem>>, vector<8x512xf32>
    %415 = arith.truncf %407 : vector<8x128xf32> to vector<8x128xbf16>
    %c0_157 = arith.constant 0 : index
    %c0_158 = arith.constant 0 : index
    %416 = vector.load %arg6[%c0_157, %c0_158] : memref<128x512xbf16, #tpu.memory_space<vmem>>, vector<128x512xbf16>
    %cst_159 = arith.constant dense<0.000000e+00> : vector<8x512xf32>
    %417 = tpu.matmul %415, %416, %cst_159 {dimension_numbers = #tpu.dot_dimension_numbers<[1], [0], [0], [1], [0, 0, 1, 1], [], []>} : vector<8x128xbf16>, vector<128x512xbf16>, vector<8x512xf32> -> vector<8x512xf32>
    %418 = arith.addf %414, %417 : vector<8x512xf32>
    %419 = vector.extract_strided_slice %418 {offsets = [0, 0], sizes = [8, 384], strides = [1, 1]} : vector<8x512xf32> to vector<8x384xf32>
    %420 = arith.negf %419 : vector<8x384xf32>
    %421 = math.exp %420 : vector<8x384xf32>
    %cst_160 = arith.constant 1.000000e+00 : f32
    %422 = vector.broadcast %cst_160 : f32 to vector<8x384xf32>
    %423 = arith.addf %422, %421 : vector<8x384xf32>
    %424 = arith.divf %422, %423 : vector<8x384xf32>
    %425 = vector.extract_strided_slice %424 {offsets = [0, 0], sizes = [8, 128], strides = [1, 1]} : vector<8x384xf32> to vector<8x128xf32>
    %426 = vector.extract_strided_slice %424 {offsets = [0, 128], sizes = [8, 128], strides = [1, 1]} : vector<8x384xf32> to vector<8x128xf32>
    %427 = vector.extract_strided_slice %424 {offsets = [0, 256], sizes = [8, 128], strides = [1, 1]} : vector<8x384xf32> to vector<8x128xf32>
    %428 = vector.extract_strided_slice %418 {offsets = [0, 384], sizes = [8, 128], strides = [1, 1]} : vector<8x512xf32> to vector<8x128xf32>
    %429 = math.tanh %428 : vector<8x128xf32>
    %430 = arith.mulf %426, %405 : vector<8x128xf32>
    %431 = arith.mulf %425, %429 : vector<8x128xf32>
    %432 = arith.addf %430, %431 : vector<8x128xf32>
    %433 = math.tanh %432 : vector<8x128xf32>
    %434 = arith.mulf %427, %433 : vector<8x128xf32>
    %435 = arith.index_cast %412 : i32 to index
    %c0_161 = arith.constant 0 : index
    %436 = vector.load %arg8[%435, %c0_161] : memref<64x128xf32, #tpu.memory_space<vmem>>, vector<8x128xf32>
    tpu.vector_store %arg8[%435, %c0_161], %434 {strides = array<i32>} : memref<64x128xf32, #tpu.memory_space<vmem>>, vector<8x128xf32>,
    %c7_i32_162 = arith.constant 7 : i32
    %c8_i32_163 = arith.constant 8 : i32
    %437 = arith.muli %c7_i32_162, %c8_i32_163 : i32
    %c0_i32_164 = arith.constant 0 : i32
    %438 = arith.addi %c0_i32_164, %437 : i32
    %439 = tpu.assume_multiple %438, 8 : i32
    %440 = arith.index_cast %439 : i32 to index
    %c0_165 = arith.constant 0 : index
    %441 = vector.load %arg14[%440, %c0_165] : memref<64x512xf32, #tpu.memory_space<vmem>>, vector<8x512xf32>
    %442 = arith.truncf %434 : vector<8x128xf32> to vector<8x128xbf16>
    %c0_166 = arith.constant 0 : index
    %c0_167 = arith.constant 0 : index
    %443 = vector.load %arg6[%c0_166, %c0_167] : memref<128x512xbf16, #tpu.memory_space<vmem>>, vector<128x512xbf16>
    %cst_168 = arith.constant dense<0.000000e+00> : vector<8x512xf32>
    %444 = tpu.matmul %442, %443, %cst_168 {dimension_numbers = #tpu.dot_dimension_numbers<[1], [0], [0], [1], [0, 0, 1, 1], [], []>} : vector<8x128xbf16>, vector<128x512xbf16>, vector<8x512xf32> -> vector<8x512xf32>
    %445 = arith.addf %441, %444 : vector<8x512xf32>
    %446 = vector.extract_strided_slice %445 {offsets = [0, 0], sizes = [8, 384], strides = [1, 1]} : vector<8x512xf32> to vector<8x384xf32>
    %447 = arith.negf %446 : vector<8x384xf32>
    %448 = math.exp %447 : vector<8x384xf32>
    %cst_169 = arith.constant 1.000000e+00 : f32
    %449 = vector.broadcast %cst_169 : f32 to vector<8x384xf32>
    %450 = arith.addf %449, %448 : vector<8x384xf32>
    %451 = arith.divf %449, %450 : vector<8x384xf32>
    %452 = vector.extract_strided_slice %451 {offsets = [0, 0], sizes = [8, 128], strides = [1, 1]} : vector<8x384xf32> to vector<8x128xf32>
    %453 = vector.extract_strided_slice %451 {offsets = [0, 128], sizes = [8, 128], strides = [1, 1]} : vector<8x384xf32> to vector<8x128xf32>
    %454 = vector.extract_strided_slice %451 {offsets = [0, 256], sizes = [8, 128], strides = [1, 1]} : vector<8x384xf32> to vector<8x128xf32>
    %455 = vector.extract_strided_slice %445 {offsets = [0, 384], sizes = [8, 128], strides = [1, 1]} : vector<8x512xf32> to vector<8x128xf32>
    %456 = math.tanh %455 : vector<8x128xf32>
    %457 = arith.mulf %453, %432 : vector<8x128xf32>
    %458 = arith.mulf %452, %456 : vector<8x128xf32>
    %459 = arith.addf %457, %458 : vector<8x128xf32>
    %460 = math.tanh %459 : vector<8x128xf32>
    %461 = arith.mulf %454, %460 : vector<8x128xf32>
    %462 = arith.index_cast %439 : i32 to index
    %c0_170 = arith.constant 0 : index
    %463 = vector.load %arg8[%462, %c0_170] : memref<64x128xf32, #tpu.memory_space<vmem>>, vector<8x128xf32>
    tpu.vector_store %arg8[%462, %c0_170], %461 {strides = array<i32>} : memref<64x128xf32, #tpu.memory_space<vmem>>, vector<8x128xf32>,
    %c8_i32_171 = arith.constant 8 : i32
    %c1_172 = arith.constant 1 : index
    %c0_173 = arith.constant 0 : index
    %c0_174 = arith.constant 0 : index
    %464 = vector.load %arg11[%c1_172, %c0_173, %c0_174] : memref<2x8x128xf32, #tpu.memory_space<vmem>>, vector<1x8x128xf32>
    %465 = vector.shape_cast %464 : vector<1x8x128xf32> to vector<8x128xf32>
    %466 = vector.shape_cast %461 : vector<8x128xf32> to vector<1x8x128xf32>
    tpu.vector_store %arg11[%c1_172, %c0_173, %c0_174], %466 {strides = array<i32>} : memref<2x8x128xf32, #tpu.memory_space<vmem>>, vector<1x8x128xf32>,
    %c1_175 = arith.constant 1 : index
    %c0_176 = arith.constant 0 : index
    %c0_177 = arith.constant 0 : index
    %467 = vector.load %arg12[%c1_175, %c0_176, %c0_177] : memref<2x8x128xf32, #tpu.memory_space<vmem>>, vector<1x8x128xf32>
    %468 = vector.shape_cast %467 : vector<1x8x128xf32> to vector<8x128xf32>
    %469 = vector.shape_cast %459 : vector<8x128xf32> to vector<1x8x128xf32>
    tpu.vector_store %arg12[%c1_175, %c0_176, %c0_177], %469 {strides = array<i32>} : memref<2x8x128xf32, #tpu.memory_space<vmem>>, vector<1x8x128xf32>,
    %c0_i32_178 = arith.constant 0 : i32
    %470 = arith.cmpi eq, %arg0, %c0_i32_178 : i32
    %471 = arith.extui %470 : i1 to i32
    %c0_i32_179 = arith.constant 0 : i32
    %472 = arith.cmpi ne, %471, %c0_i32_179 : i32
    scf.if %472 {
      %c0_180 = arith.constant 0 : index
      %c0_181 = arith.constant 0 : index
      %c0_182 = arith.constant 0 : index
      %473 = vector.load %arg11[%c0_180, %c0_181, %c0_182] : memref<2x8x128xf32, #tpu.memory_space<vmem>>, vector<2x8x128xf32>
      %c0_183 = arith.constant 0 : index
      %c0_184 = arith.constant 0 : index
      %c0_185 = arith.constant 0 : index
      %474 = vector.load %arg9[%c0_183, %c0_184, %c0_185] : memref<2x8x128xf32, #tpu.memory_space<vmem>>, vector<2x8x128xf32>
      tpu.vector_store %arg9[%c0_183, %c0_184, %c0_185], %473 {strides = array<i32>} : memref<2x8x128xf32, #tpu.memory_space<vmem>>, vector<2x8x128xf32>,
      %c0_186 = arith.constant 0 : index
      %c0_187 = arith.constant 0 : index
      %c0_188 = arith.constant 0 : index
      %475 = vector.load %arg12[%c0_186, %c0_187, %c0_188] : memref<2x8x128xf32, #tpu.memory_space<vmem>>, vector<2x8x128xf32>
      %c0_189 = arith.constant 0 : index
      %c0_190 = arith.constant 0 : index
      %c0_191 = arith.constant 0 : index
      %476 = vector.load %arg10[%c0_189, %c0_190, %c0_191] : memref<2x8x128xf32, #tpu.memory_space<vmem>>, vector<2x8x128xf32>
      tpu.vector_store %arg10[%c0_189, %c0_190, %c0_191], %475 {strides = array<i32>} : memref<2x8x128xf32, #tpu.memory_space<vmem>>, vector<2x8x128xf32>,
    } else {
    }
    return
  }
  func.func @transform_0(%arg0: i32) -> (i32, i32) {
    %c0_i32 = arith.constant 0 : i32
    %c0_i32_0 = arith.constant 0 : i32
    return %arg0, %c0_i32 : i32, i32
  }
  func.func @transform_1(%arg0: i32) -> (i32, i32) {
    %c0_i32 = arith.constant 0 : i32
    %c0_i32_0 = arith.constant 0 : i32
    %c0_i32_1 = arith.constant 0 : i32
    return %c0_i32, %c0_i32_0 : i32, i32
  }
  func.func @transform_2(%arg0: i32) -> (i32, i32) {
    %c0_i32 = arith.constant 0 : i32
    %c0_i32_0 = arith.constant 0 : i32
    %c0_i32_1 = arith.constant 0 : i32
    return %c0_i32, %c0_i32_0 : i32, i32
  }
  func.func @transform_3(%arg0: i32) -> (i32, i32) {
    %c0_i32 = arith.constant 0 : i32
    %c0_i32_0 = arith.constant 0 : i32
    %c0_i32_1 = arith.constant 0 : i32
    return %c0_i32, %c0_i32_0 : i32, i32
  }
  func.func @transform_4(%arg0: i32) -> (i32, i32) {
    %c0_i32 = arith.constant 0 : i32
    %c0_i32_0 = arith.constant 0 : i32
    %c0_i32_1 = arith.constant 0 : i32
    return %c0_i32, %c0_i32_0 : i32, i32
  }
  func.func @transform_5(%arg0: i32) -> (i32, i32) {
    %c0_i32 = arith.constant 0 : i32
    %c0_i32_0 = arith.constant 0 : i32
    %c0_i32_1 = arith.constant 0 : i32
    return %c0_i32, %c0_i32_0 : i32, i32
  }
  func.func @transform_6(%arg0: i32) -> (i32, i32) {
    %c0_i32 = arith.constant 0 : i32
    %c0_i32_0 = arith.constant 0 : i32
    %c0_i32_1 = arith.constant 0 : i32
    return %c0_i32, %c0_i32_0 : i32, i32
  }
  func.func @transform_7(%arg0: i32) -> (i32, i32) {
    %c0_i32 = arith.constant 0 : i32
    %c0_i32_0 = arith.constant 0 : i32
    return %arg0, %c0_i32 : i32, i32
  }
  func.func @transform_8(%arg0: i32) -> (i32, i32, i32) {
    %c0_i32 = arith.constant 0 : i32
    %c0_i32_0 = arith.constant 0 : i32
    %c0_i32_1 = arith.constant 0 : i32
    %c0_i32_2 = arith.constant 0 : i32
    return %c0_i32, %c0_i32_0, %c0_i32_1 : i32, i32, i32
  }
  func.func @transform_9(%arg0: i32) -> (i32, i32, i32) {
    %c0_i32 = arith.constant 0 : i32
    %c0_i32_0 = arith.constant 0 : i32
    %c0_i32_1 = arith.constant 0 : i32
    %c0_i32_2 = arith.constant 0 : i32
    return %c0_i32, %c0_i32_0, %c0_i32_1 : i32, i32, i32
  }
}

</mosaic_0001>

<llo_original>
// kernel: a_call__.1
$region0: #{a_call__.1}
  #allocation0 [shape = 'u32[]', space=smem, size = 0x4, offset = 0x4, fixed_abs, tag = 'smem constant byte address 0x4 - core index']
  #allocation1 [shape = 'u32[72,128]{1,0:T(1,128)}', space=vmem, size = 0x9000, scoped, tag = 'internal scratch']
  #allocation2 [shape = 'f32[2,8,128]{2,1,0:T(8,128)}', space=vmem, size = 0x2000, scoped, tag = 'scratch operand']
  #allocation3 [shape = 'f32[2,8,128]{2,1,0:T(8,128)}', space=vmem, size = 0x2000, scoped, tag = 'scratch operand']
  #allocation4 [shape = 'f32[64,128]{1,0:T(8,128)}', space=vmem, size = 0x8000, scoped, tag = 'scratch operand']
  #allocation5 [shape = 'f32[64,512]{1,0:T(8,128)}', space=vmem, size = 0x20000, scoped, tag = 'scratch operand']
  %s0 = inlined_call_operand.vmem [shape: bf16[64,16], index: 0, kind: input, shape index: {}]
  %s1 = inlined_call_operand.vmem [shape: bf16[16,512], index: 1, kind: input, shape index: {}]
  %s2 = inlined_call_operand.hbm [shape: bf16[128,512], index: 2, kind: input, shape index: {}]
  %s3 = inlined_call_operand.vmem [shape: f32[1,512], index: 3, kind: input, shape index: {}]
  %s4 = inlined_call_operand.hbm [shape: bf16[128,512], index: 4, kind: input, shape index: {}]
  %s5 = inlined_call_operand.hbm [shape: bf16[128,512], index: 5, kind: input, shape index: {}]
  %s6 = inlined_call_operand.vmem [shape: f32[1,512], index: 6, kind: input, shape index: {}]
  %s7 = inlined_call_operand.vmem [shape: f32[64,128], index: 7, kind: output, shape index: {0}]
  %s8 = inlined_call_operand.vmem [shape: f32[2,8,128], index: 8, kind: output, shape index: {1}]
  %s9 = inlined_call_operand.vmem [shape: f32[2,8,128], index: 9, kind: output, shape index: {2}]
  %10 = xla_tuple %s7, %s8, %s9
  %s11 = sld [smem:[#allocation0]]
  $region74: #{a_call__.1} parent=0
    _
  %s13 = ssub.s32 1, %s11
  %s14 = scalar_select 0, %s13, %s11
  $region1: #{a_call__.1} parent=0
    #allocation6 [shape = 'u8[131072]{0}', space=vmem, size = 0x20000, scoped, tag = 'input window, operand 2, single buffered']
    #allocation7 [shape = 's32[1]{0}', space=sflag, size = 0x4, scoped, tag = 'scoped memory for a_call__.1']
    #allocation8 [shape = 'u8[131072]{0}', space=vmem, size = 0x20000, scoped, tag = 'input window, operand 4, single buffered']
    #allocation9 [shape = 's32[1]{0}', space=sflag, size = 0x4, scoped, tag = 'scoped memory for a_call__.1']
    #allocation10 [shape = 'u8[131072]{0}', space=vmem, size = 0x20000, scoped, tag = 'input window, operand 5, single buffered']
    %15 = vsyncpa [#allocation7], 0
    %16 = vsyncpa [#allocation9], 0
    // Predicated region
    $region2: #{a_call__.1} parent=1 // pred_check
      _
    $region3: #{a_call__.1} parent=1 // pred_check_branch
      %18 = sbr.rel (0) target = $region5
    $region4: #{a_call__.1} parent=1 // pred_region
      _
    $region5: #{a_call__.1} parent=1 // pred_fallthru
      _
    // Predicated region
    $region6: #{a_call__.1} parent=1 // pred_check
      _
    $region7: #{a_call__.1} parent=1 // pred_check_branch
      %20 = sbr.rel (0) target = $region9
    $region8: #{a_call__.1} parent=1 // pred_region
      _
    $region9: #{a_call__.1} parent=1 // pred_fallthru
      _
    // Predicated region
    $region10: #{a_call__.1} parent=1 // pred_check
      _
    $region11: #{a_call__.1} parent=1 // pred_check_branch
      %22 = sbr.rel (0) target = $region13
    $region12: #{a_call__.1} parent=1 // pred_region
      %24 = vsyncadd [#allocation7], 0
      %s25 = sshll.u32 %s2, 4
      %s26 = int_to_ptr.hbm [resolvable:$true] %s25
      %s27 = sshll.u32 [#allocation6], 4
      %s28 = int_to_ptr.vmem [resolvable:$true] %s27
      %33 = dma.hbm_to_vmem [thread:$0]  %s26, 4096, %s28, [#allocation7], 256, 256, 16
    $region13: #{a_call__.1} parent=1 // pred_fallthru
      _
    // Predicated region
    $region14: #{a_call__.1} parent=1 // pred_check
      _
    $region15: #{a_call__.1} parent=1 // pred_check_branch
      %35 = sbr.rel (0) target = $region17
    $region16: #{a_call__.1} parent=1 // pred_region
      _
    $region17: #{a_call__.1} parent=1 // pred_fallthru
      _
    // Predicated region
    $region18: #{a_call__.1} parent=1 // pred_check
      _
    $region19: #{a_call__.1} parent=1 // pred_check_branch
      %37 = sbr.rel (0) target = $region21
    $region20: #{a_call__.1} parent=1 // pred_region
      %39 = vsyncadd [#allocation9], 0
      %s40 = sshll.u32 %s4, 4
      %s41 = int_to_ptr.hbm [resolvable:$true] %s40
      %s42 = sshll.u32 [#allocation8], 4
      %s43 = int_to_ptr.vmem [resolvable:$true] %s42
      %48 = dma.hbm_to_vmem [thread:$0]  %s41, 4096, %s43, [#allocation9], 256, 256, 16
    $region21: #{a_call__.1} parent=1 // pred_fallthru
      _
    // Predicated region
    $region22: #{a_call__.1} parent=1 // pred_check
      _
    $region23: #{a_call__.1} parent=1 // pred_check_branch
      %50 = sbr.rel (0) target = $region25
    $region24: #{a_call__.1} parent=1 // pred_region
      %52 = vsyncadd [#allocation9], 0
      %s53 = sshll.u32 %s5, 4
      %s54 = int_to_ptr.hbm [resolvable:$true] %s53
      %s55 = sshll.u32 [#allocation10], 4
      %s56 = int_to_ptr.vmem [resolvable:$true] %s55
      %61 = dma.hbm_to_vmem [thread:$0]  %s54, 4096, %s56, [#allocation9], 256, 256, 16
    $region25: #{a_call__.1} parent=1 // pred_fallthru
      _
    // Predicated region
    $region26: #{a_call__.1} parent=1 // pred_check
      _
    $region27: #{a_call__.1} parent=1 // pred_check_branch
      %63 = sbr.rel (0) target = $region29
    $region28: #{a_call__.1} parent=1 // pred_region
      _
    $region29: #{a_call__.1} parent=1 // pred_fallthru
      _
    // Predicated region
    $region30: #{a_call__.1} parent=1 // pred_check
      _
    $region31: #{a_call__.1} parent=1 // pred_check_branch
      %65 = sbr.rel (0) target = $region33
    $region32: #{a_call__.1} parent=1 // pred_region
      %67 = dma.done [#allocation7], 4096
    $region33: #{a_call__.1} parent=1 // pred_fallthru
      _
    // Predicated region
    $region34: #{a_call__.1} parent=1 // pred_check
      _
    $region35: #{a_call__.1} parent=1 // pred_check_branch
      %69 = sbr.rel (0) target = $region37
    $region36: #{a_call__.1} parent=1 // pred_region
      %71 = dma.done [#allocation9], 4096
    $region37: #{a_call__.1} parent=1 // pred_fallthru
      _
    // Predicated region
    $region38: #{a_call__.1} parent=1 // pred_check
      _
    $region39: #{a_call__.1} parent=1 // pred_check_branch
      %73 = sbr.rel (0) target = $region41
    $region40: #{a_call__.1} parent=1 // pred_region
      %75 = dma.done [#allocation9], 4096
    $region41: #{a_call__.1} parent=1 // pred_fallthru
      _
    %p77 = scmp.eq.s32.totalorder 0, 0
    // Predicated region
    $region42: #{a_call__.1} parent=1 // pred_check
      %p78 = pneg %p77
    $region43: #{a_call__.1} parent=1 // pred_check_branch
      %80 = sbr.rel (%p78) target = $region45
    $region44: #{a_call__.1} parent=1 // pred_region
      %81 = vst [vmem:[#allocation2] sm:$0xff] 0.0
      %82 = vst [vmem:[#allocation2 + $0x8] sm:$0xff] 0.0
      %83 = vst [vmem:[#allocation3] sm:$0xff] 0.0
      %84 = vst [vmem:[#allocation3 + $0x8] sm:$0xff] 0.0
    $region45: #{a_call__.1} parent=1 // pred_fallthru
      _
    %v85 = vld [vmem:[#allocation2] sm:$0xff]
    %v86 = vld [vmem:[#allocation3] sm:$0xff]
    %v87 = vld [vmem:[%s0] sm:$0xf]
    %v88 = vld [vmem:[%s0 + $0x4] sm:$0xf]
    %v89 = vld [vmem:[%s0 + $0x8] sm:$0xf]
    %v90 = vld [vmem:[%s0 + $0xc] sm:$0xf]
    %v91 = vld [vmem:[%s0 + $0x10] sm:$0xf]
    %v92 = vld [vmem:[%s0 + $0x14] sm:$0xf]
    %v93 = vld [vmem:[%s0 + $0x18] sm:$0xf]
    %v94 = vld [vmem:[%s0 + $0x1c] sm:$0xf]
    %v95 = vld [vmem:[%s1] sm:$0xff]
    %v96 = vld [vmem:[%s1 + $0x8] sm:$0xff]
    %v97 = vld [vmem:[%s1 + $0x10] sm:$0xff]
    %v98 = vld [vmem:[%s1 + $0x18] sm:$0xff]
    %v99 = vld [vmem:[%s3] sm:$0xf]
    %v101 = vperm.slane %v99, 0
    %v102 = vperm.slane %v99, 1
    %v103 = vperm.slane %v99, 2
    %v104 = vperm.slane %v99, 3
    %v117 = vunpack.c.l.b16 %v87
    %v118 = vunpack.c.l.b16 %v88
    %v119 = vunpack.c.l.b16 %v89
    %v120 = vunpack.c.l.b16 %v90
    %v121 = vunpack.c.l.b16 %v91
    %v122 = vunpack.c.l.b16 %v92
    %v123 = vunpack.c.l.b16 %v93
    %v124 = vunpack.c.l.b16 %v94
    %v125 = vpack.c.b16 %v118, %v117
    %v126 = vpack.c.b16 %v120, %v119
    %v127 = vpack.c.b16 %v122, %v121
    %v128 = vpack.c.b16 %v124, %v123
    %v133 = vunpack.c.l.b16 %v95
    %v134 = vunpack.c.h.b16 %v95
    %v135 = vunpack.c.l.b16 %v96
    %v136 = vunpack.c.h.b16 %v96
    %v137 = vunpack.c.l.b16 %v97
    %v138 = vunpack.c.h.b16 %v97
    %v139 = vunpack.c.l.b16 %v98
    %v140 = vunpack.c.h.b16 %v98
    %v141 = vpack.c.b16 %v137, %v133
    %v142 = vpack.c.b16 %v138, %v134
    %v143 = vpack.c.b16 %v139, %v135
    %v144 = vpack.c.b16 %v140, %v136
    %vm149 = vcmask 130048
    %v151 = vsel %vm149, %v125, 0
    %v154 = vsel %vm149, %v126, 0
    %v157 = vsel %vm149, %v127, 0
    %v160 = vsel %vm149, %v128, 0
    %162 = vmatpush.bf16.msra.mxu0 0
    %163 = vmatpush.bf16.msra.mxu0 0
    %164 = vmatpush.bf16.msra.mxu0 0
    %165 = vmatpush.bf16.msra.mxu0 0
    %166 = vmatpush.bf16.msra.mxu0 0
    %167 = vmatpush.bf16.msra.mxu0 0
    %168 = vmatpush.bf16.msra.mxu0 0
    %169 = vmatpush.bf16.msra.mxu0 %v141
    %170 = vmatmul.bf16.gmra.mxu0 %v151
    %v171 = vpop.f32.mrf.mxu0
    %v172 = vadd.f32 %v101, %v171
    %v173 = vpop.f32.mrf.mxu0
    %v174 = vadd.f32 %v101, %v173
    %175 = vmatmul.bf16.gmra.mxu0 %v154
    %v176 = vpop.f32.mrf.mxu0
    %v177 = vadd.f32 %v101, %v176
    %v178 = vpop.f32.mrf.mxu0
    %v179 = vadd.f32 %v101, %v178
    %180 = vmatmul.bf16.gmra.mxu0 %v157
    %v181 = vpop.f32.mrf.mxu0
    %v182 = vadd.f32 %v101, %v181
    %v183 = vpop.f32.mrf.mxu0
    %v184 = vadd.f32 %v101, %v183
    %185 = vmatmul.bf16.gmra.mxu0 %v160
    %v186 = vpop.f32.mrf.mxu0
    %v187 = vadd.f32 %v101, %v186
    %v188 = vpop.f32.mrf.mxu0
    %v189 = vadd.f32 %v101, %v188
    %190 = vdwg.mxu0
    %191 = vmatpush.bf16.msra.mxu0 0
    %192 = vmatpush.bf16.msra.mxu0 0
    %193 = vmatpush.bf16.msra.mxu0 0
    %194 = vmatpush.bf16.msra.mxu0 0
    %195 = vmatpush.bf16.msra.mxu0 0
    %196 = vmatpush.bf16.msra.mxu0 0
    %197 = vmatpush.bf16.msra.mxu0 0
    %198 = vmatpush.bf16.msra.mxu0 %v142
    %199 = vmatmul.bf16.gmra.mxu0 %v151
    %v200 = vpop.f32.mrf.mxu0
    %v201 = vadd.f32 %v102, %v200
    %v202 = vpop.f32.mrf.mxu0
    %v203 = vadd.f32 %v102, %v202
    %204 = vmatmul.bf16.gmra.mxu0 %v154
    %v205 = vpop.f32.mrf.mxu0
    %v206 = vadd.f32 %v102, %v205
    %v207 = vpop.f32.mrf.mxu0
    %v208 = vadd.f32 %v102, %v207
    %209 = vmatmul.bf16.gmra.mxu0 %v157
    %v210 = vpop.f32.mrf.mxu0
    %v211 = vadd.f32 %v102, %v210
    %v212 = vpop.f32.mrf.mxu0
    %v213 = vadd.f32 %v102, %v212
    %214 = vmatmul.bf16.gmra.mxu0 %v160
    %v215 = vpop.f32.mrf.mxu0
    %v216 = vadd.f32 %v102, %v215
    %v217 = vpop.f32.mrf.mxu0
    %v218 = vadd.f32 %v102, %v217
    %219 = vdwg.mxu0
    %220 = vmatpush.bf16.msra.mxu0 0
    %221 = vmatpush.bf16.msra.mxu0 0
    %222 = vmatpush.bf16.msra.mxu0 0
    %223 = vmatpush.bf16.msra.mxu0 0
    %224 = vmatpush.bf16.msra.mxu0 0
    %225 = vmatpush.bf16.msra.mxu0 0
    %226 = vmatpush.bf16.msra.mxu0 0
    %227 = vmatpush.bf16.msra.mxu0 %v143
    %228 = vmatmul.bf16.gmra.mxu0 %v151
    %v229 = vpop.f32.mrf.mxu0
    %v230 = vadd.f32 %v103, %v229
    %v231 = vpop.f32.mrf.mxu0
    %v232 = vadd.f32 %v103, %v231
    %233 = vmatmul.bf16.gmra.mxu0 %v154
    %v234 = vpop.f32.mrf.mxu0
    %v235 = vadd.f32 %v103, %v234
    %v236 = vpop.f32.mrf.mxu0
    %v237 = vadd.f32 %v103, %v236
    %238 = vmatmul.bf16.gmra.mxu0 %v157
    %v239 = vpop.f32.mrf.mxu0
    %v240 = vadd.f32 %v103, %v239
    %v241 = vpop.f32.mrf.mxu0
    %v242 = vadd.f32 %v103, %v241
    %243 = vmatmul.bf16.gmra.mxu0 %v160
    %v244 = vpop.f32.mrf.mxu0
    %v245 = vadd.f32 %v103, %v244
    %v246 = vpop.f32.mrf.mxu0
    %v247 = vadd.f32 %v103, %v246
    %248 = vdwg.mxu0
    %249 = vmatpush.bf16.msra.mxu0 0
    %250 = vmatpush.bf16.msra.mxu0 0
    %251 = vmatpush.bf16.msra.mxu0 0
    %252 = vmatpush.bf16.msra.mxu0 0
    %253 = vmatpush.bf16.msra.mxu0 0
    %254 = vmatpush.bf16.msra.mxu0 0
    %255 = vmatpush.bf16.msra.mxu0 0
    %256 = vmatpush.bf16.msra.mxu0 %v144
    %257 = vmatmul.bf16.gmra.mxu0 %v151
    %v258 = vpop.f32.mrf.mxu0
    %v259 = vadd.f32 %v104, %v258
    %v260 = vpop.f32.mrf.mxu0
    %v261 = vadd.f32 %v104, %v260
    %262 = vmatmul.bf16.gmra.mxu0 %v154
    %v263 = vpop.f32.mrf.mxu0
    %v264 = vadd.f32 %v104, %v263
    %v265 = vpop.f32.mrf.mxu0
    %v266 = vadd.f32 %v104, %v265
    %267 = vmatmul.bf16.gmra.mxu0 %v157
    %v268 = vpop.f32.mrf.mxu0
    %v269 = vadd.f32 %v104, %v268
    %v270 = vpop.f32.mrf.mxu0
    %v271 = vadd.f32 %v104, %v270
    %272 = vmatmul.bf16.gmra.mxu0 %v160
    %v273 = vpop.f32.mrf.mxu0
    %v274 = vadd.f32 %v104, %v273
    %v275 = vpop.f32.mrf.mxu0
    %v276 = vadd.f32 %v104, %v275
    %277 = vdwg.mxu0
    %278 = vst [vmem:[#allocation5] sm:$0xff] %v172
    %279 = vst [vmem:[#allocation5 + $0x8] sm:$0xff] %v201
    %280 = vst [vmem:[#allocation5 + $0x10] sm:$0xff] %v230
    %281 = vst [vmem:[#allocation5 + $0x18] sm:$0xff] %v259
    %282 = vst [vmem:[#allocation5 + $0x20] sm:$0xff] %v174
    %283 = vst [vmem:[#allocation5 + $0x28] sm:$0xff] %v203
    %284 = vst [vmem:[#allocation5 + $0x30] sm:$0xff] %v232
    %285 = vst [vmem:[#allocation5 + $0x38] sm:$0xff] %v261
    %286 = vst [vmem:[#allocation5 + $0x40] sm:$0xff] %v177
    %287 = vst [vmem:[#allocation5 + $0x48] sm:$0xff] %v206
    %288 = vst [vmem:[#allocation5 + $0x50] sm:$0xff] %v235
    %289 = vst [vmem:[#allocation5 + $0x58] sm:$0xff] %v264
    %290 = vst [vmem:[#allocation5 + $0x60] sm:$0xff] %v179
    %291 = vst [vmem:[#allocation5 + $0x68] sm:$0xff] %v208
    %292 = vst [vmem:[#allocation5 + $0x70] sm:$0xff] %v237
    %293 = vst [vmem:[#allocation5 + $0x78] sm:$0xff] %v266
    %294 = vst [vmem:[#allocation5 + $0x80] sm:$0xff] %v182
    %295 = vst [vmem:[#allocation5 + $0x88] sm:$0xff] %v211
    %296 = vst [vmem:[#allocation5 + $0x90] sm:$0xff] %v240
    %297 = vst [vmem:[#allocation5 + $0x98] sm:$0xff] %v269
    %298 = vst [vmem:[#allocation5 + $0xa0] sm:$0xff] %v184
    %299 = vst [vmem:[#allocation5 + $0xa8] sm:$0xff] %v213
    %300 = vst [vmem:[#allocation5 + $0xb0] sm:$0xff] %v242
    %301 = vst [vmem:[#allocation5 + $0xb8] sm:$0xff] %v271
    %302 = vst [vmem:[#allocation5 + $0xc0] sm:$0xff] %v187
    %303 = vst [vmem:[#allocation5 + $0xc8] sm:$0xff] %v216
    %304 = vst [vmem:[#allocation5 + $0xd0] sm:$0xff] %v245
    %305 = vst [vmem:[#allocation5 + $0xd8] sm:$0xff] %v274
    %306 = vst [vmem:[#allocation5 + $0xe0] sm:$0xff] %v189
    %307 = vst [vmem:[#allocation5 + $0xe8] sm:$0xff] %v218
    %308 = vst [vmem:[#allocation5 + $0xf0] sm:$0xff] %v247
    %309 = vst [vmem:[#allocation5 + $0xf8] sm:$0xff] %v276
    %s310 = smul.u32 0, 4
    %s311 = smul.addr %s310, 8
    %s312 = scalar_lea.vmem [#allocation5], %s311
    %v313 = vld [vmem:[%s312] sm:$0xff]
    %v314 = vld [vmem:[%s312 + $0x8] sm:$0xff]
    %v315 = vld [vmem:[%s312 + $0x10] sm:$0xff]
    %v316 = vld [vmem:[%s312 + $0x18] sm:$0xff]
    %v317 = vpack.c.bf16 %v85, %v85
    %v318 = vld [vmem:[#allocation6] sm:$0xff]
    %v319 = vld [vmem:[#allocation6 + $0x8] sm:$0xff]
    %v320 = vld [vmem:[#allocation6 + $0x10] sm:$0xff]
    %v321 = vld [vmem:[#allocation6 + $0x18] sm:$0xff]
    %v322 = vld [vmem:[#allocation6 + $0x20] sm:$0xff]
    %v323 = vld [vmem:[#allocation6 + $0x28] sm:$0xff]
    %v324 = vld [vmem:[#allocation6 + $0x30] sm:$0xff]
    %v325 = vld [vmem:[#allocation6 + $0x38] sm:$0xff]
    %v326 = vld [vmem:[#allocation6 + $0x40] sm:$0xff]
    %v327 = vld [vmem:[#allocation6 + $0x48] sm:$0xff]
    %v328 = vld [vmem:[#allocation6 + $0x50] sm:$0xff]
    %v329 = vld [vmem:[#allocation6 + $0x58] sm:$0xff]
    %v330 = vld [vmem:[#allocation6 + $0x60] sm:$0xff]
    %v331 = vld [vmem:[#allocation6 + $0x68] sm:$0xff]
    %v332 = vld [vmem:[#allocation6 + $0x70] sm:$0xff]
    %v333 = vld [vmem:[#allocation6 + $0x78] sm:$0xff]
    %v334 = vld [vmem:[#allocation6 + $0x80] sm:$0xff]
    %v335 = vld [vmem:[#allocation6 + $0x88] sm:$0xff]
    %v336 = vld [vmem:[#allocation6 + $0x90] sm:$0xff]
    %v337 = vld [vmem:[#allocation6 + $0x98] sm:$0xff]
    %v338 = vld [vmem:[#allocation6 + $0xa0] sm:$0xff]
    %v339 = vld [vmem:[#allocation6 + $0xa8] sm:$0xff]
    %v340 = vld [vmem:[#allocation6 + $0xb0] sm:$0xff]
    %v341 = vld [vmem:[#allocation6 + $0xb8] sm:$0xff]
    %v342 = vld [vmem:[#allocation6 + $0xc0] sm:$0xff]
    %v343 = vld [vmem:[#allocation6 + $0xc8] sm:$0xff]
    %v344 = vld [vmem:[#allocation6 + $0xd0] sm:$0xff]
    %v345 = vld [vmem:[#allocation6 + $0xd8] sm:$0xff]
    %v346 = vld [vmem:[#allocation6 + $0xe0] sm:$0xff]
    %v347 = vld [vmem:[#allocation6 + $0xe8] sm:$0xff]
    %v348 = vld [vmem:[#allocation6 + $0xf0] sm:$0xff]
    %v349 = vld [vmem:[#allocation6 + $0xf8] sm:$0xff]
    %v382 = vunpack.c.l.b16 %v318
    %v383 = vunpack.c.h.b16 %v318
    %v384 = vunpack.c.l.b16 %v319
    %v385 = vunpack.c.h.b16 %v319
    %v386 = vunpack.c.l.b16 %v320
    %v387 = vunpack.c.h.b16 %v320
    %v388 = vunpack.c.l.b16 %v321
    %v389 = vunpack.c.h.b16 %v321
    %v390 = vunpack.c.l.b16 %v322
    %v391 = vunpack.c.h.b16 %v322
    %v392 = vunpack.c.l.b16 %v323
    %v393 = vunpack.c.h.b16 %v323
    %v394 = vunpack.c.l.b16 %v324
    %v395 = vunpack.c.h.b16 %v324
    %v396 = vunpack.c.l.b16 %v325
    %v397 = vunpack.c.h.b16 %v325
    %v398 = vunpack.c.l.b16 %v326
    %v399 = vunpack.c.h.b16 %v326
    %v400 = vunpack.c.l.b16 %v327
    %v401 = vunpack.c.h.b16 %v327
    %v402 = vunpack.c.l.b16 %v328
    %v403 = vunpack.c.h.b16 %v328
    %v404 = vunpack.c.l.b16 %v329
    %v405 = vunpack.c.h.b16 %v329
    %v406 = vunpack.c.l.b16 %v330
    %v407 = vunpack.c.h.b16 %v330
    %v408 = vunpack.c.l.b16 %v331
    %v409 = vunpack.c.h.b16 %v331
    %v410 = vunpack.c.l.b16 %v332
    %v411 = vunpack.c.h.b16 %v332
    %v412 = vunpack.c.l.b16 %v333
    %v413 = vunpack.c.h.b16 %v333
    %v414 = vunpack.c.l.b16 %v334
    %v415 = vunpack.c.h.b16 %v334
    %v416 = vunpack.c.l.b16 %v335
    %v417 = vunpack.c.h.b16 %v335
    %v418 = vunpack.c.l.b16 %v336
    %v419 = vunpack.c.h.b16 %v336
    %v420 = vunpack.c.l.b16 %v337
    %v421 = vunpack.c.h.b16 %v337
    %v422 = vunpack.c.l.b16 %v338
    %v423 = vunpack.c.h.b16 %v338
    %v424 = vunpack.c.l.b16 %v339
    %v425 = vunpack.c.h.b16 %v339
    %v426 = vunpack.c.l.b16 %v340
    %v427 = vunpack.c.h.b16 %v340
    %v428 = vunpack.c.l.b16 %v341
    %v429 = vunpack.c.h.b16 %v341
    %v430 = vunpack.c.l.b16 %v342
    %v431 = vunpack.c.h.b16 %v342
    %v432 = vunpack.c.l.b16 %v343
    %v433 = vunpack.c.h.b16 %v343
    %v434 = vunpack.c.l.b16 %v344
    %v435 = vunpack.c.h.b16 %v344
    %v436 = vunpack.c.l.b16 %v345
    %v437 = vunpack.c.h.b16 %v345
    %v438 = vunpack.c.l.b16 %v346
    %v439 = vunpack.c.h.b16 %v346
    %v440 = vunpack.c.l.b16 %v347
    %v441 = vunpack.c.h.b16 %v347
    %v442 = vunpack.c.l.b16 %v348
    %v443 = vunpack.c.h.b16 %v348
    %v444 = vunpack.c.l.b16 %v349
    %v445 = vunpack.c.h.b16 %v349
    %v446 = vpack.c.b16 %v386, %v382
    %v447 = vpack.c.b16 %v387, %v383
    %v448 = vpack.c.b16 %v388, %v384
    %v449 = vpack.c.b16 %v389, %v385
    %v450 = vpack.c.b16 %v394, %v390
    %v451 = vpack.c.b16 %v395, %v391
    %v452 = vpack.c.b16 %v396, %v392
    %v453 = vpack.c.b16 %v397, %v393
    %v454 = vpack.c.b16 %v402, %v398
    %v455 = vpack.c.b16 %v403, %v399
    %v456 = vpack.c.b16 %v404, %v400
    %v457 = vpack.c.b16 %v405, %v401
    %v458 = vpack.c.b16 %v410, %v406
    %v459 = vpack.c.b16 %v411, %v407
    %v460 = vpack.c.b16 %v412, %v408
    %v461 = vpack.c.b16 %v413, %v409
    %v462 = vpack.c.b16 %v418, %v414
    %v463 = vpack.c.b16 %v419, %v415
    %v464 = vpack.c.b16 %v420, %v416
    %v465 = vpack.c.b16 %v421, %v417
    %v466 = vpack.c.b16 %v426, %v422
    %v467 = vpack.c.b16 %v427, %v423
    %v468 = vpack.c.b16 %v428, %v424
    %v469 = vpack.c.b16 %v429, %v425
    %v470 = vpack.c.b16 %v434, %v430
    %v471 = vpack.c.b16 %v435, %v431
    %v472 = vpack.c.b16 %v436, %v432
    %v473 = vpack.c.b16 %v437, %v433
    %v474 = vpack.c.b16 %v442, %v438
    %v475 = vpack.c.b16 %v443, %v439
    %v476 = vpack.c.b16 %v444, %v440
    %v477 = vpack.c.b16 %v445, %v441
    %510 = vmatpush.bf16.msra.mxu0 %v474
    %511 = vmatpush.bf16.msra.mxu0 %v470
    %512 = vmatpush.bf16.msra.mxu0 %v466
    %513 = vmatpush.bf16.msra.mxu0 %v462
    %514 = vmatpush.bf16.msra.mxu0 %v458
    %515 = vmatpush.bf16.msra.mxu0 %v454
    %516 = vmatpush.bf16.msra.mxu0 %v450
    %517 = vmatpush.bf16.msra.mxu0 %v446
    %518 = vmatmul.bf16.gmra.mxu0 %v317
    %v519 = vpop.f32.mrf.mxu0
    %v520 = vadd.f32 0.0, %v519
    %v521 = vpop.f32.mrf.mxu0
    %522 = vdwg.mxu0
    %523 = vmatpush.bf16.msra.mxu0 %v475
    %524 = vmatpush.bf16.msra.mxu0 %v471
    %525 = vmatpush.bf16.msra.mxu0 %v467
    %526 = vmatpush.bf16.msra.mxu0 %v463
    %527 = vmatpush.bf16.msra.mxu0 %v459
    %528 = vmatpush.bf16.msra.mxu0 %v455
    %529 = vmatpush.bf16.msra.mxu0 %v451
    %530 = vmatpush.bf16.msra.mxu0 %v447
    %531 = vmatmul.bf16.gmra.mxu0 %v317
    %v532 = vpop.f32.mrf.mxu0
    %v533 = vadd.f32 0.0, %v532
    %v534 = vpop.f32.mrf.mxu0
    %535 = vdwg.mxu0
    %536 = vmatpush.bf16.msra.mxu0 %v476
    %537 = vmatpush.bf16.msra.mxu0 %v472
    %538 = vmatpush.bf16.msra.mxu0 %v468
    %539 = vmatpush.bf16.msra.mxu0 %v464
    %540 = vmatpush.bf16.msra.mxu0 %v460
    %541 = vmatpush.bf16.msra.mxu0 %v456
    %542 = vmatpush.bf16.msra.mxu0 %v452
    %543 = vmatpush.bf16.msra.mxu0 %v448
    %544 = vmatmul.bf16.gmra.mxu0 %v317
    %v545 = vpop.f32.mrf.mxu0
    %v546 = vadd.f32 0.0, %v545
    %v547 = vpop.f32.mrf.mxu0
    %548 = vdwg.mxu0
    %549 = vmatpush.bf16.msra.mxu0 %v477
    %550 = vmatpush.bf16.msra.mxu0 %v473
    %551 = vmatpush.bf16.msra.mxu0 %v469
    %552 = vmatpush.bf16.msra.mxu0 %v465
    %553 = vmatpush.bf16.msra.mxu0 %v461
    %554 = vmatpush.bf16.msra.mxu0 %v457
    %555 = vmatpush.bf16.msra.mxu0 %v453
    %556 = vmatpush.bf16.msra.mxu0 %v449
    %557 = vmatmul.bf16.gmra.mxu0 %v317
    %v558 = vpop.f32.mrf.mxu0
    %v559 = vadd.f32 0.0, %v558
    %v560 = vpop.f32.mrf.mxu0
    %561 = vdwg.mxu0
    %v562 = vadd.f32 %v313, %v520
    %v563 = vadd.f32 %v314, %v533
    %v564 = vadd.f32 %v315, %v546
    %v565 = vadd.f32 %v316, %v559
    %v566 = vxor.u32 %v562, 2147483648
    %v567 = vxor.u32 %v563, 2147483648
    %v568 = vxor.u32 %v564, 2147483648
    %v569 = vmul.f32 %v566, 1.442695
    %v570 = vpow.pop %v569
    %v571 = vmul.f32 %v567, 1.442695
    %v572 = vpow.pop %v571
    %v573 = vmul.f32 %v568, 1.442695
    %v574 = vpow.pop %v573
    %v575 = vadd.f32 %v570, 1.0
    %v576 = vadd.f32 %v572, 1.0
    %v577 = vadd.f32 %v574, 1.0
    %v578 = vrcp.pop %v575
    %v579 = vmul.f32 %v575, %v578
    %v580 = vsub.f32 1.0, %v579
    %v581 = vmul.f32 %v578, %v580
    %v582 = vadd.f32 %v578, %v581
    %vm583 = vweird.f32 %v575
    %vm584 = vweird.f32 %v578
    %vm585 = vmor %vm583, %vm584
    %v586 = vsel %vm585, %v578, %v582
    %v587 = vand.u32 2147483647, %v575
    %vm588 = vcmp.eq.f32.partialorder %v587, 8.507059e+37
    %v589 = vand.u32 %v575, 2147483648
    %v590 = vor.u32 1.1754944e-38, %v589
    %v591 = vsel %vm588, %v590, %v586
    %v592 = vmul.f32 1.0, %v591
    %v593 = vrcp.pop %v576
    %v594 = vmul.f32 %v576, %v593
    %v595 = vsub.f32 1.0, %v594
    %v596 = vmul.f32 %v593, %v595
    %v597 = vadd.f32 %v593, %v596
    %vm598 = vweird.f32 %v576
    %vm599 = vweird.f32 %v593
    %vm600 = vmor %vm598, %vm599
    %v601 = vsel %vm600, %v593, %v597
    %v602 = vand.u32 2147483647, %v576
    %vm603 = vcmp.eq.f32.partialorder %v602, 8.507059e+37
    %v604 = vand.u32 %v576, 2147483648
    %v605 = vor.u32 1.1754944e-38, %v604
    %v606 = vsel %vm603, %v605, %v601
    %v607 = vmul.f32 1.0, %v606
    %v608 = vrcp.pop %v577
    %v609 = vmul.f32 %v577, %v608
    %v610 = vsub.f32 1.0, %v609
    %v611 = vmul.f32 %v608, %v610
    %v612 = vadd.f32 %v608, %v611
    %vm613 = vweird.f32 %v577
    %vm614 = vweird.f32 %v608
    %vm615 = vmor %vm613, %vm614
    %v616 = vsel %vm615, %v608, %v612
    %v617 = vand.u32 2147483647, %v577
    %vm618 = vcmp.eq.f32.partialorder %v617, 8.507059e+37
    %v619 = vand.u32 %v577, 2147483648
    %v620 = vor.u32 1.1754944e-38, %v619
    %v621 = vsel %vm618, %v620, %v616
    %v622 = vmul.f32 1.0, %v621
    %v623 = vtanh.pop %v565
    %v624 = vmul.f32 %v607, %v86
    %v625 = vmul.f32 %v592, %v623
    %v626 = vadd.f32 %v624, %v625
    %v627 = vtanh.pop %v626
    %v628 = vmul.f32 %v622, %v627
    %629 = vst [vmem:[#allocation4] sm:$0xff] %v628
    %s630 = smul.u32 1, 4
    %s631 = smul.addr %s630, 8
    %s632 = scalar_lea.vmem [#allocation5], %s631
    %v633 = vld [vmem:[%s632] sm:$0xff]
    %v634 = vld [vmem:[%s632 + $0x8] sm:$0xff]
    %v635 = vld [vmem:[%s632 + $0x10] sm:$0xff]
    %v636 = vld [vmem:[%s632 + $0x18] sm:$0xff]
    %v637 = vpack.c.bf16 %v628, %v628
    %v638 = vld [vmem:[#allocation6] sm:$0xff]
    %v639 = vld [vmem:[#allocation6 + $0x8] sm:$0xff]
    %v640 = vld [vmem:[#allocation6 + $0x10] sm:$0xff]
    %v641 = vld [vmem:[#allocation6 + $0x18] sm:$0xff]
    %v642 = vld [vmem:[#allocation6 + $0x20] sm:$0xff]
    %v643 = vld [vmem:[#allocation6 + $0x28] sm:$0xff]
    %v644 = vld [vmem:[#allocation6 + $0x30] sm:$0xff]
    %v645 = vld [vmem:[#allocation6 + $0x38] sm:$0xff]
    %v646 = vld [vmem:[#allocation6 + $0x40] sm:$0xff]
    %v647 = vld [vmem:[#allocation6 + $0x48] sm:$0xff]
    %v648 = vld [vmem:[#allocation6 + $0x50] sm:$0xff]
    %v649 = vld [vmem:[#allocation6 + $0x58] sm:$0xff]
    %v650 = vld [vmem:[#allocation6 + $0x60] sm:$0xff]
    %v651 = vld [vmem:[#allocation6 + $0x68] sm:$0xff]
    %v652 = vld [vmem:[#allocation6 + $0x70] sm:$0xff]
    %v653 = vld [vmem:[#allocation6 + $0x78] sm:$0xff]
    %v654 = vld [vmem:[#allocation6 + $0x80] sm:$0xff]
    %v655 = vld [vmem:[#allocation6 + $0x88] sm:$0xff]
    %v656 = vld [vmem:[#allocation6 + $0x90] sm:$0xff]
    %v657 = vld [vmem:[#allocation6 + $0x98] sm:$0xff]
    %v658 = vld [vmem:[#allocation6 + $0xa0] sm:$0xff]
    %v659 = vld [vmem:[#allocation6 + $0xa8] sm:$0xff]
    %v660 = vld [vmem:[#allocation6 + $0xb0] sm:$0xff]
    %v661 = vld [vmem:[#allocation6 + $0xb8] sm:$0xff]
    %v662 = vld [vmem:[#allocation6 + $0xc0] sm:$0xff]
    %v663 = vld [vmem:[#allocation6 + $0xc8] sm:$0xff]
    %v664 = vld [vmem:[#allocation6 + $0xd0] sm:$0xff]
    %v665 = vld [vmem:[#allocation6 + $0xd8] sm:$0xff]
    %v666 = vld [vmem:[#allocation6 + $0xe0] sm:$0xff]
    %v667 = vld [vmem:[#allocation6 + $0xe8] sm:$0xff]
    %v668 = vld [vmem:[#allocation6 + $0xf0] sm:$0xff]
    %v669 = vld [vmem:[#allocation6 + $0xf8] sm:$0xff]
    %v702 = vunpack.c.l.b16 %v638
    %v703 = vunpack.c.h.b16 %v638
    %v704 = vunpack.c.l.b16 %v639
    %v705 = vunpack.c.h.b16 %v639
    %v706 = vunpack.c.l.b16 %v640
    %v707 = vunpack.c.h.b16 %v640
    %v708 = vunpack.c.l.b16 %v641
    %v709 = vunpack.c.h.b16 %v641
    %v710 = vunpack.c.l.b16 %v642
    %v711 = vunpack.c.h.b16 %v642
    %v712 = vunpack.c.l.b16 %v643
    %v713 = vunpack.c.h.b16 %v643
    %v714 = vunpack.c.l.b16 %v644
    %v715 = vunpack.c.h.b16 %v644
    %v716 = vunpack.c.l.b16 %v645
    %v717 = vunpack.c.h.b16 %v645
    %v718 = vunpack.c.l.b16 %v646
    %v719 = vunpack.c.h.b16 %v646
    %v720 = vunpack.c.l.b16 %v647
    %v721 = vunpack.c.h.b16 %v647
    %v722 = vunpack.c.l.b16 %v648
    %v723 = vunpack.c.h.b16 %v648
    %v724 = vunpack.c.l.b16 %v649
    %v725 = vunpack.c.h.b16 %v649
    %v726 = vunpack.c.l.b16 %v650
    %v727 = vunpack.c.h.b16 %v650
    %v728 = vunpack.c.l.b16 %v651
    %v729 = vunpack.c.h.b16 %v651
    %v730 = vunpack.c.l.b16 %v652
    %v731 = vunpack.c.h.b16 %v652
    %v732 = vunpack.c.l.b16 %v653
    %v733 = vunpack.c.h.b16 %v653
    %v734 = vunpack.c.l.b16 %v654
    %v735 = vunpack.c.h.b16 %v654
    %v736 = vunpack.c.l.b16 %v655
    %v737 = vunpack.c.h.b16 %v655
    %v738 = vunpack.c.l.b16 %v656
    %v739 = vunpack.c.h.b16 %v656
    %v740 = vunpack.c.l.b16 %v657
    %v741 = vunpack.c.h.b16 %v657
    %v742 = vunpack.c.l.b16 %v658
    %v743 = vunpack.c.h.b16 %v658
    %v744 = vunpack.c.l.b16 %v659
    %v745 = vunpack.c.h.b16 %v659
    %v746 = vunpack.c.l.b16 %v660
    %v747 = vunpack.c.h.b16 %v660
    %v748 = vunpack.c.l.b16 %v661
    %v749 = vunpack.c.h.b16 %v661
    %v750 = vunpack.c.l.b16 %v662
    %v751 = vunpack.c.h.b16 %v662
    %v752 = vunpack.c.l.b16 %v663
    %v753 = vunpack.c.h.b16 %v663
    %v754 = vunpack.c.l.b16 %v664
    %v755 = vunpack.c.h.b16 %v664
    %v756 = vunpack.c.l.b16 %v665
    %v757 = vunpack.c.h.b16 %v665
    %v758 = vunpack.c.l.b16 %v666
    %v759 = vunpack.c.h.b16 %v666
    %v760 = vunpack.c.l.b16 %v667
    %v761 = vunpack.c.h.b16 %v667
    %v762 = vunpack.c.l.b16 %v668
    %v763 = vunpack.c.h.b16 %v668
    %v764 = vunpack.c.l.b16 %v669
    %v765 = vunpack.c.h.b16 %v669
    %v766 = vpack.c.b16 %v706, %v702
    %v767 = vpack.c.b16 %v707, %v703
    %v768 = vpack.c.b16 %v708, %v704
    %v769 = vpack.c.b16 %v709, %v705
    %v770 = vpack.c.b16 %v714, %v710
    %v771 = vpack.c.b16 %v715, %v711
    %v772 = vpack.c.b16 %v716, %v712
    %v773 = vpack.c.b16 %v717, %v713
    %v774 = vpack.c.b16 %v722, %v718
    %v775 = vpack.c.b16 %v723, %v719
    %v776 = vpack.c.b16 %v724, %v720
    %v777 = vpack.c.b16 %v725, %v721
    %v778 = vpack.c.b16 %v730, %v726
    %v779 = vpack.c.b16 %v731, %v727
    %v780 = vpack.c.b16 %v732, %v728
    %v781 = vpack.c.b16 %v733, %v729
    %v782 = vpack.c.b16 %v738, %v734
    %v783 = vpack.c.b16 %v739, %v735
    %v784 = vpack.c.b16 %v740, %v736
    %v785 = vpack.c.b16 %v741, %v737
    %v786 = vpack.c.b16 %v746, %v742
    %v787 = vpack.c.b16 %v747, %v743
    %v788 = vpack.c.b16 %v748, %v744
    %v789 = vpack.c.b16 %v749, %v745
    %v790 = vpack.c.b16 %v754, %v750
    %v791 = vpack.c.b16 %v755, %v751
    %v792 = vpack.c.b16 %v756, %v752
    %v793 = vpack.c.b16 %v757, %v753
    %v794 = vpack.c.b16 %v762, %v758
    %v795 = vpack.c.b16 %v763, %v759
    %v796 = vpack.c.b16 %v764, %v760
    %v797 = vpack.c.b16 %v765, %v761
    %830 = vmatpush.bf16.msra.mxu0 %v794
    %831 = vmatpush.bf16.msra.mxu0 %v790
    %832 = vmatpush.bf16.msra.mxu0 %v786
    %833 = vmatpush.bf16.msra.mxu0 %v782
    %834 = vmatpush.bf16.msra.mxu0 %v778
    %835 = vmatpush.bf16.msra.mxu0 %v774
    %836 = vmatpush.bf16.msra.mxu0 %v770
    %837 = vmatpush.bf16.msra.mxu0 %v766
    %838 = vmatmul.bf16.gmra.mxu0 %v637
    %v839 = vpop.f32.mrf.mxu0
    %v840 = vadd.f32 0.0, %v839
    %v841 = vpop.f32.mrf.mxu0
    %842 = vdwg.mxu0
    %843 = vmatpush.bf16.msra.mxu0 %v795
    %844 = vmatpush.bf16.msra.mxu0 %v791
    %845 = vmatpush.bf16.msra.mxu0 %v787
    %846 = vmatpush.bf16.msra.mxu0 %v783
    %847 = vmatpush.bf16.msra.mxu0 %v779
    %848 = vmatpush.bf16.msra.mxu0 %v775
    %849 = vmatpush.bf16.msra.mxu0 %v771
    %850 = vmatpush.bf16.msra.mxu0 %v767
    %851 = vmatmul.bf16.gmra.mxu0 %v637
    %v852 = vpop.f32.mrf.mxu0
    %v853 = vadd.f32 0.0, %v852
    %v854 = vpop.f32.mrf.mxu0
    %855 = vdwg.mxu0
    %856 = vmatpush.bf16.msra.mxu0 %v796
    %857 = vmatpush.bf16.msra.mxu0 %v792
    %858 = vmatpush.bf16.msra.mxu0 %v788
    %859 = vmatpush.bf16.msra.mxu0 %v784
    %860 = vmatpush.bf16.msra.mxu0 %v780
    %861 = vmatpush.bf16.msra.mxu0 %v776
    %862 = vmatpush.bf16.msra.mxu0 %v772
    %863 = vmatpush.bf16.msra.mxu0 %v768
    %864 = vmatmul.bf16.gmra.mxu0 %v637
    %v865 = vpop.f32.mrf.mxu0
    %v866 = vadd.f32 0.0, %v865
    %v867 = vpop.f32.mrf.mxu0
    %868 = vdwg.mxu0
    %869 = vmatpush.bf16.msra.mxu0 %v797
    %870 = vmatpush.bf16.msra.mxu0 %v793
    %871 = vmatpush.bf16.msra.mxu0 %v789
    %872 = vmatpush.bf16.msra.mxu0 %v785
    %873 = vmatpush.bf16.msra.mxu0 %v781
    %874 = vmatpush.bf16.msra.mxu0 %v777
    %875 = vmatpush.bf16.msra.mxu0 %v773
    %876 = vmatpush.bf16.msra.mxu0 %v769
    %877 = vmatmul.bf16.gmra.mxu0 %v637
    %v878 = vpop.f32.mrf.mxu0
    %v879 = vadd.f32 0.0, %v878
    %v880 = vpop.f32.mrf.mxu0
    %881 = vdwg.mxu0
    %v882 = vadd.f32 %v633, %v840
    %v883 = vadd.f32 %v634, %v853
    %v884 = vadd.f32 %v635, %v866
    %v885 = vadd.f32 %v636, %v879
    %v886 = vxor.u32 %v882, 2147483648
    %v887 = vxor.u32 %v883, 2147483648
    %v888 = vxor.u32 %v884, 2147483648
    %v889 = vmul.f32 %v886, 1.442695
    %v890 = vpow.pop %v889
    %v891 = vmul.f32 %v887, 1.442695
    %v892 = vpow.pop %v891
    %v893 = vmul.f32 %v888, 1.442695
    %v894 = vpow.pop %v893
    %v895 = vadd.f32 %v890, 1.0
    %v896 = vadd.f32 %v892, 1.0
    %v897 = vadd.f32 %v894, 1.0
    %v898 = vrcp.pop %v895
    %v899 = vmul.f32 %v895, %v898
    %v900 = vsub.f32 1.0, %v899
    %v901 = vmul.f32 %v898, %v900
    %v902 = vadd.f32 %v898, %v901
    %vm903 = vweird.f32 %v895
    %vm904 = vweird.f32 %v898
    %vm905 = vmor %vm903, %vm904
    %v906 = vsel %vm905, %v898, %v902
    %v907 = vand.u32 2147483647, %v895
    %vm908 = vcmp.eq.f32.partialorder %v907, 8.507059e+37
    %v909 = vand.u32 %v895, 2147483648
    %v910 = vor.u32 1.1754944e-38, %v909
    %v911 = vsel %vm908, %v910, %v906
    %v912 = vmul.f32 1.0, %v911
    %v913 = vrcp.pop %v896
    %v914 = vmul.f32 %v896, %v913
    %v915 = vsub.f32 1.0, %v914
    %v916 = vmul.f32 %v913, %v915
    %v917 = vadd.f32 %v913, %v916
    %vm918 = vweird.f32 %v896
    %vm919 = vweird.f32 %v913
    %vm920 = vmor %vm918, %vm919
    %v921 = vsel %vm920, %v913, %v917
    %v922 = vand.u32 2147483647, %v896
    %vm923 = vcmp.eq.f32.partialorder %v922, 8.507059e+37
    %v924 = vand.u32 %v896, 2147483648
    %v925 = vor.u32 1.1754944e-38, %v924
    %v926 = vsel %vm923, %v925, %v921
    %v927 = vmul.f32 1.0, %v926
    %v928 = vrcp.pop %v897
    %v929 = vmul.f32 %v897, %v928
    %v930 = vsub.f32 1.0, %v929
    %v931 = vmul.f32 %v928, %v930
    %v932 = vadd.f32 %v928, %v931
    %vm933 = vweird.f32 %v897
    %vm934 = vweird.f32 %v928
    %vm935 = vmor %vm933, %vm934
    %v936 = vsel %vm935, %v928, %v932
    %v937 = vand.u32 2147483647, %v897
    %vm938 = vcmp.eq.f32.partialorder %v937, 8.507059e+37
    %v939 = vand.u32 %v897, 2147483648
    %v940 = vor.u32 1.1754944e-38, %v939
    %v941 = vsel %vm938, %v940, %v936
    %v942 = vmul.f32 1.0, %v941
    %v943 = vtanh.pop %v885
    %v944 = vmul.f32 %v927, %v626
    %v945 = vmul.f32 %v912, %v943
    %v946 = vadd.f32 %v944, %v945
    %v947 = vtanh.pop %v946
    %v948 = vmul.f32 %v942, %v947
    %s949 = scalar_lea.vmem [#allocation4], 8
    %950 = vst [vmem:[%s949] sm:$0xff] %v948
    %s951 = smul.u32 2, 4
    %s952 = smul.addr %s951, 8
    %s953 = scalar_lea.vmem [#allocation5], %s952
    %v954 = vld [vmem:[%s953] sm:$0xff]
    %v955 = vld [vmem:[%s953 + $0x8] sm:$0xff]
    %v956 = vld [vmem:[%s953 + $0x10] sm:$0xff]
    %v957 = vld [vmem:[%s953 + $0x18] sm:$0xff]
    %v958 = vpack.c.bf16 %v948, %v948
    %v959 = vld [vmem:[#allocation6] sm:$0xff]
    %v960 = vld [vmem:[#allocation6 + $0x8] sm:$0xff]
    %v961 = vld [vmem:[#allocation6 + $0x10] sm:$0xff]
    %v962 = vld [vmem:[#allocation6 + $0x18] sm:$0xff]
    %v963 = vld [vmem:[#allocation6 + $0x20] sm:$0xff]
    %v964 = vld [vmem:[#allocation6 + $0x28] sm:$0xff]
    %v965 = vld [vmem:[#allocation6 + $0x30] sm:$0xff]
    %v966 = vld [vmem:[#allocation6 + $0x38] sm:$0xff]
    %v967 = vld [vmem:[#allocation6 + $0x40] sm:$0xff]
    %v968 = vld [vmem:[#allocation6 + $0x48] sm:$0xff]
    %v969 = vld [vmem:[#allocation6 + $0x50] sm:$0xff]
    %v970 = vld [vmem:[#allocation6 + $0x58] sm:$0xff]
    %v971 = vld [vmem:[#allocation6 + $0x60] sm:$0xff]
    %v972 = vld [vmem:[#allocation6 + $0x68] sm:$0xff]
    %v973 = vld [vmem:[#allocation6 + $0x70] sm:$0xff]
    %v974 = vld [vmem:[#allocation6 + $0x78] sm:$0xff]
    %v975 = vld [vmem:[#allocation6 + $0x80] sm:$0xff]
    %v976 = vld [vmem:[#allocation6 + $0x88] sm:$0xff]
    %v977 = vld [vmem:[#allocation6 + $0x90] sm:$0xff]
    %v978 = vld [vmem:[#allocation6 + $0x98] sm:$0xff]
    %v979 = vld [vmem:[#allocation6 + $0xa0] sm:$0xff]
    %v980 = vld [vmem:[#allocation6 + $0xa8] sm:$0xff]
    %v981 = vld [vmem:[#allocation6 + $0xb0] sm:$0xff]
    %v982 = vld [vmem:[#allocation6 + $0xb8] sm:$0xff]
    %v983 = vld [vmem:[#allocation6 + $0xc0] sm:$0xff]
    %v984 = vld [vmem:[#allocation6 + $0xc8] sm:$0xff]
    %v985 = vld [vmem:[#allocation6 + $0xd0] sm:$0xff]
    %v986 = vld [vmem:[#allocation6 + $0xd8] sm:$0xff]
    %v987 = vld [vmem:[#allocation6 + $0xe0] sm:$0xff]
    %v988 = vld [vmem:[#allocation6 + $0xe8] sm:$0xff]
    %v989 = vld [vmem:[#allocation6 + $0xf0] sm:$0xff]
    %v990 = vld [vmem:[#allocation6 + $0xf8] sm:$0xff]
    %v1023 = vunpack.c.l.b16 %v959
    %v1024 = vunpack.c.h.b16 %v959
    %v1025 = vunpack.c.l.b16 %v960
    %v1026 = vunpack.c.h.b16 %v960
    %v1027 = vunpack.c.l.b16 %v961
    %v1028 = vunpack.c.h.b16 %v961
    %v1029 = vunpack.c.l.b16 %v962
    %v1030 = vunpack.c.h.b16 %v962
    %v1031 = vunpack.c.l.b16 %v963
    %v1032 = vunpack.c.h.b16 %v963
    %v1033 = vunpack.c.l.b16 %v964
    %v1034 = vunpack.c.h.b16 %v964
    %v1035 = vunpack.c.l.b16 %v965
    %v1036 = vunpack.c.h.b16 %v965
    %v1037 = vunpack.c.l.b16 %v966
    %v1038 = vunpack.c.h.b16 %v966
    %v1039 = vunpack.c.l.b16 %v967
    %v1040 = vunpack.c.h.b16 %v967
    %v1041 = vunpack.c.l.b16 %v968
    %v1042 = vunpack.c.h.b16 %v968
    %v1043 = vunpack.c.l.b16 %v969
    %v1044 = vunpack.c.h.b16 %v969
    %v1045 = vunpack.c.l.b16 %v970
    %v1046 = vunpack.c.h.b16 %v970
    %v1047 = vunpack.c.l.b16 %v971
    %v1048 = vunpack.c.h.b16 %v971
    %v1049 = vunpack.c.l.b16 %v972
    %v1050 = vunpack.c.h.b16 %v972
    %v1051 = vunpack.c.l.b16 %v973
    %v1052 = vunpack.c.h.b16 %v973
    %v1053 = vunpack.c.l.b16 %v974
    %v1054 = vunpack.c.h.b16 %v974
    %v1055 = vunpack.c.l.b16 %v975
    %v1056 = vunpack.c.h.b16 %v975
    %v1057 = vunpack.c.l.b16 %v976
    %v1058 = vunpack.c.h.b16 %v976
    %v1059 = vunpack.c.l.b16 %v977
    %v1060 = vunpack.c.h.b16 %v977
    %v1061 = vunpack.c.l.b16 %v978
    %v1062 = vunpack.c.h.b16 %v978
    %v1063 = vunpack.c.l.b16 %v979
    %v1064 = vunpack.c.h.b16 %v979
    %v1065 = vunpack.c.l.b16 %v980
    %v1066 = vunpack.c.h.b16 %v980
    %v1067 = vunpack.c.l.b16 %v981
    %v1068 = vunpack.c.h.b16 %v981
    %v1069 = vunpack.c.l.b16 %v982
    %v1070 = vunpack.c.h.b16 %v982
    %v1071 = vunpack.c.l.b16 %v983
    %v1072 = vunpack.c.h.b16 %v983
    %v1073 = vunpack.c.l.b16 %v984
    %v1074 = vunpack.c.h.b16 %v984
    %v1075 = vunpack.c.l.b16 %v985
    %v1076 = vunpack.c.h.b16 %v985
    %v1077 = vunpack.c.l.b16 %v986
    %v1078 = vunpack.c.h.b16 %v986
    %v1079 = vunpack.c.l.b16 %v987
    %v1080 = vunpack.c.h.b16 %v987
    %v1081 = vunpack.c.l.b16 %v988
    %v1082 = vunpack.c.h.b16 %v988
    %v1083 = vunpack.c.l.b16 %v989
    %v1084 = vunpack.c.h.b16 %v989
    %v1085 = vunpack.c.l.b16 %v990
    %v1086 = vunpack.c.h.b16 %v990
    %v1087 = vpack.c.b16 %v1027, %v1023
    %v1088 = vpack.c.b16 %v1028, %v1024
    %v1089 = vpack.c.b16 %v1029, %v1025
    %v1090 = vpack.c.b16 %v1030, %v1026
    %v1091 = vpack.c.b16 %v1035, %v1031
    %v1092 = vpack.c.b16 %v1036, %v1032
    %v1093 = vpack.c.b16 %v1037, %v1033
    %v1094 = vpack.c.b16 %v1038, %v1034
    %v1095 = vpack.c.b16 %v1043, %v1039
    %v1096 = vpack.c.b16 %v1044, %v1040
    %v1097 = vpack.c.b16 %v1045, %v1041
    %v1098 = vpack.c.b16 %v1046, %v1042
    %v1099 = vpack.c.b16 %v1051, %v1047
    %v1100 = vpack.c.b16 %v1052, %v1048
    %v1101 = vpack.c.b16 %v1053, %v1049
    %v1102 = vpack.c.b16 %v1054, %v1050
    %v1103 = vpack.c.b16 %v1059, %v1055
    %v1104 = vpack.c.b16 %v1060, %v1056
    %v1105 = vpack.c.b16 %v1061, %v1057
    %v1106 = vpack.c.b16 %v1062, %v1058
    %v1107 = vpack.c.b16 %v1067, %v1063
    %v1108 = vpack.c.b16 %v1068, %v1064
    %v1109 = vpack.c.b16 %v1069, %v1065
    %v1110 = vpack.c.b16 %v1070, %v1066
    %v1111 = vpack.c.b16 %v1075, %v1071
    %v1112 = vpack.c.b16 %v1076, %v1072
    %v1113 = vpack.c.b16 %v1077, %v1073
    %v1114 = vpack.c.b16 %v1078, %v1074
    %v1115 = vpack.c.b16 %v1083, %v1079
    %v1116 = vpack.c.b16 %v1084, %v1080
    %v1117 = vpack.c.b16 %v1085, %v1081
    %v1118 = vpack.c.b16 %v1086, %v1082
    %1151 = vmatpush.bf16.msra.mxu0 %v1115
    %1152 = vmatpush.bf16.msra.mxu0 %v1111
    %1153 = vmatpush.bf16.msra.mxu0 %v1107
    %1154 = vmatpush.bf16.msra.mxu0 %v1103
    %1155 = vmatpush.bf16.msra.mxu0 %v1099
    %1156 = vmatpush.bf16.msra.mxu0 %v1095
    %1157 = vmatpush.bf16.msra.mxu0 %v1091
    %1158 = vmatpush.bf16.msra.mxu0 %v1087
    %1159 = vmatmul.bf16.gmra.mxu0 %v958
    %v1160 = vpop.f32.mrf.mxu0
    %v1161 = vadd.f32 0.0, %v1160
    %v1162 = vpop.f32.mrf.mxu0
    %1163 = vdwg.mxu0
    %1164 = vmatpush.bf16.msra.mxu0 %v1116
    %1165 = vmatpush.bf16.msra.mxu0 %v1112
    %1166 = vmatpush.bf16.msra.mxu0 %v1108
    %1167 = vmatpush.bf16.msra.mxu0 %v1104
    %1168 = vmatpush.bf16.msra.mxu0 %v1100
    %1169 = vmatpush.bf16.msra.mxu0 %v1096
    %1170 = vmatpush.bf16.msra.mxu0 %v1092
    %1171 = vmatpush.bf16.msra.mxu0 %v1088
    %1172 = vmatmul.bf16.gmra.mxu0 %v958
    %v1173 = vpop.f32.mrf.mxu0
    %v1174 = vadd.f32 0.0, %v1173
    %v1175 = vpop.f32.mrf.mxu0
    %1176 = vdwg.mxu0
    %1177 = vmatpush.bf16.msra.mxu0 %v1117
    %1178 = vmatpush.bf16.msra.mxu0 %v1113
    %1179 = vmatpush.bf16.msra.mxu0 %v1109
    %1180 = vmatpush.bf16.msra.mxu0 %v1105
    %1181 = vmatpush.bf16.msra.mxu0 %v1101
    %1182 = vmatpush.bf16.msra.mxu0 %v1097
    %1183 = vmatpush.bf16.msra.mxu0 %v1093
    %1184 = vmatpush.bf16.msra.mxu0 %v1089
    %1185 = vmatmul.bf16.gmra.mxu0 %v958
    %v1186 = vpop.f32.mrf.mxu0
    %v1187 = vadd.f32 0.0, %v1186
    %v1188 = vpop.f32.mrf.mxu0
    %1189 = vdwg.mxu0
    %1190 = vmatpush.bf16.msra.mxu0 %v1118
    %1191 = vmatpush.bf16.msra.mxu0 %v1114
    %1192 = vmatpush.bf16.msra.mxu0 %v1110
    %1193 = vmatpush.bf16.msra.mxu0 %v1106
    %1194 = vmatpush.bf16.msra.mxu0 %v1102
    %1195 = vmatpush.bf16.msra.mxu0 %v1098
    %1196 = vmatpush.bf16.msra.mxu0 %v1094
    %1197 = vmatpush.bf16.msra.mxu0 %v1090
    %1198 = vmatmul.bf16.gmra.mxu0 %v958
    %v1199 = vpop.f32.mrf.mxu0
    %v1200 = vadd.f32 0.0, %v1199
    %v1201 = vpop.f32.mrf.mxu0
    %1202 = vdwg.mxu0
    %v1203 = vadd.f32 %v954, %v1161
    %v1204 = vadd.f32 %v955, %v1174
    %v1205 = vadd.f32 %v956, %v1187
    %v1206 = vadd.f32 %v957, %v1200
    %v1207 = vxor.u32 %v1203, 2147483648
    %v1208 = vxor.u32 %v1204, 2147483648
    %v1209 = vxor.u32 %v1205, 2147483648
    %v1210 = vmul.f32 %v1207, 1.442695
    %v1211 = vpow.pop %v1210
    %v1212 = vmul.f32 %v1208, 1.442695
    %v1213 = vpow.pop %v1212
    %v1214 = vmul.f32 %v1209, 1.442695
    %v1215 = vpow.pop %v1214
    %v1216 = vadd.f32 %v1211, 1.0
    %v1217 = vadd.f32 %v1213, 1.0
    %v1218 = vadd.f32 %v1215, 1.0
    %v1219 = vrcp.pop %v1216
    %v1220 = vmul.f32 %v1216, %v1219
    %v1221 = vsub.f32 1.0, %v1220
    %v1222 = vmul.f32 %v1219, %v1221
    %v1223 = vadd.f32 %v1219, %v1222
    %vm1224 = vweird.f32 %v1216
    %vm1225 = vweird.f32 %v1219
    %vm1226 = vmor %vm1224, %vm1225
    %v1227 = vsel %vm1226, %v1219, %v1223
    %v1228 = vand.u32 2147483647, %v1216
    %vm1229 = vcmp.eq.f32.partialorder %v1228, 8.507059e+37
    %v1230 = vand.u32 %v1216, 2147483648
    %v1231 = vor.u32 1.1754944e-38, %v1230
    %v1232 = vsel %vm1229, %v1231, %v1227
    %v1233 = vmul.f32 1.0, %v1232
    %v1234 = vrcp.pop %v1217
    %v1235 = vmul.f32 %v1217, %v1234
    %v1236 = vsub.f32 1.0, %v1235
    %v1237 = vmul.f32 %v1234, %v1236
    %v1238 = vadd.f32 %v1234, %v1237
    %vm1239 = vweird.f32 %v1217
    %vm1240 = vweird.f32 %v1234
    %vm1241 = vmor %vm1239, %vm1240
    %v1242 = vsel %vm1241, %v1234, %v1238
    %v1243 = vand.u32 2147483647, %v1217
    %vm1244 = vcmp.eq.f32.partialorder %v1243, 8.507059e+37
    %v1245 = vand.u32 %v1217, 2147483648
    %v1246 = vor.u32 1.1754944e-38, %v1245
    %v1247 = vsel %vm1244, %v1246, %v1242
    %v1248 = vmul.f32 1.0, %v1247
    %v1249 = vrcp.pop %v1218
    %v1250 = vmul.f32 %v1218, %v1249
    %v1251 = vsub.f32 1.0, %v1250
    %v1252 = vmul.f32 %v1249, %v1251
    %v1253 = vadd.f32 %v1249, %v1252
    %vm1254 = vweird.f32 %v1218
    %vm1255 = vweird.f32 %v1249
    %vm1256 = vmor %vm1254, %vm1255
    %v1257 = vsel %vm1256, %v1249, %v1253
    %v1258 = vand.u32 2147483647, %v1218
    %vm1259 = vcmp.eq.f32.partialorder %v1258, 8.507059e+37
    %v1260 = vand.u32 %v1218, 2147483648
    %v1261 = vor.u32 1.1754944e-38, %v1260
    %v1262 = vsel %vm1259, %v1261, %v1257
    %v1263 = vmul.f32 1.0, %v1262
    %v1264 = vtanh.pop %v1206
    %v1265 = vmul.f32 %v1248, %v946
    %v1266 = vmul.f32 %v1233, %v1264
    %v1267 = vadd.f32 %v1265, %v1266
    %v1268 = vtanh.pop %v1267
    %v1269 = vmul.f32 %v1263, %v1268
    %s1270 = scalar_lea.vmem [#allocation4], 16
    %1271 = vst [vmem:[%s1270] sm:$0xff] %v1269
    %s1272 = smul.u32 3, 4
    %s1273 = smul.addr %s1272, 8
    %s1274 = scalar_lea.vmem [#allocation5], %s1273
    %v1275 = vld [vmem:[%s1274] sm:$0xff]
    %v1276 = vld [vmem:[%s1274 + $0x8] sm:$0xff]
    %v1277 = vld [vmem:[%s1274 + $0x10] sm:$0xff]
    %v1278 = vld [vmem:[%s1274 + $0x18] sm:$0xff]
    %v1279 = vpack.c.bf16 %v1269, %v1269
    %v1280 = vld [vmem:[#allocation6] sm:$0xff]
    %v1281 = vld [vmem:[#allocation6 + $0x8] sm:$0xff]
    %v1282 = vld [vmem:[#allocation6 + $0x10] sm:$0xff]
    %v1283 = vld [vmem:[#allocation6 + $0x18] sm:$0xff]
    %v1284 = vld [vmem:[#allocation6 + $0x20] sm:$0xff]
    %v1285 = vld [vmem:[#allocation6 + $0x28] sm:$0xff]
    %v1286 = vld [vmem:[#allocation6 + $0x30] sm:$0xff]
    %v1287 = vld [vmem:[#allocation6 + $0x38] sm:$0xff]
    %v1288 = vld [vmem:[#allocation6 + $0x40] sm:$0xff]
    %v1289 = vld [vmem:[#allocation6 + $0x48] sm:$0xff]
    %v1290 = vld [vmem:[#allocation6 + $0x50] sm:$0xff]
    %v1291 = vld [vmem:[#allocation6 + $0x58] sm:$0xff]
    %v1292 = vld [vmem:[#allocation6 + $0x60] sm:$0xff]
    %v1293 = vld [vmem:[#allocation6 + $0x68] sm:$0xff]
    %v1294 = vld [vmem:[#allocation6 + $0x70] sm:$0xff]
    %v1295 = vld [vmem:[#allocation6 + $0x78] sm:$0xff]
    %v1296 = vld [vmem:[#allocation6 + $0x80] sm:$0xff]
    %v1297 = vld [vmem:[#allocation6 + $0x88] sm:$0xff]
    %v1298 = vld [vmem:[#allocation6 + $0x90] sm:$0xff]
    %v1299 = vld [vmem:[#allocation6 + $0x98] sm:$0xff]
    %v1300 = vld [vmem:[#allocation6 + $0xa0] sm:$0xff]
    %v1301 = vld [vmem:[#allocation6 + $0xa8] sm:$0xff]
    %v1302 = vld [vmem:[#allocation6 + $0xb0] sm:$0xff]
    %v1303 = vld [vmem:[#allocation6 + $0xb8] sm:$0xff]
    %v1304 = vld [vmem:[#allocation6 + $0xc0] sm:$0xff]
    %v1305 = vld [vmem:[#allocation6 + $0xc8] sm:$0xff]
    %v1306 = vld [vmem:[#allocation6 + $0xd0] sm:$0xff]
    %v1307 = vld [vmem:[#allocation6 + $0xd8] sm:$0xff]
    %v1308 = vld [vmem:[#allocation6 + $0xe0] sm:$0xff]
    %v1309 = vld [vmem:[#allocation6 + $0xe8] sm:$0xff]
    %v1310 = vld [vmem:[#allocation6 + $0xf0] sm:$0xff]
    %v1311 = vld [vmem:[#allocation6 + $0xf8] sm:$0xff]
    %v1344 = vunpack.c.l.b16 %v1280
    %v1345 = vunpack.c.h.b16 %v1280
    %v1346 = vunpack.c.l.b16 %v1281
    %v1347 = vunpack.c.h.b16 %v1281
    %v1348 = vunpack.c.l.b16 %v1282
    %v1349 = vunpack.c.h.b16 %v1282
    %v1350 = vunpack.c.l.b16 %v1283
    %v1351 = vunpack.c.h.b16 %v1283
    %v1352 = vunpack.c.l.b16 %v1284
    %v1353 = vunpack.c.h.b16 %v1284
    %v1354 = vunpack.c.l.b16 %v1285
    %v1355 = vunpack.c.h.b16 %v1285
    %v1356 = vunpack.c.l.b16 %v1286
    %v1357 = vunpack.c.h.b16 %v1286
    %v1358 = vunpack.c.l.b16 %v1287
    %v1359 = vunpack.c.h.b16 %v1287
    %v1360 = vunpack.c.l.b16 %v1288
    %v1361 = vunpack.c.h.b16 %v1288
    %v1362 = vunpack.c.l.b16 %v1289
    %v1363 = vunpack.c.h.b16 %v1289
    %v1364 = vunpack.c.l.b16 %v1290
    %v1365 = vunpack.c.h.b16 %v1290
    %v1366 = vunpack.c.l.b16 %v1291
    %v1367 = vunpack.c.h.b16 %v1291
    %v1368 = vunpack.c.l.b16 %v1292
    %v1369 = vunpack.c.h.b16 %v1292
    %v1370 = vunpack.c.l.b16 %v1293
    %v1371 = vunpack.c.h.b16 %v1293
    %v1372 = vunpack.c.l.b16 %v1294
    %v1373 = vunpack.c.h.b16 %v1294
    %v1374 = vunpack.c.l.b16 %v1295
    %v1375 = vunpack.c.h.b16 %v1295
    %v1376 = vunpack.c.l.b16 %v1296
    %v1377 = vunpack.c.h.b16 %v1296
    %v1378 = vunpack.c.l.b16 %v1297
    %v1379 = vunpack.c.h.b16 %v1297
    %v1380 = vunpack.c.l.b16 %v1298
    %v1381 = vunpack.c.h.b16 %v1298
    %v1382 = vunpack.c.l.b16 %v1299
    %v1383 = vunpack.c.h.b16 %v1299
    %v1384 = vunpack.c.l.b16 %v1300
    %v1385 = vunpack.c.h.b16 %v1300
    %v1386 = vunpack.c.l.b16 %v1301
    %v1387 = vunpack.c.h.b16 %v1301
    %v1388 = vunpack.c.l.b16 %v1302
    %v1389 = vunpack.c.h.b16 %v1302
    %v1390 = vunpack.c.l.b16 %v1303
    %v1391 = vunpack.c.h.b16 %v1303
    %v1392 = vunpack.c.l.b16 %v1304
    %v1393 = vunpack.c.h.b16 %v1304
    %v1394 = vunpack.c.l.b16 %v1305
    %v1395 = vunpack.c.h.b16 %v1305
    %v1396 = vunpack.c.l.b16 %v1306
    %v1397 = vunpack.c.h.b16 %v1306
    %v1398 = vunpack.c.l.b16 %v1307
    %v1399 = vunpack.c.h.b16 %v1307
    %v1400 = vunpack.c.l.b16 %v1308
    %v1401 = vunpack.c.h.b16 %v1308
    %v1402 = vunpack.c.l.b16 %v1309
    %v1403 = vunpack.c.h.b16 %v1309
    %v1404 = vunpack.c.l.b16 %v1310
    %v1405 = vunpack.c.h.b16 %v1310
    %v1406 = vunpack.c.l.b16 %v1311
    %v1407 = vunpack.c.h.b16 %v1311
    %v1408 = vpack.c.b16 %v1348, %v1344
    %v1409 = vpack.c.b16 %v1349, %v1345
    %v1410 = vpack.c.b16 %v1350, %v1346
    %v1411 = vpack.c.b16 %v1351, %v1347
    %v1412 = vpack.c.b16 %v1356, %v1352
    %v1413 = vpack.c.b16 %v1357, %v1353
    %v1414 = vpack.c.b16 %v1358, %v1354
    %v1415 = vpack.c.b16 %v1359, %v1355
    %v1416 = vpack.c.b16 %v1364, %v1360
    %v1417 = vpack.c.b16 %v1365, %v1361
    %v1418 = vpack.c.b16 %v1366, %v1362
    %v1419 = vpack.c.b16 %v1367, %v1363
    %v1420 = vpack.c.b16 %v1372, %v1368
    %v1421 = vpack.c.b16 %v1373, %v1369
    %v1422 = vpack.c.b16 %v1374, %v1370
    %v1423 = vpack.c.b16 %v1375, %v1371
    %v1424 = vpack.c.b16 %v1380, %v1376
    %v1425 = vpack.c.b16 %v1381, %v1377
    %v1426 = vpack.c.b16 %v1382, %v1378
    %v1427 = vpack.c.b16 %v1383, %v1379
    %v1428 = vpack.c.b16 %v1388, %v1384
    %v1429 = vpack.c.b16 %v1389, %v1385
    %v1430 = vpack.c.b16 %v1390, %v1386
    %v1431 = vpack.c.b16 %v1391, %v1387
    %v1432 = vpack.c.b16 %v1396, %v1392
    %v1433 = vpack.c.b16 %v1397, %v1393
    %v1434 = vpack.c.b16 %v1398, %v1394
    %v1435 = vpack.c.b16 %v1399, %v1395
    %v1436 = vpack.c.b16 %v1404, %v1400
    %v1437 = vpack.c.b16 %v1405, %v1401
    %v1438 = vpack.c.b16 %v1406, %v1402
    %v1439 = vpack.c.b16 %v1407, %v1403
    %1472 = vmatpush.bf16.msra.mxu0 %v1436
    %1473 = vmatpush.bf16.msra.mxu0 %v1432
    %1474 = vmatpush.bf16.msra.mxu0 %v1428
    %1475 = vmatpush.bf16.msra.mxu0 %v1424
    %1476 = vmatpush.bf16.msra.mxu0 %v1420
    %1477 = vmatpush.bf16.msra.mxu0 %v1416
    %1478 = vmatpush.bf16.msra.mxu0 %v1412
    %1479 = vmatpush.bf16.msra.mxu0 %v1408
    %1480 = vmatmul.bf16.gmra.mxu0 %v1279
    %v1481 = vpop.f32.mrf.mxu0
    %v1482 = vadd.f32 0.0, %v1481
    %v1483 = vpop.f32.mrf.mxu0
    %1484 = vdwg.mxu0
    %1485 = vmatpush.bf16.msra.mxu0 %v1437
    %1486 = vmatpush.bf16.msra.mxu0 %v1433
    %1487 = vmatpush.bf16.msra.mxu0 %v1429
    %1488 = vmatpush.bf16.msra.mxu0 %v1425
    %1489 = vmatpush.bf16.msra.mxu0 %v1421
    %1490 = vmatpush.bf16.msra.mxu0 %v1417
    %1491 = vmatpush.bf16.msra.mxu0 %v1413
    %1492 = vmatpush.bf16.msra.mxu0 %v1409
    %1493 = vmatmul.bf16.gmra.mxu0 %v1279
    %v1494 = vpop.f32.mrf.mxu0
    %v1495 = vadd.f32 0.0, %v1494
    %v1496 = vpop.f32.mrf.mxu0
    %1497 = vdwg.mxu0
    %1498 = vmatpush.bf16.msra.mxu0 %v1438
    %1499 = vmatpush.bf16.msra.mxu0 %v1434
    %1500 = vmatpush.bf16.msra.mxu0 %v1430
    %1501 = vmatpush.bf16.msra.mxu0 %v1426
    %1502 = vmatpush.bf16.msra.mxu0 %v1422
    %1503 = vmatpush.bf16.msra.mxu0 %v1418
    %1504 = vmatpush.bf16.msra.mxu0 %v1414
    %1505 = vmatpush.bf16.msra.mxu0 %v1410
    %1506 = vmatmul.bf16.gmra.mxu0 %v1279
    %v1507 = vpop.f32.mrf.mxu0
    %v1508 = vadd.f32 0.0, %v1507
    %v1509 = vpop.f32.mrf.mxu0
    %1510 = vdwg.mxu0
    %1511 = vmatpush.bf16.msra.mxu0 %v1439
    %1512 = vmatpush.bf16.msra.mxu0 %v1435
    %1513 = vmatpush.bf16.msra.mxu0 %v1431
    %1514 = vmatpush.bf16.msra.mxu0 %v1427
    %1515 = vmatpush.bf16.msra.mxu0 %v1423
    %1516 = vmatpush.bf16.msra.mxu0 %v1419
    %1517 = vmatpush.bf16.msra.mxu0 %v1415
    %1518 = vmatpush.bf16.msra.mxu0 %v1411
    %1519 = vmatmul.bf16.gmra.mxu0 %v1279
    %v1520 = vpop.f32.mrf.mxu0
    %v1521 = vadd.f32 0.0, %v1520
    %v1522 = vpop.f32.mrf.mxu0
    %1523 = vdwg.mxu0
    %v1524 = vadd.f32 %v1275, %v1482
    %v1525 = vadd.f32 %v1276, %v1495
    %v1526 = vadd.f32 %v1277, %v1508
    %v1527 = vadd.f32 %v1278, %v1521
    %v1528 = vxor.u32 %v1524, 2147483648
    %v1529 = vxor.u32 %v1525, 2147483648
    %v1530 = vxor.u32 %v1526, 2147483648
    %v1531 = vmul.f32 %v1528, 1.442695
    %v1532 = vpow.pop %v1531
    %v1533 = vmul.f32 %v1529, 1.442695
    %v1534 = vpow.pop %v1533
    %v1535 = vmul.f32 %v1530, 1.442695
    %v1536 = vpow.pop %v1535
    %v1537 = vadd.f32 %v1532, 1.0
    %v1538 = vadd.f32 %v1534, 1.0
    %v1539 = vadd.f32 %v1536, 1.0
    %v1540 = vrcp.pop %v1537
    %v1541 = vmul.f32 %v1537, %v1540
    %v1542 = vsub.f32 1.0, %v1541
    %v1543 = vmul.f32 %v1540, %v1542
    %v1544 = vadd.f32 %v1540, %v1543
    %vm1545 = vweird.f32 %v1537
    %vm1546 = vweird.f32 %v1540
    %vm1547 = vmor %vm1545, %vm1546
    %v1548 = vsel %vm1547, %v1540, %v1544
    %v1549 = vand.u32 2147483647, %v1537
    %vm1550 = vcmp.eq.f32.partialorder %v1549, 8.507059e+37
    %v1551 = vand.u32 %v1537, 2147483648
    %v1552 = vor.u32 1.1754944e-38, %v1551
    %v1553 = vsel %vm1550, %v1552, %v1548
    %v1554 = vmul.f32 1.0, %v1553
    %v1555 = vrcp.pop %v1538
    %v1556 = vmul.f32 %v1538, %v1555
    %v1557 = vsub.f32 1.0, %v1556
    %v1558 = vmul.f32 %v1555, %v1557
    %v1559 = vadd.f32 %v1555, %v1558
    %vm1560 = vweird.f32 %v1538
    %vm1561 = vweird.f32 %v1555
    %vm1562 = vmor %vm1560, %vm1561
    %v1563 = vsel %vm1562, %v1555, %v1559
    %v1564 = vand.u32 2147483647, %v1538
    %vm1565 = vcmp.eq.f32.partialorder %v1564, 8.507059e+37
    %v1566 = vand.u32 %v1538, 2147483648
    %v1567 = vor.u32 1.1754944e-38, %v1566
    %v1568 = vsel %vm1565, %v1567, %v1563
    %v1569 = vmul.f32 1.0, %v1568
    %v1570 = vrcp.pop %v1539
    %v1571 = vmul.f32 %v1539, %v1570
    %v1572 = vsub.f32 1.0, %v1571
    %v1573 = vmul.f32 %v1570, %v1572
    %v1574 = vadd.f32 %v1570, %v1573
    %vm1575 = vweird.f32 %v1539
    %vm1576 = vweird.f32 %v1570
    %vm1577 = vmor %vm1575, %vm1576
    %v1578 = vsel %vm1577, %v1570, %v1574
    %v1579 = vand.u32 2147483647, %v1539
    %vm1580 = vcmp.eq.f32.partialorder %v1579, 8.507059e+37
    %v1581 = vand.u32 %v1539, 2147483648
    %v1582 = vor.u32 1.1754944e-38, %v1581
    %v1583 = vsel %vm1580, %v1582, %v1578
    %v1584 = vmul.f32 1.0, %v1583
    %v1585 = vtanh.pop %v1527
    %v1586 = vmul.f32 %v1569, %v1267
    %v1587 = vmul.f32 %v1554, %v1585
    %v1588 = vadd.f32 %v1586, %v1587
    %v1589 = vtanh.pop %v1588
    %v1590 = vmul.f32 %v1584, %v1589
    %s1591 = scalar_lea.vmem [#allocation4], 24
    %1592 = vst [vmem:[%s1591] sm:$0xff] %v1590
    %s1593 = smul.u32 4, 4
    %s1594 = smul.addr %s1593, 8
    %s1595 = scalar_lea.vmem [#allocation5], %s1594
    %v1596 = vld [vmem:[%s1595] sm:$0xff]
    %v1597 = vld [vmem:[%s1595 + $0x8] sm:$0xff]
    %v1598 = vld [vmem:[%s1595 + $0x10] sm:$0xff]
    %v1599 = vld [vmem:[%s1595 + $0x18] sm:$0xff]
    %v1600 = vpack.c.bf16 %v1590, %v1590
    %v1601 = vld [vmem:[#allocation6] sm:$0xff]
    %v1602 = vld [vmem:[#allocation6 + $0x8] sm:$0xff]
    %v1603 = vld [vmem:[#allocation6 + $0x10] sm:$0xff]
    %v1604 = vld [vmem:[#allocation6 + $0x18] sm:$0xff]
    %v1605 = vld [vmem:[#allocation6 + $0x20] sm:$0xff]
    %v1606 = vld [vmem:[#allocation6 + $0x28] sm:$0xff]
    %v1607 = vld [vmem:[#allocation6 + $0x30] sm:$0xff]
    %v1608 = vld [vmem:[#allocation6 + $0x38] sm:$0xff]
    %v1609 = vld [vmem:[#allocation6 + $0x40] sm:$0xff]
    %v1610 = vld [vmem:[#allocation6 + $0x48] sm:$0xff]
    %v1611 = vld [vmem:[#allocation6 + $0x50] sm:$0xff]
    %v1612 = vld [vmem:[#allocation6 + $0x58] sm:$0xff]
    %v1613 = vld [vmem:[#allocation6 + $0x60] sm:$0xff]
    %v1614 = vld [vmem:[#allocation6 + $0x68] sm:$0xff]
    %v1615 = vld [vmem:[#allocation6 + $0x70] sm:$0xff]
    %v1616 = vld [vmem:[#allocation6 + $0x78] sm:$0xff]
    %v1617 = vld [vmem:[#allocation6 + $0x80] sm:$0xff]
    %v1618 = vld [vmem:[#allocation6 + $0x88] sm:$0xff]
    %v1619 = vld [vmem:[#allocation6 + $0x90] sm:$0xff]
    %v1620 = vld [vmem:[#allocation6 + $0x98] sm:$0xff]
    %v1621 = vld [vmem:[#allocation6 + $0xa0] sm:$0xff]
    %v1622 = vld [vmem:[#allocation6 + $0xa8] sm:$0xff]
    %v1623 = vld [vmem:[#allocation6 + $0xb0] sm:$0xff]
    %v1624 = vld [vmem:[#allocation6 + $0xb8] sm:$0xff]
    %v1625 = vld [vmem:[#allocation6 + $0xc0] sm:$0xff]
    %v1626 = vld [vmem:[#allocation6 + $0xc8] sm:$0xff]
    %v1627 = vld [vmem:[#allocation6 + $0xd0] sm:$0xff]
    %v1628 = vld [vmem:[#allocation6 + $0xd8] sm:$0xff]
    %v1629 = vld [vmem:[#allocation6 + $0xe0] sm:$0xff]
    %v1630 = vld [vmem:[#allocation6 + $0xe8] sm:$0xff]
    %v1631 = vld [vmem:[#allocation6 + $0xf0] sm:$0xff]
    %v1632 = vld [vmem:[#allocation6 + $0xf8] sm:$0xff]
    %v1665 = vunpack.c.l.b16 %v1601
    %v1666 = vunpack.c.h.b16 %v1601
    %v1667 = vunpack.c.l.b16 %v1602
    %v1668 = vunpack.c.h.b16 %v1602
    %v1669 = vunpack.c.l.b16 %v1603
    %v1670 = vunpack.c.h.b16 %v1603
    %v1671 = vunpack.c.l.b16 %v1604
    %v1672 = vunpack.c.h.b16 %v1604
    %v1673 = vunpack.c.l.b16 %v1605
    %v1674 = vunpack.c.h.b16 %v1605
    %v1675 = vunpack.c.l.b16 %v1606
    %v1676 = vunpack.c.h.b16 %v1606
    %v1677 = vunpack.c.l.b16 %v1607
    %v1678 = vunpack.c.h.b16 %v1607
    %v1679 = vunpack.c.l.b16 %v1608
    %v1680 = vunpack.c.h.b16 %v1608
    %v1681 = vunpack.c.l.b16 %v1609
    %v1682 = vunpack.c.h.b16 %v1609
    %v1683 = vunpack.c.l.b16 %v1610
    %v1684 = vunpack.c.h.b16 %v1610
    %v1685 = vunpack.c.l.b16 %v1611
    %v1686 = vunpack.c.h.b16 %v1611
    %v1687 = vunpack.c.l.b16 %v1612
    %v1688 = vunpack.c.h.b16 %v1612
    %v1689 = vunpack.c.l.b16 %v1613
    %v1690 = vunpack.c.h.b16 %v1613
    %v1691 = vunpack.c.l.b16 %v1614
    %v1692 = vunpack.c.h.b16 %v1614
    %v1693 = vunpack.c.l.b16 %v1615
    %v1694 = vunpack.c.h.b16 %v1615
    %v1695 = vunpack.c.l.b16 %v1616
    %v1696 = vunpack.c.h.b16 %v1616
    %v1697 = vunpack.c.l.b16 %v1617
    %v1698 = vunpack.c.h.b16 %v1617
    %v1699 = vunpack.c.l.b16 %v1618
    %v1700 = vunpack.c.h.b16 %v1618
    %v1701 = vunpack.c.l.b16 %v1619
    %v1702 = vunpack.c.h.b16 %v1619
    %v1703 = vunpack.c.l.b16 %v1620
    %v1704 = vunpack.c.h.b16 %v1620
    %v1705 = vunpack.c.l.b16 %v1621
    %v1706 = vunpack.c.h.b16 %v1621
    %v1707 = vunpack.c.l.b16 %v1622
    %v1708 = vunpack.c.h.b16 %v1622
    %v1709 = vunpack.c.l.b16 %v1623
    %v1710 = vunpack.c.h.b16 %v1623
    %v1711 = vunpack.c.l.b16 %v1624
    %v1712 = vunpack.c.h.b16 %v1624
    %v1713 = vunpack.c.l.b16 %v1625
    %v1714 = vunpack.c.h.b16 %v1625
    %v1715 = vunpack.c.l.b16 %v1626
    %v1716 = vunpack.c.h.b16 %v1626
    %v1717 = vunpack.c.l.b16 %v1627
    %v1718 = vunpack.c.h.b16 %v1627
    %v1719 = vunpack.c.l.b16 %v1628
    %v1720 = vunpack.c.h.b16 %v1628
    %v1721 = vunpack.c.l.b16 %v1629
    %v1722 = vunpack.c.h.b16 %v1629
    %v1723 = vunpack.c.l.b16 %v1630
    %v1724 = vunpack.c.h.b16 %v1630
    %v1725 = vunpack.c.l.b16 %v1631
    %v1726 = vunpack.c.h.b16 %v1631
    %v1727 = vunpack.c.l.b16 %v1632
    %v1728 = vunpack.c.h.b16 %v1632
    %v1729 = vpack.c.b16 %v1669, %v1665
    %v1730 = vpack.c.b16 %v1670, %v1666
    %v1731 = vpack.c.b16 %v1671, %v1667
    %v1732 = vpack.c.b16 %v1672, %v1668
    %v1733 = vpack.c.b16 %v1677, %v1673
    %v1734 = vpack.c.b16 %v1678, %v1674
    %v1735 = vpack.c.b16 %v1679, %v1675
    %v1736 = vpack.c.b16 %v1680, %v1676
    %v1737 = vpack.c.b16 %v1685, %v1681
    %v1738 = vpack.c.b16 %v1686, %v1682
    %v1739 = vpack.c.b16 %v1687, %v1683
    %v1740 = vpack.c.b16 %v1688, %v1684
    %v1741 = vpack.c.b16 %v1693, %v1689
    %v1742 = vpack.c.b16 %v1694, %v1690
    %v1743 = vpack.c.b16 %v1695, %v1691
    %v1744 = vpack.c.b16 %v1696, %v1692
    %v1745 = vpack.c.b16 %v1701, %v1697
    %v1746 = vpack.c.b16 %v1702, %v1698
    %v1747 = vpack.c.b16 %v1703, %v1699
    %v1748 = vpack.c.b16 %v1704, %v1700
    %v1749 = vpack.c.b16 %v1709, %v1705
    %v1750 = vpack.c.b16 %v1710, %v1706
    %v1751 = vpack.c.b16 %v1711, %v1707
    %v1752 = vpack.c.b16 %v1712, %v1708
    %v1753 = vpack.c.b16 %v1717, %v1713
    %v1754 = vpack.c.b16 %v1718, %v1714
    %v1755 = vpack.c.b16 %v1719, %v1715
    %v1756 = vpack.c.b16 %v1720, %v1716
    %v1757 = vpack.c.b16 %v1725, %v1721
    %v1758 = vpack.c.b16 %v1726, %v1722
    %v1759 = vpack.c.b16 %v1727, %v1723
    %v1760 = vpack.c.b16 %v1728, %v1724
    %1793 = vmatpush.bf16.msra.mxu0 %v1757
    %1794 = vmatpush.bf16.msra.mxu0 %v1753
    %1795 = vmatpush.bf16.msra.mxu0 %v1749
    %1796 = vmatpush.bf16.msra.mxu0 %v1745
    %1797 = vmatpush.bf16.msra.mxu0 %v1741
    %1798 = vmatpush.bf16.msra.mxu0 %v1737
    %1799 = vmatpush.bf16.msra.mxu0 %v1733
    %1800 = vmatpush.bf16.msra.mxu0 %v1729
    %1801 = vmatmul.bf16.gmra.mxu0 %v1600
    %v1802 = vpop.f32.mrf.mxu0
    %v1803 = vadd.f32 0.0, %v1802
    %v1804 = vpop.f32.mrf.mxu0
    %1805 = vdwg.mxu0
    %1806 = vmatpush.bf16.msra.mxu0 %v1758
    %1807 = vmatpush.bf16.msra.mxu0 %v1754
    %1808 = vmatpush.bf16.msra.mxu0 %v1750
    %1809 = vmatpush.bf16.msra.mxu0 %v1746
    %1810 = vmatpush.bf16.msra.mxu0 %v1742
    %1811 = vmatpush.bf16.msra.mxu0 %v1738
    %1812 = vmatpush.bf16.msra.mxu0 %v1734
    %1813 = vmatpush.bf16.msra.mxu0 %v1730
    %1814 = vmatmul.bf16.gmra.mxu0 %v1600
    %v1815 = vpop.f32.mrf.mxu0
    %v1816 = vadd.f32 0.0, %v1815
    %v1817 = vpop.f32.mrf.mxu0
    %1818 = vdwg.mxu0
    %1819 = vmatpush.bf16.msra.mxu0 %v1759
    %1820 = vmatpush.bf16.msra.mxu0 %v1755
    %1821 = vmatpush.bf16.msra.mxu0 %v1751
    %1822 = vmatpush.bf16.msra.mxu0 %v1747
    %1823 = vmatpush.bf16.msra.mxu0 %v1743
    %1824 = vmatpush.bf16.msra.mxu0 %v1739
    %1825 = vmatpush.bf16.msra.mxu0 %v1735
    %1826 = vmatpush.bf16.msra.mxu0 %v1731
    %1827 = vmatmul.bf16.gmra.mxu0 %v1600
    %v1828 = vpop.f32.mrf.mxu0
    %v1829 = vadd.f32 0.0, %v1828
    %v1830 = vpop.f32.mrf.mxu0
    %1831 = vdwg.mxu0
    %1832 = vmatpush.bf16.msra.mxu0 %v1760
    %1833 = vmatpush.bf16.msra.mxu0 %v1756
    %1834 = vmatpush.bf16.msra.mxu0 %v1752
    %1835 = vmatpush.bf16.msra.mxu0 %v1748
    %1836 = vmatpush.bf16.msra.mxu0 %v1744
    %1837 = vmatpush.bf16.msra.mxu0 %v1740
    %1838 = vmatpush.bf16.msra.mxu0 %v1736
    %1839 = vmatpush.bf16.msra.mxu0 %v1732
    %1840 = vmatmul.bf16.gmra.mxu0 %v1600
    %v1841 = vpop.f32.mrf.mxu0
    %v1842 = vadd.f32 0.0, %v1841
    %v1843 = vpop.f32.mrf.mxu0
    %1844 = vdwg.mxu0
    %v1845 = vadd.f32 %v1596, %v1803
    %v1846 = vadd.f32 %v1597, %v1816
    %v1847 = vadd.f32 %v1598, %v1829
    %v1848 = vadd.f32 %v1599, %v1842
    %v1849 = vxor.u32 %v1845, 2147483648
    %v1850 = vxor.u32 %v1846, 2147483648
    %v1851 = vxor.u32 %v1847, 2147483648
    %v1852 = vmul.f32 %v1849, 1.442695
    %v1853 = vpow.pop %v1852
    %v1854 = vmul.f32 %v1850, 1.442695
    %v1855 = vpow.pop %v1854
    %v1856 = vmul.f32 %v1851, 1.442695
    %v1857 = vpow.pop %v1856
    %v1858 = vadd.f32 %v1853, 1.0
    %v1859 = vadd.f32 %v1855, 1.0
    %v1860 = vadd.f32 %v1857, 1.0
    %v1861 = vrcp.pop %v1858
    %v1862 = vmul.f32 %v1858, %v1861
    %v1863 = vsub.f32 1.0, %v1862
    %v1864 = vmul.f32 %v1861, %v1863
    %v1865 = vadd.f32 %v1861, %v1864
    %vm1866 = vweird.f32 %v1858
    %vm1867 = vweird.f32 %v1861
    %vm1868 = vmor %vm1866, %vm1867
    %v1869 = vsel %vm1868, %v1861, %v1865
    %v1870 = vand.u32 2147483647, %v1858
    %vm1871 = vcmp.eq.f32.partialorder %v1870, 8.507059e+37
    %v1872 = vand.u32 %v1858, 2147483648
    %v1873 = vor.u32 1.1754944e-38, %v1872
    %v1874 = vsel %vm1871, %v1873, %v1869
    %v1875 = vmul.f32 1.0, %v1874
    %v1876 = vrcp.pop %v1859
    %v1877 = vmul.f32 %v1859, %v1876
    %v1878 = vsub.f32 1.0, %v1877
    %v1879 = vmul.f32 %v1876, %v1878
    %v1880 = vadd.f32 %v1876, %v1879
    %vm1881 = vweird.f32 %v1859
    %vm1882 = vweird.f32 %v1876
    %vm1883 = vmor %vm1881, %vm1882
    %v1884 = vsel %vm1883, %v1876, %v1880
    %v1885 = vand.u32 2147483647, %v1859
    %vm1886 = vcmp.eq.f32.partialorder %v1885, 8.507059e+37
    %v1887 = vand.u32 %v1859, 2147483648
    %v1888 = vor.u32 1.1754944e-38, %v1887
    %v1889 = vsel %vm1886, %v1888, %v1884
    %v1890 = vmul.f32 1.0, %v1889
    %v1891 = vrcp.pop %v1860
    %v1892 = vmul.f32 %v1860, %v1891
    %v1893 = vsub.f32 1.0, %v1892
    %v1894 = vmul.f32 %v1891, %v1893
    %v1895 = vadd.f32 %v1891, %v1894
    %vm1896 = vweird.f32 %v1860
    %vm1897 = vweird.f32 %v1891
    %vm1898 = vmor %vm1896, %vm1897
    %v1899 = vsel %vm1898, %v1891, %v1895
    %v1900 = vand.u32 2147483647, %v1860
    %vm1901 = vcmp.eq.f32.partialorder %v1900, 8.507059e+37
    %v1902 = vand.u32 %v1860, 2147483648
    %v1903 = vor.u32 1.1754944e-38, %v1902
    %v1904 = vsel %vm1901, %v1903, %v1899
    %v1905 = vmul.f32 1.0, %v1904
    %v1906 = vtanh.pop %v1848
    %v1907 = vmul.f32 %v1890, %v1588
    %v1908 = vmul.f32 %v1875, %v1906
    %v1909 = vadd.f32 %v1907, %v1908
    %v1910 = vtanh.pop %v1909
    %v1911 = vmul.f32 %v1905, %v1910
    %s1912 = scalar_lea.vmem [#allocation4], 32
    %1913 = vst [vmem:[%s1912] sm:$0xff] %v1911
    %s1914 = smul.u32 5, 4
    %s1915 = smul.addr %s1914, 8
    %s1916 = scalar_lea.vmem [#allocation5], %s1915
    %v1917 = vld [vmem:[%s1916] sm:$0xff]
    %v1918 = vld [vmem:[%s1916 + $0x8] sm:$0xff]
    %v1919 = vld [vmem:[%s1916 + $0x10] sm:$0xff]
    %v1920 = vld [vmem:[%s1916 + $0x18] sm:$0xff]
    %v1921 = vpack.c.bf16 %v1911, %v1911
    %v1922 = vld [vmem:[#allocation6] sm:$0xff]
    %v1923 = vld [vmem:[#allocation6 + $0x8] sm:$0xff]
    %v1924 = vld [vmem:[#allocation6 + $0x10] sm:$0xff]
    %v1925 = vld [vmem:[#allocation6 + $0x18] sm:$0xff]
    %v1926 = vld [vmem:[#allocation6 + $0x20] sm:$0xff]
    %v1927 = vld [vmem:[#allocation6 + $0x28] sm:$0xff]
    %v1928 = vld [vmem:[#allocation6 + $0x30] sm:$0xff]
    %v1929 = vld [vmem:[#allocation6 + $0x38] sm:$0xff]
    %v1930 = vld [vmem:[#allocation6 + $0x40] sm:$0xff]
    %v1931 = vld [vmem:[#allocation6 + $0x48] sm:$0xff]
    %v1932 = vld [vmem:[#allocation6 + $0x50] sm:$0xff]
    %v1933 = vld [vmem:[#allocation6 + $0x58] sm:$0xff]
    %v1934 = vld [vmem:[#allocation6 + $0x60] sm:$0xff]
    %v1935 = vld [vmem:[#allocation6 + $0x68] sm:$0xff]
    %v1936 = vld [vmem:[#allocation6 + $0x70] sm:$0xff]
    %v1937 = vld [vmem:[#allocation6 + $0x78] sm:$0xff]
    %v1938 = vld [vmem:[#allocation6 + $0x80] sm:$0xff]
    %v1939 = vld [vmem:[#allocation6 + $0x88] sm:$0xff]
    %v1940 = vld [vmem:[#allocation6 + $0x90] sm:$0xff]
    %v1941 = vld [vmem:[#allocation6 + $0x98] sm:$0xff]
    %v1942 = vld [vmem:[#allocation6 + $0xa0] sm:$0xff]
    %v1943 = vld [vmem:[#allocation6 + $0xa8] sm:$0xff]
    %v1944 = vld [vmem:[#allocation6 + $0xb0] sm:$0xff]
    %v1945 = vld [vmem:[#allocation6 + $0xb8] sm:$0xff]
    %v1946 = vld [vmem:[#allocation6 + $0xc0] sm:$0xff]
    %v1947 = vld [vmem:[#allocation6 + $0xc8] sm:$0xff]
    %v1948 = vld [vmem:[#allocation6 + $0xd0] sm:$0xff]
    %v1949 = vld [vmem:[#allocation6 + $0xd8] sm:$0xff]
    %v1950 = vld [vmem:[#allocation6 + $0xe0] sm:$0xff]
    %v1951 = vld [vmem:[#allocation6 + $0xe8] sm:$0xff]
    %v1952 = vld [vmem:[#allocation6 + $0xf0] sm:$0xff]
    %v1953 = vld [vmem:[#allocation6 + $0xf8] sm:$0xff]
    %v1986 = vunpack.c.l.b16 %v1922
    %v1987 = vunpack.c.h.b16 %v1922
    %v1988 = vunpack.c.l.b16 %v1923
    %v1989 = vunpack.c.h.b16 %v1923
    %v1990 = vunpack.c.l.b16 %v1924
    %v1991 = vunpack.c.h.b16 %v1924
    %v1992 = vunpack.c.l.b16 %v1925
    %v1993 = vunpack.c.h.b16 %v1925
    %v1994 = vunpack.c.l.b16 %v1926
    %v1995 = vunpack.c.h.b16 %v1926
    %v1996 = vunpack.c.l.b16 %v1927
    %v1997 = vunpack.c.h.b16 %v1927
    %v1998 = vunpack.c.l.b16 %v1928
    %v1999 = vunpack.c.h.b16 %v1928
    %v2000 = vunpack.c.l.b16 %v1929
    %v2001 = vunpack.c.h.b16 %v1929
    %v2002 = vunpack.c.l.b16 %v1930
    %v2003 = vunpack.c.h.b16 %v1930
    %v2004 = vunpack.c.l.b16 %v1931
    %v2005 = vunpack.c.h.b16 %v1931
    %v2006 = vunpack.c.l.b16 %v1932
    %v2007 = vunpack.c.h.b16 %v1932
    %v2008 = vunpack.c.l.b16 %v1933
    %v2009 = vunpack.c.h.b16 %v1933
    %v2010 = vunpack.c.l.b16 %v1934
    %v2011 = vunpack.c.h.b16 %v1934
    %v2012 = vunpack.c.l.b16 %v1935
    %v2013 = vunpack.c.h.b16 %v1935
    %v2014 = vunpack.c.l.b16 %v1936
    %v2015 = vunpack.c.h.b16 %v1936
    %v2016 = vunpack.c.l.b16 %v1937
    %v2017 = vunpack.c.h.b16 %v1937
    %v2018 = vunpack.c.l.b16 %v1938
    %v2019 = vunpack.c.h.b16 %v1938
    %v2020 = vunpack.c.l.b16 %v1939
    %v2021 = vunpack.c.h.b16 %v1939
    %v2022 = vunpack.c.l.b16 %v1940
    %v2023 = vunpack.c.h.b16 %v1940
    %v2024 = vunpack.c.l.b16 %v1941
    %v2025 = vunpack.c.h.b16 %v1941
    %v2026 = vunpack.c.l.b16 %v1942
    %v2027 = vunpack.c.h.b16 %v1942
    %v2028 = vunpack.c.l.b16 %v1943
    %v2029 = vunpack.c.h.b16 %v1943
    %v2030 = vunpack.c.l.b16 %v1944
    %v2031 = vunpack.c.h.b16 %v1944
    %v2032 = vunpack.c.l.b16 %v1945
    %v2033 = vunpack.c.h.b16 %v1945
    %v2034 = vunpack.c.l.b16 %v1946
    %v2035 = vunpack.c.h.b16 %v1946
    %v2036 = vunpack.c.l.b16 %v1947
    %v2037 = vunpack.c.h.b16 %v1947
    %v2038 = vunpack.c.l.b16 %v1948
    %v2039 = vunpack.c.h.b16 %v1948
    %v2040 = vunpack.c.l.b16 %v1949
    %v2041 = vunpack.c.h.b16 %v1949
    %v2042 = vunpack.c.l.b16 %v1950
    %v2043 = vunpack.c.h.b16 %v1950
    %v2044 = vunpack.c.l.b16 %v1951
    %v2045 = vunpack.c.h.b16 %v1951
    %v2046 = vunpack.c.l.b16 %v1952
    %v2047 = vunpack.c.h.b16 %v1952
    %v2048 = vunpack.c.l.b16 %v1953
    %v2049 = vunpack.c.h.b16 %v1953
    %v2050 = vpack.c.b16 %v1990, %v1986
    %v2051 = vpack.c.b16 %v1991, %v1987
    %v2052 = vpack.c.b16 %v1992, %v1988
    %v2053 = vpack.c.b16 %v1993, %v1989
    %v2054 = vpack.c.b16 %v1998, %v1994
    %v2055 = vpack.c.b16 %v1999, %v1995
    %v2056 = vpack.c.b16 %v2000, %v1996
    %v2057 = vpack.c.b16 %v2001, %v1997
    %v2058 = vpack.c.b16 %v2006, %v2002
    %v2059 = vpack.c.b16 %v2007, %v2003
    %v2060 = vpack.c.b16 %v2008, %v2004
    %v2061 = vpack.c.b16 %v2009, %v2005
    %v2062 = vpack.c.b16 %v2014, %v2010
    %v2063 = vpack.c.b16 %v2015, %v2011
    %v2064 = vpack.c.b16 %v2016, %v2012
    %v2065 = vpack.c.b16 %v2017, %v2013
    %v2066 = vpack.c.b16 %v2022, %v2018
    %v2067 = vpack.c.b16 %v2023, %v2019
    %v2068 = vpack.c.b16 %v2024, %v2020
    %v2069 = vpack.c.b16 %v2025, %v2021
    %v2070 = vpack.c.b16 %v2030, %v2026
    %v2071 = vpack.c.b16 %v2031, %v2027
    %v2072 = vpack.c.b16 %v2032, %v2028
    %v2073 = vpack.c.b16 %v2033, %v2029
    %v2074 = vpack.c.b16 %v2038, %v2034
    %v2075 = vpack.c.b16 %v2039, %v2035
    %v2076 = vpack.c.b16 %v2040, %v2036
    %v2077 = vpack.c.b16 %v2041, %v2037
    %v2078 = vpack.c.b16 %v2046, %v2042
    %v2079 = vpack.c.b16 %v2047, %v2043
    %v2080 = vpack.c.b16 %v2048, %v2044
    %v2081 = vpack.c.b16 %v2049, %v2045
    %2114 = vmatpush.bf16.msra.mxu0 %v2078
    %2115 = vmatpush.bf16.msra.mxu0 %v2074
    %2116 = vmatpush.bf16.msra.mxu0 %v2070
    %2117 = vmatpush.bf16.msra.mxu0 %v2066
    %2118 = vmatpush.bf16.msra.mxu0 %v2062
    %2119 = vmatpush.bf16.msra.mxu0 %v2058
    %2120 = vmatpush.bf16.msra.mxu0 %v2054
    %2121 = vmatpush.bf16.msra.mxu0 %v2050
    %2122 = vmatmul.bf16.gmra.mxu0 %v1921
    %v2123 = vpop.f32.mrf.mxu0
    %v2124 = vadd.f32 0.0, %v2123
    %v2125 = vpop.f32.mrf.mxu0
    %2126 = vdwg.mxu0
    %2127 = vmatpush.bf16.msra.mxu0 %v2079
    %2128 = vmatpush.bf16.msra.mxu0 %v2075
    %2129 = vmatpush.bf16.msra.mxu0 %v2071
    %2130 = vmatpush.bf16.msra.mxu0 %v2067
    %2131 = vmatpush.bf16.msra.mxu0 %v2063
    %2132 = vmatpush.bf16.msra.mxu0 %v2059
    %2133 = vmatpush.bf16.msra.mxu0 %v2055
    %2134 = vmatpush.bf16.msra.mxu0 %v2051
    %2135 = vmatmul.bf16.gmra.mxu0 %v1921
    %v2136 = vpop.f32.mrf.mxu0
    %v2137 = vadd.f32 0.0, %v2136
    %v2138 = vpop.f32.mrf.mxu0
    %2139 = vdwg.mxu0
    %2140 = vmatpush.bf16.msra.mxu0 %v2080
    %2141 = vmatpush.bf16.msra.mxu0 %v2076
    %2142 = vmatpush.bf16.msra.mxu0 %v2072
    %2143 = vmatpush.bf16.msra.mxu0 %v2068
    %2144 = vmatpush.bf16.msra.mxu0 %v2064
    %2145 = vmatpush.bf16.msra.mxu0 %v2060
    %2146 = vmatpush.bf16.msra.mxu0 %v2056
    %2147 = vmatpush.bf16.msra.mxu0 %v2052
    %2148 = vmatmul.bf16.gmra.mxu0 %v1921
    %v2149 = vpop.f32.mrf.mxu0
    %v2150 = vadd.f32 0.0, %v2149
    %v2151 = vpop.f32.mrf.mxu0
    %2152 = vdwg.mxu0
    %2153 = vmatpush.bf16.msra.mxu0 %v2081
    %2154 = vmatpush.bf16.msra.mxu0 %v2077
    %2155 = vmatpush.bf16.msra.mxu0 %v2073
    %2156 = vmatpush.bf16.msra.mxu0 %v2069
    %2157 = vmatpush.bf16.msra.mxu0 %v2065
    %2158 = vmatpush.bf16.msra.mxu0 %v2061
    %2159 = vmatpush.bf16.msra.mxu0 %v2057
    %2160 = vmatpush.bf16.msra.mxu0 %v2053
    %2161 = vmatmul.bf16.gmra.mxu0 %v1921
    %v2162 = vpop.f32.mrf.mxu0
    %v2163 = vadd.f32 0.0, %v2162
    %v2164 = vpop.f32.mrf.mxu0
    %2165 = vdwg.mxu0
    %v2166 = vadd.f32 %v1917, %v2124
    %v2167 = vadd.f32 %v1918, %v2137
    %v2168 = vadd.f32 %v1919, %v2150
    %v2169 = vadd.f32 %v1920, %v2163
    %v2170 = vxor.u32 %v2166, 2147483648
    %v2171 = vxor.u32 %v2167, 2147483648
    %v2172 = vxor.u32 %v2168, 2147483648
    %v2173 = vmul.f32 %v2170, 1.442695
    %v2174 = vpow.pop %v2173
    %v2175 = vmul.f32 %v2171, 1.442695
    %v2176 = vpow.pop %v2175
    %v2177 = vmul.f32 %v2172, 1.442695
    %v2178 = vpow.pop %v2177
    %v2179 = vadd.f32 %v2174, 1.0
    %v2180 = vadd.f32 %v2176, 1.0
    %v2181 = vadd.f32 %v2178, 1.0
    %v2182 = vrcp.pop %v2179
    %v2183 = vmul.f32 %v2179, %v2182
    %v2184 = vsub.f32 1.0, %v2183
    %v2185 = vmul.f32 %v2182, %v2184
    %v2186 = vadd.f32 %v2182, %v2185
    %vm2187 = vweird.f32 %v2179
    %vm2188 = vweird.f32 %v2182
    %vm2189 = vmor %vm2187, %vm2188
    %v2190 = vsel %vm2189, %v2182, %v2186
    %v2191 = vand.u32 2147483647, %v2179
    %vm2192 = vcmp.eq.f32.partialorder %v2191, 8.507059e+37
    %v2193 = vand.u32 %v2179, 2147483648
    %v2194 = vor.u32 1.1754944e-38, %v2193
    %v2195 = vsel %vm2192, %v2194, %v2190
    %v2196 = vmul.f32 1.0, %v2195
    %v2197 = vrcp.pop %v2180
    %v2198 = vmul.f32 %v2180, %v2197
    %v2199 = vsub.f32 1.0, %v2198
    %v2200 = vmul.f32 %v2197, %v2199
    %v2201 = vadd.f32 %v2197, %v2200
    %vm2202 = vweird.f32 %v2180
    %vm2203 = vweird.f32 %v2197
    %vm2204 = vmor %vm2202, %vm2203
    %v2205 = vsel %vm2204, %v2197, %v2201
    %v2206 = vand.u32 2147483647, %v2180
    %vm2207 = vcmp.eq.f32.partialorder %v2206, 8.507059e+37
    %v2208 = vand.u32 %v2180, 2147483648
    %v2209 = vor.u32 1.1754944e-38, %v2208
    %v2210 = vsel %vm2207, %v2209, %v2205
    %v2211 = vmul.f32 1.0, %v2210
    %v2212 = vrcp.pop %v2181
    %v2213 = vmul.f32 %v2181, %v2212
    %v2214 = vsub.f32 1.0, %v2213
    %v2215 = vmul.f32 %v2212, %v2214
    %v2216 = vadd.f32 %v2212, %v2215
    %vm2217 = vweird.f32 %v2181
    %vm2218 = vweird.f32 %v2212
    %vm2219 = vmor %vm2217, %vm2218
    %v2220 = vsel %vm2219, %v2212, %v2216
    %v2221 = vand.u32 2147483647, %v2181
    %vm2222 = vcmp.eq.f32.partialorder %v2221, 8.507059e+37
    %v2223 = vand.u32 %v2181, 2147483648
    %v2224 = vor.u32 1.1754944e-38, %v2223
    %v2225 = vsel %vm2222, %v2224, %v2220
    %v2226 = vmul.f32 1.0, %v2225
    %v2227 = vtanh.pop %v2169
    %v2228 = vmul.f32 %v2211, %v1909
    %v2229 = vmul.f32 %v2196, %v2227
    %v2230 = vadd.f32 %v2228, %v2229
    %v2231 = vtanh.pop %v2230
    %v2232 = vmul.f32 %v2226, %v2231
    %s2233 = scalar_lea.vmem [#allocation4], 40
    %2234 = vst [vmem:[%s2233] sm:$0xff] %v2232
    %s2235 = smul.u32 6, 4
    %s2236 = smul.addr %s2235, 8
    %s2237 = scalar_lea.vmem [#allocation5], %s2236
    %v2238 = vld [vmem:[%s2237] sm:$0xff]
    %v2239 = vld [vmem:[%s2237 + $0x8] sm:$0xff]
    %v2240 = vld [vmem:[%s2237 + $0x10] sm:$0xff]
    %v2241 = vld [vmem:[%s2237 + $0x18] sm:$0xff]
    %v2242 = vpack.c.bf16 %v2232, %v2232
    %v2243 = vld [vmem:[#allocation6] sm:$0xff]
    %v2244 = vld [vmem:[#allocation6 + $0x8] sm:$0xff]
    %v2245 = vld [vmem:[#allocation6 + $0x10] sm:$0xff]
    %v2246 = vld [vmem:[#allocation6 + $0x18] sm:$0xff]
    %v2247 = vld [vmem:[#allocation6 + $0x20] sm:$0xff]
    %v2248 = vld [vmem:[#allocation6 + $0x28] sm:$0xff]
    %v2249 = vld [vmem:[#allocation6 + $0x30] sm:$0xff]
    %v2250 = vld [vmem:[#allocation6 + $0x38] sm:$0xff]
    %v2251 = vld [vmem:[#allocation6 + $0x40] sm:$0xff]
    %v2252 = vld [vmem:[#allocation6 + $0x48] sm:$0xff]
    %v2253 = vld [vmem:[#allocation6 + $0x50] sm:$0xff]
    %v2254 = vld [vmem:[#allocation6 + $0x58] sm:$0xff]
    %v2255 = vld [vmem:[#allocation6 + $0x60] sm:$0xff]
    %v2256 = vld [vmem:[#allocation6 + $0x68] sm:$0xff]
    %v2257 = vld [vmem:[#allocation6 + $0x70] sm:$0xff]
    %v2258 = vld [vmem:[#allocation6 + $0x78] sm:$0xff]
    %v2259 = vld [vmem:[#allocation6 + $0x80] sm:$0xff]
    %v2260 = vld [vmem:[#allocation6 + $0x88] sm:$0xff]
    %v2261 = vld [vmem:[#allocation6 + $0x90] sm:$0xff]
    %v2262 = vld [vmem:[#allocation6 + $0x98] sm:$0xff]
    %v2263 = vld [vmem:[#allocation6 + $0xa0] sm:$0xff]
    %v2264 = vld [vmem:[#allocation6 + $0xa8] sm:$0xff]
    %v2265 = vld [vmem:[#allocation6 + $0xb0] sm:$0xff]
    %v2266 = vld [vmem:[#allocation6 + $0xb8] sm:$0xff]
    %v2267 = vld [vmem:[#allocation6 + $0xc0] sm:$0xff]
    %v2268 = vld [vmem:[#allocation6 + $0xc8] sm:$0xff]
    %v2269 = vld [vmem:[#allocation6 + $0xd0] sm:$0xff]
    %v2270 = vld [vmem:[#allocation6 + $0xd8] sm:$0xff]
    %v2271 = vld [vmem:[#allocation6 + $0xe0] sm:$0xff]
    %v2272 = vld [vmem:[#allocation6 + $0xe8] sm:$0xff]
    %v2273 = vld [vmem:[#allocation6 + $0xf0] sm:$0xff]
    %v2274 = vld [vmem:[#allocation6 + $0xf8] sm:$0xff]
    %v2307 = vunpack.c.l.b16 %v2243
    %v2308 = vunpack.c.h.b16 %v2243
    %v2309 = vunpack.c.l.b16 %v2244
    %v2310 = vunpack.c.h.b16 %v2244
    %v2311 = vunpack.c.l.b16 %v2245
    %v2312 = vunpack.c.h.b16 %v2245
    %v2313 = vunpack.c.l.b16 %v2246
    %v2314 = vunpack.c.h.b16 %v2246
    %v2315 = vunpack.c.l.b16 %v2247
    %v2316 = vunpack.c.h.b16 %v2247
    %v2317 = vunpack.c.l.b16 %v2248
    %v2318 = vunpack.c.h.b16 %v2248
    %v2319 = vunpack.c.l.b16 %v2249
    %v2320 = vunpack.c.h.b16 %v2249
    %v2321 = vunpack.c.l.b16 %v2250
    %v2322 = vunpack.c.h.b16 %v2250
    %v2323 = vunpack.c.l.b16 %v2251
    %v2324 = vunpack.c.h.b16 %v2251
    %v2325 = vunpack.c.l.b16 %v2252
    %v2326 = vunpack.c.h.b16 %v2252
    %v2327 = vunpack.c.l.b16 %v2253
    %v2328 = vunpack.c.h.b16 %v2253
    %v2329 = vunpack.c.l.b16 %v2254
    %v2330 = vunpack.c.h.b16 %v2254
    %v2331 = vunpack.c.l.b16 %v2255
    %v2332 = vunpack.c.h.b16 %v2255
    %v2333 = vunpack.c.l.b16 %v2256
    %v2334 = vunpack.c.h.b16 %v2256
    %v2335 = vunpack.c.l.b16 %v2257
    %v2336 = vunpack.c.h.b16 %v2257
    %v2337 = vunpack.c.l.b16 %v2258
    %v2338 = vunpack.c.h.b16 %v2258
    %v2339 = vunpack.c.l.b16 %v2259
    %v2340 = vunpack.c.h.b16 %v2259
    %v2341 = vunpack.c.l.b16 %v2260
    %v2342 = vunpack.c.h.b16 %v2260
    %v2343 = vunpack.c.l.b16 %v2261
    %v2344 = vunpack.c.h.b16 %v2261
    %v2345 = vunpack.c.l.b16 %v2262
    %v2346 = vunpack.c.h.b16 %v2262
    %v2347 = vunpack.c.l.b16 %v2263
    %v2348 = vunpack.c.h.b16 %v2263
    %v2349 = vunpack.c.l.b16 %v2264
    %v2350 = vunpack.c.h.b16 %v2264
    %v2351 = vunpack.c.l.b16 %v2265
    %v2352 = vunpack.c.h.b16 %v2265
    %v2353 = vunpack.c.l.b16 %v2266
    %v2354 = vunpack.c.h.b16 %v2266
    %v2355 = vunpack.c.l.b16 %v2267
    %v2356 = vunpack.c.h.b16 %v2267
    %v2357 = vunpack.c.l.b16 %v2268
    %v2358 = vunpack.c.h.b16 %v2268
    %v2359 = vunpack.c.l.b16 %v2269
    %v2360 = vunpack.c.h.b16 %v2269
    %v2361 = vunpack.c.l.b16 %v2270
    %v2362 = vunpack.c.h.b16 %v2270
    %v2363 = vunpack.c.l.b16 %v2271
    %v2364 = vunpack.c.h.b16 %v2271
    %v2365 = vunpack.c.l.b16 %v2272
    %v2366 = vunpack.c.h.b16 %v2272
    %v2367 = vunpack.c.l.b16 %v2273
    %v2368 = vunpack.c.h.b16 %v2273
    %v2369 = vunpack.c.l.b16 %v2274
    %v2370 = vunpack.c.h.b16 %v2274
    %v2371 = vpack.c.b16 %v2311, %v2307
    %v2372 = vpack.c.b16 %v2312, %v2308
    %v2373 = vpack.c.b16 %v2313, %v2309
    %v2374 = vpack.c.b16 %v2314, %v2310
    %v2375 = vpack.c.b16 %v2319, %v2315
    %v2376 = vpack.c.b16 %v2320, %v2316
    %v2377 = vpack.c.b16 %v2321, %v2317
    %v2378 = vpack.c.b16 %v2322, %v2318
    %v2379 = vpack.c.b16 %v2327, %v2323
    %v2380 = vpack.c.b16 %v2328, %v2324
    %v2381 = vpack.c.b16 %v2329, %v2325
    %v2382 = vpack.c.b16 %v2330, %v2326
    %v2383 = vpack.c.b16 %v2335, %v2331
    %v2384 = vpack.c.b16 %v2336, %v2332
    %v2385 = vpack.c.b16 %v2337, %v2333
    %v2386 = vpack.c.b16 %v2338, %v2334
    %v2387 = vpack.c.b16 %v2343, %v2339
    %v2388 = vpack.c.b16 %v2344, %v2340
    %v2389 = vpack.c.b16 %v2345, %v2341
    %v2390 = vpack.c.b16 %v2346, %v2342
    %v2391 = vpack.c.b16 %v2351, %v2347
    %v2392 = vpack.c.b16 %v2352, %v2348
    %v2393 = vpack.c.b16 %v2353, %v2349
    %v2394 = vpack.c.b16 %v2354, %v2350
    %v2395 = vpack.c.b16 %v2359, %v2355
    %v2396 = vpack.c.b16 %v2360, %v2356
    %v2397 = vpack.c.b16 %v2361, %v2357
    %v2398 = vpack.c.b16 %v2362, %v2358
    %v2399 = vpack.c.b16 %v2367, %v2363
    %v2400 = vpack.c.b16 %v2368, %v2364
    %v2401 = vpack.c.b16 %v2369, %v2365
    %v2402 = vpack.c.b16 %v2370, %v2366
    %2435 = vmatpush.bf16.msra.mxu0 %v2399
    %2436 = vmatpush.bf16.msra.mxu0 %v2395
    %2437 = vmatpush.bf16.msra.mxu0 %v2391
    %2438 = vmatpush.bf16.msra.mxu0 %v2387
    %2439 = vmatpush.bf16.msra.mxu0 %v2383
    %2440 = vmatpush.bf16.msra.mxu0 %v2379
    %2441 = vmatpush.bf16.msra.mxu0 %v2375
    %2442 = vmatpush.bf16.msra.mxu0 %v2371
    %2443 = vmatmul.bf16.gmra.mxu0 %v2242
    %v2444 = vpop.f32.mrf.mxu0
    %v2445 = vadd.f32 0.0, %v2444
    %v2446 = vpop.f32.mrf.mxu0
    %2447 = vdwg.mxu0
    %2448 = vmatpush.bf16.msra.mxu0 %v2400
    %2449 = vmatpush.bf16.msra.mxu0 %v2396
    %2450 = vmatpush.bf16.msra.mxu0 %v2392
    %2451 = vmatpush.bf16.msra.mxu0 %v2388
    %2452 = vmatpush.bf16.msra.mxu0 %v2384
    %2453 = vmatpush.bf16.msra.mxu0 %v2380
    %2454 = vmatpush.bf16.msra.mxu0 %v2376
    %2455 = vmatpush.bf16.msra.mxu0 %v2372
    %2456 = vmatmul.bf16.gmra.mxu0 %v2242
    %v2457 = vpop.f32.mrf.mxu0
    %v2458 = vadd.f32 0.0, %v2457
    %v2459 = vpop.f32.mrf.mxu0
    %2460 = vdwg.mxu0
    %2461 = vmatpush.bf16.msra.mxu0 %v2401
    %2462 = vmatpush.bf16.msra.mxu0 %v2397
    %2463 = vmatpush.bf16.msra.mxu0 %v2393
    %2464 = vmatpush.bf16.msra.mxu0 %v2389
    %2465 = vmatpush.bf16.msra.mxu0 %v2385
    %2466 = vmatpush.bf16.msra.mxu0 %v2381
    %2467 = vmatpush.bf16.msra.mxu0 %v2377
    %2468 = vmatpush.bf16.msra.mxu0 %v2373
    %2469 = vmatmul.bf16.gmra.mxu0 %v2242
    %v2470 = vpop.f32.mrf.mxu0
    %v2471 = vadd.f32 0.0, %v2470
    %v2472 = vpop.f32.mrf.mxu0
    %2473 = vdwg.mxu0
    %2474 = vmatpush.bf16.msra.mxu0 %v2402
    %2475 = vmatpush.bf16.msra.mxu0 %v2398
    %2476 = vmatpush.bf16.msra.mxu0 %v2394
    %2477 = vmatpush.bf16.msra.mxu0 %v2390
    %2478 = vmatpush.bf16.msra.mxu0 %v2386
    %2479 = vmatpush.bf16.msra.mxu0 %v2382
    %2480 = vmatpush.bf16.msra.mxu0 %v2378
    %2481 = vmatpush.bf16.msra.mxu0 %v2374
    %2482 = vmatmul.bf16.gmra.mxu0 %v2242
    %v2483 = vpop.f32.mrf.mxu0
    %v2484 = vadd.f32 0.0, %v2483
    %v2485 = vpop.f32.mrf.mxu0
    %2486 = vdwg.mxu0
    %v2487 = vadd.f32 %v2238, %v2445
    %v2488 = vadd.f32 %v2239, %v2458
    %v2489 = vadd.f32 %v2240, %v2471
    %v2490 = vadd.f32 %v2241, %v2484
    %v2491 = vxor.u32 %v2487, 2147483648
    %v2492 = vxor.u32 %v2488, 2147483648
    %v2493 = vxor.u32 %v2489, 2147483648
    %v2494 = vmul.f32 %v2491, 1.442695
    %v2495 = vpow.pop %v2494
    %v2496 = vmul.f32 %v2492, 1.442695
    %v2497 = vpow.pop %v2496
    %v2498 = vmul.f32 %v2493, 1.442695
    %v2499 = vpow.pop %v2498
    %v2500 = vadd.f32 %v2495, 1.0
    %v2501 = vadd.f32 %v2497, 1.0
    %v2502 = vadd.f32 %v2499, 1.0
    %v2503 = vrcp.pop %v2500
    %v2504 = vmul.f32 %v2500, %v2503
    %v2505 = vsub.f32 1.0, %v2504
    %v2506 = vmul.f32 %v2503, %v2505
    %v2507 = vadd.f32 %v2503, %v2506
    %vm2508 = vweird.f32 %v2500
    %vm2509 = vweird.f32 %v2503
    %vm2510 = vmor %vm2508, %vm2509
    %v2511 = vsel %vm2510, %v2503, %v2507
    %v2512 = vand.u32 2147483647, %v2500
    %vm2513 = vcmp.eq.f32.partialorder %v2512, 8.507059e+37
    %v2514 = vand.u32 %v2500, 2147483648
    %v2515 = vor.u32 1.1754944e-38, %v2514
    %v2516 = vsel %vm2513, %v2515, %v2511
    %v2517 = vmul.f32 1.0, %v2516
    %v2518 = vrcp.pop %v2501
    %v2519 = vmul.f32 %v2501, %v2518
    %v2520 = vsub.f32 1.0, %v2519
    %v2521 = vmul.f32 %v2518, %v2520
    %v2522 = vadd.f32 %v2518, %v2521
    %vm2523 = vweird.f32 %v2501
    %vm2524 = vweird.f32 %v2518
    %vm2525 = vmor %vm2523, %vm2524
    %v2526 = vsel %vm2525, %v2518, %v2522
    %v2527 = vand.u32 2147483647, %v2501
    %vm2528 = vcmp.eq.f32.partialorder %v2527, 8.507059e+37
    %v2529 = vand.u32 %v2501, 2147483648
    %v2530 = vor.u32 1.1754944e-38, %v2529
    %v2531 = vsel %vm2528, %v2530, %v2526
    %v2532 = vmul.f32 1.0, %v2531
    %v2533 = vrcp.pop %v2502
    %v2534 = vmul.f32 %v2502, %v2533
    %v2535 = vsub.f32 1.0, %v2534
    %v2536 = vmul.f32 %v2533, %v2535
    %v2537 = vadd.f32 %v2533, %v2536
    %vm2538 = vweird.f32 %v2502
    %vm2539 = vweird.f32 %v2533
    %vm2540 = vmor %vm2538, %vm2539
    %v2541 = vsel %vm2540, %v2533, %v2537
    %v2542 = vand.u32 2147483647, %v2502
    %vm2543 = vcmp.eq.f32.partialorder %v2542, 8.507059e+37
    %v2544 = vand.u32 %v2502, 2147483648
    %v2545 = vor.u32 1.1754944e-38, %v2544
    %v2546 = vsel %vm2543, %v2545, %v2541
    %v2547 = vmul.f32 1.0, %v2546
    %v2548 = vtanh.pop %v2490
    %v2549 = vmul.f32 %v2532, %v2230
    %v2550 = vmul.f32 %v2517, %v2548
    %v2551 = vadd.f32 %v2549, %v2550
    %v2552 = vtanh.pop %v2551
    %v2553 = vmul.f32 %v2547, %v2552
    %s2554 = scalar_lea.vmem [#allocation4], 48
    %2555 = vst [vmem:[%s2554] sm:$0xff] %v2553
    %s2556 = smul.u32 7, 4
    %s2557 = smul.addr %s2556, 8
    %s2558 = scalar_lea.vmem [#allocation5], %s2557
    %v2559 = vld [vmem:[%s2558] sm:$0xff]
    %v2560 = vld [vmem:[%s2558 + $0x8] sm:$0xff]
    %v2561 = vld [vmem:[%s2558 + $0x10] sm:$0xff]
    %v2562 = vld [vmem:[%s2558 + $0x18] sm:$0xff]
    %v2563 = vpack.c.bf16 %v2553, %v2553
    %v2564 = vld [vmem:[#allocation6] sm:$0xff]
    %v2565 = vld [vmem:[#allocation6 + $0x8] sm:$0xff]
    %v2566 = vld [vmem:[#allocation6 + $0x10] sm:$0xff]
    %v2567 = vld [vmem:[#allocation6 + $0x18] sm:$0xff]
    %v2568 = vld [vmem:[#allocation6 + $0x20] sm:$0xff]
    %v2569 = vld [vmem:[#allocation6 + $0x28] sm:$0xff]
    %v2570 = vld [vmem:[#allocation6 + $0x30] sm:$0xff]
    %v2571 = vld [vmem:[#allocation6 + $0x38] sm:$0xff]
    %v2572 = vld [vmem:[#allocation6 + $0x40] sm:$0xff]
    %v2573 = vld [vmem:[#allocation6 + $0x48] sm:$0xff]
    %v2574 = vld [vmem:[#allocation6 + $0x50] sm:$0xff]
    %v2575 = vld [vmem:[#allocation6 + $0x58] sm:$0xff]
    %v2576 = vld [vmem:[#allocation6 + $0x60] sm:$0xff]
    %v2577 = vld [vmem:[#allocation6 + $0x68] sm:$0xff]
    %v2578 = vld [vmem:[#allocation6 + $0x70] sm:$0xff]
    %v2579 = vld [vmem:[#allocation6 + $0x78] sm:$0xff]
    %v2580 = vld [vmem:[#allocation6 + $0x80] sm:$0xff]
    %v2581 = vld [vmem:[#allocation6 + $0x88] sm:$0xff]
    %v2582 = vld [vmem:[#allocation6 + $0x90] sm:$0xff]
    %v2583 = vld [vmem:[#allocation6 + $0x98] sm:$0xff]
    %v2584 = vld [vmem:[#allocation6 + $0xa0] sm:$0xff]
    %v2585 = vld [vmem:[#allocation6 + $0xa8] sm:$0xff]
    %v2586 = vld [vmem:[#allocation6 + $0xb0] sm:$0xff]
    %v2587 = vld [vmem:[#allocation6 + $0xb8] sm:$0xff]
    %v2588 = vld [vmem:[#allocation6 + $0xc0] sm:$0xff]
    %v2589 = vld [vmem:[#allocation6 + $0xc8] sm:$0xff]
    %v2590 = vld [vmem:[#allocation6 + $0xd0] sm:$0xff]
    %v2591 = vld [vmem:[#allocation6 + $0xd8] sm:$0xff]
    %v2592 = vld [vmem:[#allocation6 + $0xe0] sm:$0xff]
    %v2593 = vld [vmem:[#allocation6 + $0xe8] sm:$0xff]
    %v2594 = vld [vmem:[#allocation6 + $0xf0] sm:$0xff]
    %v2595 = vld [vmem:[#allocation6 + $0xf8] sm:$0xff]
    %v2628 = vunpack.c.l.b16 %v2564
    %v2629 = vunpack.c.h.b16 %v2564
    %v2630 = vunpack.c.l.b16 %v2565
    %v2631 = vunpack.c.h.b16 %v2565
    %v2632 = vunpack.c.l.b16 %v2566
    %v2633 = vunpack.c.h.b16 %v2566
    %v2634 = vunpack.c.l.b16 %v2567
    %v2635 = vunpack.c.h.b16 %v2567
    %v2636 = vunpack.c.l.b16 %v2568
    %v2637 = vunpack.c.h.b16 %v2568
    %v2638 = vunpack.c.l.b16 %v2569
    %v2639 = vunpack.c.h.b16 %v2569
    %v2640 = vunpack.c.l.b16 %v2570
    %v2641 = vunpack.c.h.b16 %v2570
    %v2642 = vunpack.c.l.b16 %v2571
    %v2643 = vunpack.c.h.b16 %v2571
    %v2644 = vunpack.c.l.b16 %v2572
    %v2645 = vunpack.c.h.b16 %v2572
    %v2646 = vunpack.c.l.b16 %v2573
    %v2647 = vunpack.c.h.b16 %v2573
    %v2648 = vunpack.c.l.b16 %v2574
    %v2649 = vunpack.c.h.b16 %v2574
    %v2650 = vunpack.c.l.b16 %v2575
    %v2651 = vunpack.c.h.b16 %v2575
    %v2652 = vunpack.c.l.b16 %v2576
    %v2653 = vunpack.c.h.b16 %v2576
    %v2654 = vunpack.c.l.b16 %v2577
    %v2655 = vunpack.c.h.b16 %v2577
    %v2656 = vunpack.c.l.b16 %v2578
    %v2657 = vunpack.c.h.b16 %v2578
    %v2658 = vunpack.c.l.b16 %v2579
    %v2659 = vunpack.c.h.b16 %v2579
    %v2660 = vunpack.c.l.b16 %v2580
    %v2661 = vunpack.c.h.b16 %v2580
    %v2662 = vunpack.c.l.b16 %v2581
    %v2663 = vunpack.c.h.b16 %v2581
    %v2664 = vunpack.c.l.b16 %v2582
    %v2665 = vunpack.c.h.b16 %v2582
    %v2666 = vunpack.c.l.b16 %v2583
    %v2667 = vunpack.c.h.b16 %v2583
    %v2668 = vunpack.c.l.b16 %v2584
    %v2669 = vunpack.c.h.b16 %v2584
    %v2670 = vunpack.c.l.b16 %v2585
    %v2671 = vunpack.c.h.b16 %v2585
    %v2672 = vunpack.c.l.b16 %v2586
    %v2673 = vunpack.c.h.b16 %v2586
    %v2674 = vunpack.c.l.b16 %v2587
    %v2675 = vunpack.c.h.b16 %v2587
    %v2676 = vunpack.c.l.b16 %v2588
    %v2677 = vunpack.c.h.b16 %v2588
    %v2678 = vunpack.c.l.b16 %v2589
    %v2679 = vunpack.c.h.b16 %v2589
    %v2680 = vunpack.c.l.b16 %v2590
    %v2681 = vunpack.c.h.b16 %v2590
    %v2682 = vunpack.c.l.b16 %v2591
    %v2683 = vunpack.c.h.b16 %v2591
    %v2684 = vunpack.c.l.b16 %v2592
    %v2685 = vunpack.c.h.b16 %v2592
    %v2686 = vunpack.c.l.b16 %v2593
    %v2687 = vunpack.c.h.b16 %v2593
    %v2688 = vunpack.c.l.b16 %v2594
    %v2689 = vunpack.c.h.b16 %v2594
    %v2690 = vunpack.c.l.b16 %v2595
    %v2691 = vunpack.c.h.b16 %v2595
    %v2692 = vpack.c.b16 %v2632, %v2628
    %v2693 = vpack.c.b16 %v2633, %v2629
    %v2694 = vpack.c.b16 %v2634, %v2630
    %v2695 = vpack.c.b16 %v2635, %v2631
    %v2696 = vpack.c.b16 %v2640, %v2636
    %v2697 = vpack.c.b16 %v2641, %v2637
    %v2698 = vpack.c.b16 %v2642, %v2638
    %v2699 = vpack.c.b16 %v2643, %v2639
    %v2700 = vpack.c.b16 %v2648, %v2644
    %v2701 = vpack.c.b16 %v2649, %v2645
    %v2702 = vpack.c.b16 %v2650, %v2646
    %v2703 = vpack.c.b16 %v2651, %v2647
    %v2704 = vpack.c.b16 %v2656, %v2652
    %v2705 = vpack.c.b16 %v2657, %v2653
    %v2706 = vpack.c.b16 %v2658, %v2654
    %v2707 = vpack.c.b16 %v2659, %v2655
    %v2708 = vpack.c.b16 %v2664, %v2660
    %v2709 = vpack.c.b16 %v2665, %v2661
    %v2710 = vpack.c.b16 %v2666, %v2662
    %v2711 = vpack.c.b16 %v2667, %v2663
    %v2712 = vpack.c.b16 %v2672, %v2668
    %v2713 = vpack.c.b16 %v2673, %v2669
    %v2714 = vpack.c.b16 %v2674, %v2670
    %v2715 = vpack.c.b16 %v2675, %v2671
    %v2716 = vpack.c.b16 %v2680, %v2676
    %v2717 = vpack.c.b16 %v2681, %v2677
    %v2718 = vpack.c.b16 %v2682, %v2678
    %v2719 = vpack.c.b16 %v2683, %v2679
    %v2720 = vpack.c.b16 %v2688, %v2684
    %v2721 = vpack.c.b16 %v2689, %v2685
    %v2722 = vpack.c.b16 %v2690, %v2686
    %v2723 = vpack.c.b16 %v2691, %v2687
    %2756 = vmatpush.bf16.msra.mxu0 %v2720
    %2757 = vmatpush.bf16.msra.mxu0 %v2716
    %2758 = vmatpush.bf16.msra.mxu0 %v2712
    %2759 = vmatpush.bf16.msra.mxu0 %v2708
    %2760 = vmatpush.bf16.msra.mxu0 %v2704
    %2761 = vmatpush.bf16.msra.mxu0 %v2700
    %2762 = vmatpush.bf16.msra.mxu0 %v2696
    %2763 = vmatpush.bf16.msra.mxu0 %v2692
    %2764 = vmatmul.bf16.gmra.mxu0 %v2563
    %v2765 = vpop.f32.mrf.mxu0
    %v2766 = vadd.f32 0.0, %v2765
    %v2767 = vpop.f32.mrf.mxu0
    %2768 = vdwg.mxu0
    %2769 = vmatpush.bf16.msra.mxu0 %v2721
    %2770 = vmatpush.bf16.msra.mxu0 %v2717
    %2771 = vmatpush.bf16.msra.mxu0 %v2713
    %2772 = vmatpush.bf16.msra.mxu0 %v2709
    %2773 = vmatpush.bf16.msra.mxu0 %v2705
    %2774 = vmatpush.bf16.msra.mxu0 %v2701
    %2775 = vmatpush.bf16.msra.mxu0 %v2697
    %2776 = vmatpush.bf16.msra.mxu0 %v2693
    %2777 = vmatmul.bf16.gmra.mxu0 %v2563
    %v2778 = vpop.f32.mrf.mxu0
    %v2779 = vadd.f32 0.0, %v2778
    %v2780 = vpop.f32.mrf.mxu0
    %2781 = vdwg.mxu0
    %2782 = vmatpush.bf16.msra.mxu0 %v2722
    %2783 = vmatpush.bf16.msra.mxu0 %v2718
    %2784 = vmatpush.bf16.msra.mxu0 %v2714
    %2785 = vmatpush.bf16.msra.mxu0 %v2710
    %2786 = vmatpush.bf16.msra.mxu0 %v2706
    %2787 = vmatpush.bf16.msra.mxu0 %v2702
    %2788 = vmatpush.bf16.msra.mxu0 %v2698
    %2789 = vmatpush.bf16.msra.mxu0 %v2694
    %2790 = vmatmul.bf16.gmra.mxu0 %v2563
    %v2791 = vpop.f32.mrf.mxu0
    %v2792 = vadd.f32 0.0, %v2791
    %v2793 = vpop.f32.mrf.mxu0
    %2794 = vdwg.mxu0
    %2795 = vmatpush.bf16.msra.mxu0 %v2723
    %2796 = vmatpush.bf16.msra.mxu0 %v2719
    %2797 = vmatpush.bf16.msra.mxu0 %v2715
    %2798 = vmatpush.bf16.msra.mxu0 %v2711
    %2799 = vmatpush.bf16.msra.mxu0 %v2707
    %2800 = vmatpush.bf16.msra.mxu0 %v2703
    %2801 = vmatpush.bf16.msra.mxu0 %v2699
    %2802 = vmatpush.bf16.msra.mxu0 %v2695
    %2803 = vmatmul.bf16.gmra.mxu0 %v2563
    %v2804 = vpop.f32.mrf.mxu0
    %v2805 = vadd.f32 0.0, %v2804
    %v2806 = vpop.f32.mrf.mxu0
    %2807 = vdwg.mxu0
    %v2808 = vadd.f32 %v2559, %v2766
    %v2809 = vadd.f32 %v2560, %v2779
    %v2810 = vadd.f32 %v2561, %v2792
    %v2811 = vadd.f32 %v2562, %v2805
    %v2812 = vxor.u32 %v2808, 2147483648
    %v2813 = vxor.u32 %v2809, 2147483648
    %v2814 = vxor.u32 %v2810, 2147483648
    %v2815 = vmul.f32 %v2812, 1.442695
    %v2816 = vpow.pop %v2815
    %v2817 = vmul.f32 %v2813, 1.442695
    %v2818 = vpow.pop %v2817
    %v2819 = vmul.f32 %v2814, 1.442695
    %v2820 = vpow.pop %v2819
    %v2821 = vadd.f32 %v2816, 1.0
    %v2822 = vadd.f32 %v2818, 1.0
    %v2823 = vadd.f32 %v2820, 1.0
    %v2824 = vrcp.pop %v2821
    %v2825 = vmul.f32 %v2821, %v2824
    %v2826 = vsub.f32 1.0, %v2825
    %v2827 = vmul.f32 %v2824, %v2826
    %v2828 = vadd.f32 %v2824, %v2827
    %vm2829 = vweird.f32 %v2821
    %vm2830 = vweird.f32 %v2824
    %vm2831 = vmor %vm2829, %vm2830
    %v2832 = vsel %vm2831, %v2824, %v2828
    %v2833 = vand.u32 2147483647, %v2821
    %vm2834 = vcmp.eq.f32.partialorder %v2833, 8.507059e+37
    %v2835 = vand.u32 %v2821, 2147483648
    %v2836 = vor.u32 1.1754944e-38, %v2835
    %v2837 = vsel %vm2834, %v2836, %v2832
    %v2838 = vmul.f32 1.0, %v2837
    %v2839 = vrcp.pop %v2822
    %v2840 = vmul.f32 %v2822, %v2839
    %v2841 = vsub.f32 1.0, %v2840
    %v2842 = vmul.f32 %v2839, %v2841
    %v2843 = vadd.f32 %v2839, %v2842
    %vm2844 = vweird.f32 %v2822
    %vm2845 = vweird.f32 %v2839
    %vm2846 = vmor %vm2844, %vm2845
    %v2847 = vsel %vm2846, %v2839, %v2843
    %v2848 = vand.u32 2147483647, %v2822
    %vm2849 = vcmp.eq.f32.partialorder %v2848, 8.507059e+37
    %v2850 = vand.u32 %v2822, 2147483648
    %v2851 = vor.u32 1.1754944e-38, %v2850
    %v2852 = vsel %vm2849, %v2851, %v2847
    %v2853 = vmul.f32 1.0, %v2852
    %v2854 = vrcp.pop %v2823
    %v2855 = vmul.f32 %v2823, %v2854
    %v2856 = vsub.f32 1.0, %v2855
    %v2857 = vmul.f32 %v2854, %v2856
    %v2858 = vadd.f32 %v2854, %v2857
    %vm2859 = vweird.f32 %v2823
    %vm2860 = vweird.f32 %v2854
    %vm2861 = vmor %vm2859, %vm2860
    %v2862 = vsel %vm2861, %v2854, %v2858
    %v2863 = vand.u32 2147483647, %v2823
    %vm2864 = vcmp.eq.f32.partialorder %v2863, 8.507059e+37
    %v2865 = vand.u32 %v2823, 2147483648
    %v2866 = vor.u32 1.1754944e-38, %v2865
    %v2867 = vsel %vm2864, %v2866, %v2862
    %v2868 = vmul.f32 1.0, %v2867
    %v2869 = vtanh.pop %v2811
    %v2870 = vmul.f32 %v2853, %v2551
    %v2871 = vmul.f32 %v2838, %v2869
    %v2872 = vadd.f32 %v2870, %v2871
    %v2873 = vtanh.pop %v2872
    %v2874 = vmul.f32 %v2868, %v2873
    %s2875 = scalar_lea.vmem [#allocation4], 56
    %2876 = vst [vmem:[%s2875] sm:$0xff] %v2874
    %2877 = vst [vmem:[#allocation2] sm:$0xff] %v2874
    %2878 = vst [vmem:[#allocation3] sm:$0xff] %v2872
    %s2879 = scalar_lea.vmem [#allocation2], 8
    %v2880 = vld [vmem:[%s2879] sm:$0xff]
    %s2881 = scalar_lea.vmem [#allocation3], 8
    %v2882 = vld [vmem:[%s2881] sm:$0xff]
    %v2883 = vld [vmem:[#allocation4] sm:$0xff]
    %v2884 = vld [vmem:[#allocation4 + $0x8] sm:$0xff]
    %v2885 = vld [vmem:[#allocation4 + $0x10] sm:$0xff]
    %v2886 = vld [vmem:[#allocation4 + $0x18] sm:$0xff]
    %v2887 = vld [vmem:[#allocation4 + $0x20] sm:$0xff]
    %v2888 = vld [vmem:[#allocation4 + $0x28] sm:$0xff]
    %v2889 = vld [vmem:[#allocation4 + $0x30] sm:$0xff]
    %v2890 = vld [vmem:[#allocation4 + $0x38] sm:$0xff]
    %v2891 = vpack.c.bf16 %v2884, %v2883
    %v2892 = vpack.c.bf16 %v2886, %v2885
    %v2893 = vpack.c.bf16 %v2888, %v2887
    %v2894 = vpack.c.bf16 %v2890, %v2889
    %v2895 = vld [vmem:[#allocation8] sm:$0xff]
    %v2896 = vld [vmem:[#allocation8 + $0x8] sm:$0xff]
    %v2897 = vld [vmem:[#allocation8 + $0x10] sm:$0xff]
    %v2898 = vld [vmem:[#allocation8 + $0x18] sm:$0xff]
    %v2899 = vld [vmem:[#allocation8 + $0x20] sm:$0xff]
    %v2900 = vld [vmem:[#allocation8 + $0x28] sm:$0xff]
    %v2901 = vld [vmem:[#allocation8 + $0x30] sm:$0xff]
    %v2902 = vld [vmem:[#allocation8 + $0x38] sm:$0xff]
    %v2903 = vld [vmem:[#allocation8 + $0x40] sm:$0xff]
    %v2904 = vld [vmem:[#allocation8 + $0x48] sm:$0xff]
    %v2905 = vld [vmem:[#allocation8 + $0x50] sm:$0xff]
    %v2906 = vld [vmem:[#allocation8 + $0x58] sm:$0xff]
    %v2907 = vld [vmem:[#allocation8 + $0x60] sm:$0xff]
    %v2908 = vld [vmem:[#allocation8 + $0x68] sm:$0xff]
    %v2909 = vld [vmem:[#allocation8 + $0x70] sm:$0xff]
    %v2910 = vld [vmem:[#allocation8 + $0x78] sm:$0xff]
    %v2911 = vld [vmem:[#allocation8 + $0x80] sm:$0xff]
    %v2912 = vld [vmem:[#allocation8 + $0x88] sm:$0xff]
    %v2913 = vld [vmem:[#allocation8 + $0x90] sm:$0xff]
    %v2914 = vld [vmem:[#allocation8 + $0x98] sm:$0xff]
    %v2915 = vld [vmem:[#allocation8 + $0xa0] sm:$0xff]
    %v2916 = vld [vmem:[#allocation8 + $0xa8] sm:$0xff]
    %v2917 = vld [vmem:[#allocation8 + $0xb0] sm:$0xff]
    %v2918 = vld [vmem:[#allocation8 + $0xb8] sm:$0xff]
    %v2919 = vld [vmem:[#allocation8 + $0xc0] sm:$0xff]
    %v2920 = vld [vmem:[#allocation8 + $0xc8] sm:$0xff]
    %v2921 = vld [vmem:[#allocation8 + $0xd0] sm:$0xff]
    %v2922 = vld [vmem:[#allocation8 + $0xd8] sm:$0xff]
    %v2923 = vld [vmem:[#allocation8 + $0xe0] sm:$0xff]
    %v2924 = vld [vmem:[#allocation8 + $0xe8] sm:$0xff]
    %v2925 = vld [vmem:[#allocation8 + $0xf0] sm:$0xff]
    %v2926 = vld [vmem:[#allocation8 + $0xf8] sm:$0xff]
    %v2927 = vld [vmem:[%s6] sm:$0xf]
    %v2929 = vperm.slane %v2927, 0
    %v2930 = vperm.slane %v2927, 1
    %v2931 = vperm.slane %v2927, 2
    %v2932 = vperm.slane %v2927, 3
    %v2969 = vunpack.c.l.b16 %v2895
    %v2970 = vunpack.c.h.b16 %v2895
    %v2971 = vunpack.c.l.b16 %v2896
    %v2972 = vunpack.c.h.b16 %v2896
    %v2973 = vunpack.c.l.b16 %v2897
    %v2974 = vunpack.c.h.b16 %v2897
    %v2975 = vunpack.c.l.b16 %v2898
    %v2976 = vunpack.c.h.b16 %v2898
    %v2977 = vunpack.c.l.b16 %v2899
    %v2978 = vunpack.c.h.b16 %v2899
    %v2979 = vunpack.c.l.b16 %v2900
    %v2980 = vunpack.c.h.b16 %v2900
    %v2981 = vunpack.c.l.b16 %v2901
    %v2982 = vunpack.c.h.b16 %v2901
    %v2983 = vunpack.c.l.b16 %v2902
    %v2984 = vunpack.c.h.b16 %v2902
    %v2985 = vunpack.c.l.b16 %v2903
    %v2986 = vunpack.c.h.b16 %v2903
    %v2987 = vunpack.c.l.b16 %v2904
    %v2988 = vunpack.c.h.b16 %v2904
    %v2989 = vunpack.c.l.b16 %v2905
    %v2990 = vunpack.c.h.b16 %v2905
    %v2991 = vunpack.c.l.b16 %v2906
    %v2992 = vunpack.c.h.b16 %v2906
    %v2993 = vunpack.c.l.b16 %v2907
    %v2994 = vunpack.c.h.b16 %v2907
    %v2995 = vunpack.c.l.b16 %v2908
    %v2996 = vunpack.c.h.b16 %v2908
    %v2997 = vunpack.c.l.b16 %v2909
    %v2998 = vunpack.c.h.b16 %v2909
    %v2999 = vunpack.c.l.b16 %v2910
    %v3000 = vunpack.c.h.b16 %v2910
    %v3001 = vunpack.c.l.b16 %v2911
    %v3002 = vunpack.c.h.b16 %v2911
    %v3003 = vunpack.c.l.b16 %v2912
    %v3004 = vunpack.c.h.b16 %v2912
    %v3005 = vunpack.c.l.b16 %v2913
    %v3006 = vunpack.c.h.b16 %v2913
    %v3007 = vunpack.c.l.b16 %v2914
    %v3008 = vunpack.c.h.b16 %v2914
    %v3009 = vunpack.c.l.b16 %v2915
    %v3010 = vunpack.c.h.b16 %v2915
    %v3011 = vunpack.c.l.b16 %v2916
    %v3012 = vunpack.c.h.b16 %v2916
    %v3013 = vunpack.c.l.b16 %v2917
    %v3014 = vunpack.c.h.b16 %v2917
    %v3015 = vunpack.c.l.b16 %v2918
    %v3016 = vunpack.c.h.b16 %v2918
    %v3017 = vunpack.c.l.b16 %v2919
    %v3018 = vunpack.c.h.b16 %v2919
    %v3019 = vunpack.c.l.b16 %v2920
    %v3020 = vunpack.c.h.b16 %v2920
    %v3021 = vunpack.c.l.b16 %v2921
    %v3022 = vunpack.c.h.b16 %v2921
    %v3023 = vunpack.c.l.b16 %v2922
    %v3024 = vunpack.c.h.b16 %v2922
    %v3025 = vunpack.c.l.b16 %v2923
    %v3026 = vunpack.c.h.b16 %v2923
    %v3027 = vunpack.c.l.b16 %v2924
    %v3028 = vunpack.c.h.b16 %v2924
    %v3029 = vunpack.c.l.b16 %v2925
    %v3030 = vunpack.c.h.b16 %v2925
    %v3031 = vunpack.c.l.b16 %v2926
    %v3032 = vunpack.c.h.b16 %v2926
    %v3033 = vpack.c.b16 %v2973, %v2969
    %v3034 = vpack.c.b16 %v2974, %v2970
    %v3035 = vpack.c.b16 %v2975, %v2971
    %v3036 = vpack.c.b16 %v2976, %v2972
    %v3037 = vpack.c.b16 %v2981, %v2977
    %v3038 = vpack.c.b16 %v2982, %v2978
    %v3039 = vpack.c.b16 %v2983, %v2979
    %v3040 = vpack.c.b16 %v2984, %v2980
    %v3041 = vpack.c.b16 %v2989, %v2985
    %v3042 = vpack.c.b16 %v2990, %v2986
    %v3043 = vpack.c.b16 %v2991, %v2987
    %v3044 = vpack.c.b16 %v2992, %v2988
    %v3045 = vpack.c.b16 %v2997, %v2993
    %v3046 = vpack.c.b16 %v2998, %v2994
    %v3047 = vpack.c.b16 %v2999, %v2995
    %v3048 = vpack.c.b16 %v3000, %v2996
    %v3049 = vpack.c.b16 %v3005, %v3001
    %v3050 = vpack.c.b16 %v3006, %v3002
    %v3051 = vpack.c.b16 %v3007, %v3003
    %v3052 = vpack.c.b16 %v3008, %v3004
    %v3053 = vpack.c.b16 %v3013, %v3009
    %v3054 = vpack.c.b16 %v3014, %v3010
    %v3055 = vpack.c.b16 %v3015, %v3011
    %v3056 = vpack.c.b16 %v3016, %v3012
    %v3057 = vpack.c.b16 %v3021, %v3017
    %v3058 = vpack.c.b16 %v3022, %v3018
    %v3059 = vpack.c.b16 %v3023, %v3019
    %v3060 = vpack.c.b16 %v3024, %v3020
    %v3061 = vpack.c.b16 %v3029, %v3025
    %v3062 = vpack.c.b16 %v3030, %v3026
    %v3063 = vpack.c.b16 %v3031, %v3027
    %v3064 = vpack.c.b16 %v3032, %v3028
    %3097 = vmatpush.bf16.msra.mxu0 %v3061
    %3098 = vmatpush.bf16.msra.mxu0 %v3057
    %3099 = vmatpush.bf16.msra.mxu0 %v3053
    %3100 = vmatpush.bf16.msra.mxu0 %v3049
    %3101 = vmatpush.bf16.msra.mxu0 %v3045
    %3102 = vmatpush.bf16.msra.mxu0 %v3041
    %3103 = vmatpush.bf16.msra.mxu0 %v3037
    %3104 = vmatpush.bf16.msra.mxu0 %v3033
    %3105 = vmatmul.bf16.gmra.mxu0 %v2891
    %v3106 = vpop.f32.mrf.mxu0
    %v3107 = vadd.f32 %v2929, %v3106
    %v3108 = vpop.f32.mrf.mxu0
    %v3109 = vadd.f32 %v2929, %v3108
    %3110 = vmatmul.bf16.gmra.mxu0 %v2892
    %v3111 = vpop.f32.mrf.mxu0
    %v3112 = vadd.f32 %v2929, %v3111
    %v3113 = vpop.f32.mrf.mxu0
    %v3114 = vadd.f32 %v2929, %v3113
    %3115 = vmatmul.bf16.gmra.mxu0 %v2893
    %v3116 = vpop.f32.mrf.mxu0
    %v3117 = vadd.f32 %v2929, %v3116
    %v3118 = vpop.f32.mrf.mxu0
    %v3119 = vadd.f32 %v2929, %v3118
    %3120 = vmatmul.bf16.gmra.mxu0 %v2894
    %v3121 = vpop.f32.mrf.mxu0
    %v3122 = vadd.f32 %v2929, %v3121
    %v3123 = vpop.f32.mrf.mxu0
    %v3124 = vadd.f32 %v2929, %v3123
    %3125 = vdwg.mxu0
    %3126 = vmatpush.bf16.msra.mxu0 %v3062
    %3127 = vmatpush.bf16.msra.mxu0 %v3058
    %3128 = vmatpush.bf16.msra.mxu0 %v3054
    %3129 = vmatpush.bf16.msra.mxu0 %v3050
    %3130 = vmatpush.bf16.msra.mxu0 %v3046
    %3131 = vmatpush.bf16.msra.mxu0 %v3042
    %3132 = vmatpush.bf16.msra.mxu0 %v3038
    %3133 = vmatpush.bf16.msra.mxu0 %v3034
    %3134 = vmatmul.bf16.gmra.mxu0 %v2891
    %v3135 = vpop.f32.mrf.mxu0
    %v3136 = vadd.f32 %v2930, %v3135
    %v3137 = vpop.f32.mrf.mxu0
    %v3138 = vadd.f32 %v2930, %v3137
    %3139 = vmatmul.bf16.gmra.mxu0 %v2892
    %v3140 = vpop.f32.mrf.mxu0
    %v3141 = vadd.f32 %v2930, %v3140
    %v3142 = vpop.f32.mrf.mxu0
    %v3143 = vadd.f32 %v2930, %v3142
    %3144 = vmatmul.bf16.gmra.mxu0 %v2893
    %v3145 = vpop.f32.mrf.mxu0
    %v3146 = vadd.f32 %v2930, %v3145
    %v3147 = vpop.f32.mrf.mxu0
    %v3148 = vadd.f32 %v2930, %v3147
    %3149 = vmatmul.bf16.gmra.mxu0 %v2894
    %v3150 = vpop.f32.mrf.mxu0
    %v3151 = vadd.f32 %v2930, %v3150
    %v3152 = vpop.f32.mrf.mxu0
    %v3153 = vadd.f32 %v2930, %v3152
    %3154 = vdwg.mxu0
    %3155 = vmatpush.bf16.msra.mxu0 %v3063
    %3156 = vmatpush.bf16.msra.mxu0 %v3059
    %3157 = vmatpush.bf16.msra.mxu0 %v3055
    %3158 = vmatpush.bf16.msra.mxu0 %v3051
    %3159 = vmatpush.bf16.msra.mxu0 %v3047
    %3160 = vmatpush.bf16.msra.mxu0 %v3043
    %3161 = vmatpush.bf16.msra.mxu0 %v3039
    %3162 = vmatpush.bf16.msra.mxu0 %v3035
    %3163 = vmatmul.bf16.gmra.mxu0 %v2891
    %v3164 = vpop.f32.mrf.mxu0
    %v3165 = vadd.f32 %v2931, %v3164
    %v3166 = vpop.f32.mrf.mxu0
    %v3167 = vadd.f32 %v2931, %v3166
    %3168 = vmatmul.bf16.gmra.mxu0 %v2892
    %v3169 = vpop.f32.mrf.mxu0
    %v3170 = vadd.f32 %v2931, %v3169
    %v3171 = vpop.f32.mrf.mxu0
    %v3172 = vadd.f32 %v2931, %v3171
    %3173 = vmatmul.bf16.gmra.mxu0 %v2893
    %v3174 = vpop.f32.mrf.mxu0
    %v3175 = vadd.f32 %v2931, %v3174
    %v3176 = vpop.f32.mrf.mxu0
    %v3177 = vadd.f32 %v2931, %v3176
    %3178 = vmatmul.bf16.gmra.mxu0 %v2894
    %v3179 = vpop.f32.mrf.mxu0
    %v3180 = vadd.f32 %v2931, %v3179
    %v3181 = vpop.f32.mrf.mxu0
    %v3182 = vadd.f32 %v2931, %v3181
    %3183 = vdwg.mxu0
    %3184 = vmatpush.bf16.msra.mxu0 %v3064
    %3185 = vmatpush.bf16.msra.mxu0 %v3060
    %3186 = vmatpush.bf16.msra.mxu0 %v3056
    %3187 = vmatpush.bf16.msra.mxu0 %v3052
    %3188 = vmatpush.bf16.msra.mxu0 %v3048
    %3189 = vmatpush.bf16.msra.mxu0 %v3044
    %3190 = vmatpush.bf16.msra.mxu0 %v3040
    %3191 = vmatpush.bf16.msra.mxu0 %v3036
    %3192 = vmatmul.bf16.gmra.mxu0 %v2891
    %v3193 = vpop.f32.mrf.mxu0
    %v3194 = vadd.f32 %v2932, %v3193
    %v3195 = vpop.f32.mrf.mxu0
    %v3196 = vadd.f32 %v2932, %v3195
    %3197 = vmatmul.bf16.gmra.mxu0 %v2892
    %v3198 = vpop.f32.mrf.mxu0
    %v3199 = vadd.f32 %v2932, %v3198
    %v3200 = vpop.f32.mrf.mxu0
    %v3201 = vadd.f32 %v2932, %v3200
    %3202 = vmatmul.bf16.gmra.mxu0 %v2893
    %v3203 = vpop.f32.mrf.mxu0
    %v3204 = vadd.f32 %v2932, %v3203
    %v3205 = vpop.f32.mrf.mxu0
    %v3206 = vadd.f32 %v2932, %v3205
    %3207 = vmatmul.bf16.gmra.mxu0 %v2894
    %v3208 = vpop.f32.mrf.mxu0
    %v3209 = vadd.f32 %v2932, %v3208
    %v3210 = vpop.f32.mrf.mxu0
    %v3211 = vadd.f32 %v2932, %v3210
    %3212 = vdwg.mxu0
    %3213 = vst [vmem:[#allocation5] sm:$0xff] %v3107
    %3214 = vst [vmem:[#allocation5 + $0x8] sm:$0xff] %v3136
    %3215 = vst [vmem:[#allocation5 + $0x10] sm:$0xff] %v3165
    %3216 = vst [vmem:[#allocation5 + $0x18] sm:$0xff] %v3194
    %3217 = vst [vmem:[#allocation5 + $0x20] sm:$0xff] %v3109
    %3218 = vst [vmem:[#allocation5 + $0x28] sm:$0xff] %v3138
    %3219 = vst [vmem:[#allocation5 + $0x30] sm:$0xff] %v3167
    %3220 = vst [vmem:[#allocation5 + $0x38] sm:$0xff] %v3196
    %3221 = vst [vmem:[#allocation5 + $0x40] sm:$0xff] %v3112
    %3222 = vst [vmem:[#allocation5 + $0x48] sm:$0xff] %v3141
    %3223 = vst [vmem:[#allocation5 + $0x50] sm:$0xff] %v3170
    %3224 = vst [vmem:[#allocation5 + $0x58] sm:$0xff] %v3199
    %3225 = vst [vmem:[#allocation5 + $0x60] sm:$0xff] %v3114
    %3226 = vst [vmem:[#allocation5 + $0x68] sm:$0xff] %v3143
    %3227 = vst [vmem:[#allocation5 + $0x70] sm:$0xff] %v3172
    %3228 = vst [vmem:[#allocation5 + $0x78] sm:$0xff] %v3201
    %3229 = vst [vmem:[#allocation5 + $0x80] sm:$0xff] %v3117
    %3230 = vst [vmem:[#allocation5 + $0x88] sm:$0xff] %v3146
    %3231 = vst [vmem:[#allocation5 + $0x90] sm:$0xff] %v3175
    %3232 = vst [vmem:[#allocation5 + $0x98] sm:$0xff] %v3204
    %3233 = vst [vmem:[#allocation5 + $0xa0] sm:$0xff] %v3119
    %3234 = vst [vmem:[#allocation5 + $0xa8] sm:$0xff] %v3148
    %3235 = vst [vmem:[#allocation5 + $0xb0] sm:$0xff] %v3177
    %3236 = vst [vmem:[#allocation5 + $0xb8] sm:$0xff] %v3206
    %3237 = vst [vmem:[#allocation5 + $0xc0] sm:$0xff] %v3122
    %3238 = vst [vmem:[#allocation5 + $0xc8] sm:$0xff] %v3151
    %3239 = vst [vmem:[#allocation5 + $0xd0] sm:$0xff] %v3180
    %3240 = vst [vmem:[#allocation5 + $0xd8] sm:$0xff] %v3209
    %3241 = vst [vmem:[#allocation5 + $0xe0] sm:$0xff] %v3124
    %3242 = vst [vmem:[#allocation5 + $0xe8] sm:$0xff] %v3153
    %3243 = vst [vmem:[#allocation5 + $0xf0] sm:$0xff] %v3182
    %3244 = vst [vmem:[#allocation5 + $0xf8] sm:$0xff] %v3211
    %v3245 = vld [vmem:[%s312] sm:$0xff]
    %v3246 = vld [vmem:[%s312 + $0x8] sm:$0xff]
    %v3247 = vld [vmem:[%s312 + $0x10] sm:$0xff]
    %v3248 = vld [vmem:[%s312 + $0x18] sm:$0xff]
    %v3249 = vpack.c.bf16 %v2880, %v2880
    %v3250 = vld [vmem:[#allocation10] sm:$0xff]
    %v3251 = vld [vmem:[#allocation10 + $0x8] sm:$0xff]
    %v3252 = vld [vmem:[#allocation10 + $0x10] sm:$0xff]
    %v3253 = vld [vmem:[#allocation10 + $0x18] sm:$0xff]
    %v3254 = vld [vmem:[#allocation10 + $0x20] sm:$0xff]
    %v3255 = vld [vmem:[#allocation10 + $0x28] sm:$0xff]
    %v3256 = vld [vmem:[#allocation10 + $0x30] sm:$0xff]
    %v3257 = vld [vmem:[#allocation10 + $0x38] sm:$0xff]
    %v3258 = vld [vmem:[#allocation10 + $0x40] sm:$0xff]
    %v3259 = vld [vmem:[#allocation10 + $0x48] sm:$0xff]
    %v3260 = vld [vmem:[#allocation10 + $0x50] sm:$0xff]
    %v3261 = vld [vmem:[#allocation10 + $0x58] sm:$0xff]
    %v3262 = vld [vmem:[#allocation10 + $0x60] sm:$0xff]
    %v3263 = vld [vmem:[#allocation10 + $0x68] sm:$0xff]
    %v3264 = vld [vmem:[#allocation10 + $0x70] sm:$0xff]
    %v3265 = vld [vmem:[#allocation10 + $0x78] sm:$0xff]
    %v3266 = vld [vmem:[#allocation10 + $0x80] sm:$0xff]
    %v3267 = vld [vmem:[#allocation10 + $0x88] sm:$0xff]
    %v3268 = vld [vmem:[#allocation10 + $0x90] sm:$0xff]
    %v3269 = vld [vmem:[#allocation10 + $0x98] sm:$0xff]
    %v3270 = vld [vmem:[#allocation10 + $0xa0] sm:$0xff]
    %v3271 = vld [vmem:[#allocation10 + $0xa8] sm:$0xff]
    %v3272 = vld [vmem:[#allocation10 + $0xb0] sm:$0xff]
    %v3273 = vld [vmem:[#allocation10 + $0xb8] sm:$0xff]
    %v3274 = vld [vmem:[#allocation10 + $0xc0] sm:$0xff]
    %v3275 = vld [vmem:[#allocation10 + $0xc8] sm:$0xff]
    %v3276 = vld [vmem:[#allocation10 + $0xd0] sm:$0xff]
    %v3277 = vld [vmem:[#allocation10 + $0xd8] sm:$0xff]
    %v3278 = vld [vmem:[#allocation10 + $0xe0] sm:$0xff]
    %v3279 = vld [vmem:[#allocation10 + $0xe8] sm:$0xff]
    %v3280 = vld [vmem:[#allocation10 + $0xf0] sm:$0xff]
    %v3281 = vld [vmem:[#allocation10 + $0xf8] sm:$0xff]
    %v3314 = vunpack.c.l.b16 %v3250
    %v3315 = vunpack.c.h.b16 %v3250
    %v3316 = vunpack.c.l.b16 %v3251
    %v3317 = vunpack.c.h.b16 %v3251
    %v3318 = vunpack.c.l.b16 %v3252
    %v3319 = vunpack.c.h.b16 %v3252
    %v3320 = vunpack.c.l.b16 %v3253
    %v3321 = vunpack.c.h.b16 %v3253
    %v3322 = vunpack.c.l.b16 %v3254
    %v3323 = vunpack.c.h.b16 %v3254
    %v3324 = vunpack.c.l.b16 %v3255
    %v3325 = vunpack.c.h.b16 %v3255
    %v3326 = vunpack.c.l.b16 %v3256
    %v3327 = vunpack.c.h.b16 %v3256
    %v3328 = vunpack.c.l.b16 %v3257
    %v3329 = vunpack.c.h.b16 %v3257
    %v3330 = vunpack.c.l.b16 %v3258
    %v3331 = vunpack.c.h.b16 %v3258
    %v3332 = vunpack.c.l.b16 %v3259
    %v3333 = vunpack.c.h.b16 %v3259
    %v3334 = vunpack.c.l.b16 %v3260
    %v3335 = vunpack.c.h.b16 %v3260
    %v3336 = vunpack.c.l.b16 %v3261
    %v3337 = vunpack.c.h.b16 %v3261
    %v3338 = vunpack.c.l.b16 %v3262
    %v3339 = vunpack.c.h.b16 %v3262
    %v3340 = vunpack.c.l.b16 %v3263
    %v3341 = vunpack.c.h.b16 %v3263
    %v3342 = vunpack.c.l.b16 %v3264
    %v3343 = vunpack.c.h.b16 %v3264
    %v3344 = vunpack.c.l.b16 %v3265
    %v3345 = vunpack.c.h.b16 %v3265
    %v3346 = vunpack.c.l.b16 %v3266
    %v3347 = vunpack.c.h.b16 %v3266
    %v3348 = vunpack.c.l.b16 %v3267
    %v3349 = vunpack.c.h.b16 %v3267
    %v3350 = vunpack.c.l.b16 %v3268
    %v3351 = vunpack.c.h.b16 %v3268
    %v3352 = vunpack.c.l.b16 %v3269
    %v3353 = vunpack.c.h.b16 %v3269
    %v3354 = vunpack.c.l.b16 %v3270
    %v3355 = vunpack.c.h.b16 %v3270
    %v3356 = vunpack.c.l.b16 %v3271
    %v3357 = vunpack.c.h.b16 %v3271
    %v3358 = vunpack.c.l.b16 %v3272
    %v3359 = vunpack.c.h.b16 %v3272
    %v3360 = vunpack.c.l.b16 %v3273
    %v3361 = vunpack.c.h.b16 %v3273
    %v3362 = vunpack.c.l.b16 %v3274
    %v3363 = vunpack.c.h.b16 %v3274
    %v3364 = vunpack.c.l.b16 %v3275
    %v3365 = vunpack.c.h.b16 %v3275
    %v3366 = vunpack.c.l.b16 %v3276
    %v3367 = vunpack.c.h.b16 %v3276
    %v3368 = vunpack.c.l.b16 %v3277
    %v3369 = vunpack.c.h.b16 %v3277
    %v3370 = vunpack.c.l.b16 %v3278
    %v3371 = vunpack.c.h.b16 %v3278
    %v3372 = vunpack.c.l.b16 %v3279
    %v3373 = vunpack.c.h.b16 %v3279
    %v3374 = vunpack.c.l.b16 %v3280
    %v3375 = vunpack.c.h.b16 %v3280
    %v3376 = vunpack.c.l.b16 %v3281
    %v3377 = vunpack.c.h.b16 %v3281
    %v3378 = vpack.c.b16 %v3318, %v3314
    %v3379 = vpack.c.b16 %v3319, %v3315
    %v3380 = vpack.c.b16 %v3320, %v3316
    %v3381 = vpack.c.b16 %v3321, %v3317
    %v3382 = vpack.c.b16 %v3326, %v3322
    %v3383 = vpack.c.b16 %v3327, %v3323
    %v3384 = vpack.c.b16 %v3328, %v3324
    %v3385 = vpack.c.b16 %v3329, %v3325
    %v3386 = vpack.c.b16 %v3334, %v3330
    %v3387 = vpack.c.b16 %v3335, %v3331
    %v3388 = vpack.c.b16 %v3336, %v3332
    %v3389 = vpack.c.b16 %v3337, %v3333
    %v3390 = vpack.c.b16 %v3342, %v3338
    %v3391 = vpack.c.b16 %v3343, %v3339
    %v3392 = vpack.c.b16 %v3344, %v3340
    %v3393 = vpack.c.b16 %v3345, %v3341
    %v3394 = vpack.c.b16 %v3350, %v3346
    %v3395 = vpack.c.b16 %v3351, %v3347
    %v3396 = vpack.c.b16 %v3352, %v3348
    %v3397 = vpack.c.b16 %v3353, %v3349
    %v3398 = vpack.c.b16 %v3358, %v3354
    %v3399 = vpack.c.b16 %v3359, %v3355
    %v3400 = vpack.c.b16 %v3360, %v3356
    %v3401 = vpack.c.b16 %v3361, %v3357
    %v3402 = vpack.c.b16 %v3366, %v3362
    %v3403 = vpack.c.b16 %v3367, %v3363
    %v3404 = vpack.c.b16 %v3368, %v3364
    %v3405 = vpack.c.b16 %v3369, %v3365
    %v3406 = vpack.c.b16 %v3374, %v3370
    %v3407 = vpack.c.b16 %v3375, %v3371
    %v3408 = vpack.c.b16 %v3376, %v3372
    %v3409 = vpack.c.b16 %v3377, %v3373
    %3442 = vmatpush.bf16.msra.mxu0 %v3406
    %3443 = vmatpush.bf16.msra.mxu0 %v3402
    %3444 = vmatpush.bf16.msra.mxu0 %v3398
    %3445 = vmatpush.bf16.msra.mxu0 %v3394
    %3446 = vmatpush.bf16.msra.mxu0 %v3390
    %3447 = vmatpush.bf16.msra.mxu0 %v3386
    %3448 = vmatpush.bf16.msra.mxu0 %v3382
    %3449 = vmatpush.bf16.msra.mxu0 %v3378
    %3450 = vmatmul.bf16.gmra.mxu0 %v3249
    %v3451 = vpop.f32.mrf.mxu0
    %v3452 = vadd.f32 0.0, %v3451
    %v3453 = vpop.f32.mrf.mxu0
    %3454 = vdwg.mxu0
    %3455 = vmatpush.bf16.msra.mxu0 %v3407
    %3456 = vmatpush.bf16.msra.mxu0 %v3403
    %3457 = vmatpush.bf16.msra.mxu0 %v3399
    %3458 = vmatpush.bf16.msra.mxu0 %v3395
    %3459 = vmatpush.bf16.msra.mxu0 %v3391
    %3460 = vmatpush.bf16.msra.mxu0 %v3387
    %3461 = vmatpush.bf16.msra.mxu0 %v3383
    %3462 = vmatpush.bf16.msra.mxu0 %v3379
    %3463 = vmatmul.bf16.gmra.mxu0 %v3249
    %v3464 = vpop.f32.mrf.mxu0
    %v3465 = vadd.f32 0.0, %v3464
    %v3466 = vpop.f32.mrf.mxu0
    %3467 = vdwg.mxu0
    %3468 = vmatpush.bf16.msra.mxu0 %v3408
    %3469 = vmatpush.bf16.msra.mxu0 %v3404
    %3470 = vmatpush.bf16.msra.mxu0 %v3400
    %3471 = vmatpush.bf16.msra.mxu0 %v3396
    %3472 = vmatpush.bf16.msra.mxu0 %v3392
    %3473 = vmatpush.bf16.msra.mxu0 %v3388
    %3474 = vmatpush.bf16.msra.mxu0 %v3384
    %3475 = vmatpush.bf16.msra.mxu0 %v3380
    %3476 = vmatmul.bf16.gmra.mxu0 %v3249
    %v3477 = vpop.f32.mrf.mxu0
    %v3478 = vadd.f32 0.0, %v3477
    %v3479 = vpop.f32.mrf.mxu0
    %3480 = vdwg.mxu0
    %3481 = vmatpush.bf16.msra.mxu0 %v3409
    %3482 = vmatpush.bf16.msra.mxu0 %v3405
    %3483 = vmatpush.bf16.msra.mxu0 %v3401
    %3484 = vmatpush.bf16.msra.mxu0 %v3397
    %3485 = vmatpush.bf16.msra.mxu0 %v3393
    %3486 = vmatpush.bf16.msra.mxu0 %v3389
    %3487 = vmatpush.bf16.msra.mxu0 %v3385
    %3488 = vmatpush.bf16.msra.mxu0 %v3381
    %3489 = vmatmul.bf16.gmra.mxu0 %v3249
    %v3490 = vpop.f32.mrf.mxu0
    %v3491 = vadd.f32 0.0, %v3490
    %v3492 = vpop.f32.mrf.mxu0
    %3493 = vdwg.mxu0
    %v3494 = vadd.f32 %v3245, %v3452
    %v3495 = vadd.f32 %v3246, %v3465
    %v3496 = vadd.f32 %v3247, %v3478
    %v3497 = vadd.f32 %v3248, %v3491
    %v3498 = vxor.u32 %v3494, 2147483648
    %v3499 = vxor.u32 %v3495, 2147483648
    %v3500 = vxor.u32 %v3496, 2147483648
    %v3501 = vmul.f32 %v3498, 1.442695
    %v3502 = vpow.pop %v3501
    %v3503 = vmul.f32 %v3499, 1.442695
    %v3504 = vpow.pop %v3503
    %v3505 = vmul.f32 %v3500, 1.442695
    %v3506 = vpow.pop %v3505
    %v3507 = vadd.f32 %v3502, 1.0
    %v3508 = vadd.f32 %v3504, 1.0
    %v3509 = vadd.f32 %v3506, 1.0
    %v3510 = vrcp.pop %v3507
    %v3511 = vmul.f32 %v3507, %v3510
    %v3512 = vsub.f32 1.0, %v3511
    %v3513 = vmul.f32 %v3510, %v3512
    %v3514 = vadd.f32 %v3510, %v3513
    %vm3515 = vweird.f32 %v3507
    %vm3516 = vweird.f32 %v3510
    %vm3517 = vmor %vm3515, %vm3516
    %v3518 = vsel %vm3517, %v3510, %v3514
    %v3519 = vand.u32 2147483647, %v3507
    %vm3520 = vcmp.eq.f32.partialorder %v3519, 8.507059e+37
    %v3521 = vand.u32 %v3507, 2147483648
    %v3522 = vor.u32 1.1754944e-38, %v3521
    %v3523 = vsel %vm3520, %v3522, %v3518
    %v3524 = vmul.f32 1.0, %v3523
    %v3525 = vrcp.pop %v3508
    %v3526 = vmul.f32 %v3508, %v3525
    %v3527 = vsub.f32 1.0, %v3526
    %v3528 = vmul.f32 %v3525, %v3527
    %v3529 = vadd.f32 %v3525, %v3528
    %vm3530 = vweird.f32 %v3508
    %vm3531 = vweird.f32 %v3525
    %vm3532 = vmor %vm3530, %vm3531
    %v3533 = vsel %vm3532, %v3525, %v3529
    %v3534 = vand.u32 2147483647, %v3508
    %vm3535 = vcmp.eq.f32.partialorder %v3534, 8.507059e+37
    %v3536 = vand.u32 %v3508, 2147483648
    %v3537 = vor.u32 1.1754944e-38, %v3536
    %v3538 = vsel %vm3535, %v3537, %v3533
    %v3539 = vmul.f32 1.0, %v3538
    %v3540 = vrcp.pop %v3509
    %v3541 = vmul.f32 %v3509, %v3540
    %v3542 = vsub.f32 1.0, %v3541
    %v3543 = vmul.f32 %v3540, %v3542
    %v3544 = vadd.f32 %v3540, %v3543
    %vm3545 = vweird.f32 %v3509
    %vm3546 = vweird.f32 %v3540
    %vm3547 = vmor %vm3545, %vm3546
    %v3548 = vsel %vm3547, %v3540, %v3544
    %v3549 = vand.u32 2147483647, %v3509
    %vm3550 = vcmp.eq.f32.partialorder %v3549, 8.507059e+37
    %v3551 = vand.u32 %v3509, 2147483648
    %v3552 = vor.u32 1.1754944e-38, %v3551
    %v3553 = vsel %vm3550, %v3552, %v3548
    %v3554 = vmul.f32 1.0, %v3553
    %v3555 = vtanh.pop %v3497
    %v3556 = vmul.f32 %v3539, %v2882
    %v3557 = vmul.f32 %v3524, %v3555
    %v3558 = vadd.f32 %v3556, %v3557
    %v3559 = vtanh.pop %v3558
    %v3560 = vmul.f32 %v3554, %v3559
    %3561 = vst [vmem:[%s7] sm:$0xff] %v3560
    %v3562 = vld [vmem:[%s632] sm:$0xff]
    %v3563 = vld [vmem:[%s632 + $0x8] sm:$0xff]
    %v3564 = vld [vmem:[%s632 + $0x10] sm:$0xff]
    %v3565 = vld [vmem:[%s632 + $0x18] sm:$0xff]
    %v3566 = vpack.c.bf16 %v3560, %v3560
    %v3567 = vld [vmem:[#allocation10] sm:$0xff]
    %v3568 = vld [vmem:[#allocation10 + $0x8] sm:$0xff]
    %v3569 = vld [vmem:[#allocation10 + $0x10] sm:$0xff]
    %v3570 = vld [vmem:[#allocation10 + $0x18] sm:$0xff]
    %v3571 = vld [vmem:[#allocation10 + $0x20] sm:$0xff]
    %v3572 = vld [vmem:[#allocation10 + $0x28] sm:$0xff]
    %v3573 = vld [vmem:[#allocation10 + $0x30] sm:$0xff]
    %v3574 = vld [vmem:[#allocation10 + $0x38] sm:$0xff]
    %v3575 = vld [vmem:[#allocation10 + $0x40] sm:$0xff]
    %v3576 = vld [vmem:[#allocation10 + $0x48] sm:$0xff]
    %v3577 = vld [vmem:[#allocation10 + $0x50] sm:$0xff]
    %v3578 = vld [vmem:[#allocation10 + $0x58] sm:$0xff]
    %v3579 = vld [vmem:[#allocation10 + $0x60] sm:$0xff]
    %v3580 = vld [vmem:[#allocation10 + $0x68] sm:$0xff]
    %v3581 = vld [vmem:[#allocation10 + $0x70] sm:$0xff]
    %v3582 = vld [vmem:[#allocation10 + $0x78] sm:$0xff]
    %v3583 = vld [vmem:[#allocation10 + $0x80] sm:$0xff]
    %v3584 = vld [vmem:[#allocation10 + $0x88] sm:$0xff]
    %v3585 = vld [vmem:[#allocation10 + $0x90] sm:$0xff]
    %v3586 = vld [vmem:[#allocation10 + $0x98] sm:$0xff]
    %v3587 = vld [vmem:[#allocation10 + $0xa0] sm:$0xff]
    %v3588 = vld [vmem:[#allocation10 + $0xa8] sm:$0xff]
    %v3589 = vld [vmem:[#allocation10 + $0xb0] sm:$0xff]
    %v3590 = vld [vmem:[#allocation10 + $0xb8] sm:$0xff]
    %v3591 = vld [vmem:[#allocation10 + $0xc0] sm:$0xff]
    %v3592 = vld [vmem:[#allocation10 + $0xc8] sm:$0xff]
    %v3593 = vld [vmem:[#allocation10 + $0xd0] sm:$0xff]
    %v3594 = vld [vmem:[#allocation10 + $0xd8] sm:$0xff]
    %v3595 = vld [vmem:[#allocation10 + $0xe0] sm:$0xff]
    %v3596 = vld [vmem:[#allocation10 + $0xe8] sm:$0xff]
    %v3597 = vld [vmem:[#allocation10 + $0xf0] sm:$0xff]
    %v3598 = vld [vmem:[#allocation10 + $0xf8] sm:$0xff]
    %v3631 = vunpack.c.l.b16 %v3567
    %v3632 = vunpack.c.h.b16 %v3567
    %v3633 = vunpack.c.l.b16 %v3568
    %v3634 = vunpack.c.h.b16 %v3568
    %v3635 = vunpack.c.l.b16 %v3569
    %v3636 = vunpack.c.h.b16 %v3569
    %v3637 = vunpack.c.l.b16 %v3570
    %v3638 = vunpack.c.h.b16 %v3570
    %v3639 = vunpack.c.l.b16 %v3571
    %v3640 = vunpack.c.h.b16 %v3571
    %v3641 = vunpack.c.l.b16 %v3572
    %v3642 = vunpack.c.h.b16 %v3572
    %v3643 = vunpack.c.l.b16 %v3573
    %v3644 = vunpack.c.h.b16 %v3573
    %v3645 = vunpack.c.l.b16 %v3574
    %v3646 = vunpack.c.h.b16 %v3574
    %v3647 = vunpack.c.l.b16 %v3575
    %v3648 = vunpack.c.h.b16 %v3575
    %v3649 = vunpack.c.l.b16 %v3576
    %v3650 = vunpack.c.h.b16 %v3576
    %v3651 = vunpack.c.l.b16 %v3577
    %v3652 = vunpack.c.h.b16 %v3577
    %v3653 = vunpack.c.l.b16 %v3578
    %v3654 = vunpack.c.h.b16 %v3578
    %v3655 = vunpack.c.l.b16 %v3579
    %v3656 = vunpack.c.h.b16 %v3579
    %v3657 = vunpack.c.l.b16 %v3580
    %v3658 = vunpack.c.h.b16 %v3580
    %v3659 = vunpack.c.l.b16 %v3581
    %v3660 = vunpack.c.h.b16 %v3581
    %v3661 = vunpack.c.l.b16 %v3582
    %v3662 = vunpack.c.h.b16 %v3582
    %v3663 = vunpack.c.l.b16 %v3583
    %v3664 = vunpack.c.h.b16 %v3583
    %v3665 = vunpack.c.l.b16 %v3584
    %v3666 = vunpack.c.h.b16 %v3584
    %v3667 = vunpack.c.l.b16 %v3585
    %v3668 = vunpack.c.h.b16 %v3585
    %v3669 = vunpack.c.l.b16 %v3586
    %v3670 = vunpack.c.h.b16 %v3586
    %v3671 = vunpack.c.l.b16 %v3587
    %v3672 = vunpack.c.h.b16 %v3587
    %v3673 = vunpack.c.l.b16 %v3588
    %v3674 = vunpack.c.h.b16 %v3588
    %v3675 = vunpack.c.l.b16 %v3589
    %v3676 = vunpack.c.h.b16 %v3589
    %v3677 = vunpack.c.l.b16 %v3590
    %v3678 = vunpack.c.h.b16 %v3590
    %v3679 = vunpack.c.l.b16 %v3591
    %v3680 = vunpack.c.h.b16 %v3591
    %v3681 = vunpack.c.l.b16 %v3592
    %v3682 = vunpack.c.h.b16 %v3592
    %v3683 = vunpack.c.l.b16 %v3593
    %v3684 = vunpack.c.h.b16 %v3593
    %v3685 = vunpack.c.l.b16 %v3594
    %v3686 = vunpack.c.h.b16 %v3594
    %v3687 = vunpack.c.l.b16 %v3595
    %v3688 = vunpack.c.h.b16 %v3595
    %v3689 = vunpack.c.l.b16 %v3596
    %v3690 = vunpack.c.h.b16 %v3596
    %v3691 = vunpack.c.l.b16 %v3597
    %v3692 = vunpack.c.h.b16 %v3597
    %v3693 = vunpack.c.l.b16 %v3598
    %v3694 = vunpack.c.h.b16 %v3598
    %v3695 = vpack.c.b16 %v3635, %v3631
    %v3696 = vpack.c.b16 %v3636, %v3632
    %v3697 = vpack.c.b16 %v3637, %v3633
    %v3698 = vpack.c.b16 %v3638, %v3634
    %v3699 = vpack.c.b16 %v3643, %v3639
    %v3700 = vpack.c.b16 %v3644, %v3640
    %v3701 = vpack.c.b16 %v3645, %v3641
    %v3702 = vpack.c.b16 %v3646, %v3642
    %v3703 = vpack.c.b16 %v3651, %v3647
    %v3704 = vpack.c.b16 %v3652, %v3648
    %v3705 = vpack.c.b16 %v3653, %v3649
    %v3706 = vpack.c.b16 %v3654, %v3650
    %v3707 = vpack.c.b16 %v3659, %v3655
    %v3708 = vpack.c.b16 %v3660, %v3656
    %v3709 = vpack.c.b16 %v3661, %v3657
    %v3710 = vpack.c.b16 %v3662, %v3658
    %v3711 = vpack.c.b16 %v3667, %v3663
    %v3712 = vpack.c.b16 %v3668, %v3664
    %v3713 = vpack.c.b16 %v3669, %v3665
    %v3714 = vpack.c.b16 %v3670, %v3666
    %v3715 = vpack.c.b16 %v3675, %v3671
    %v3716 = vpack.c.b16 %v3676, %v3672
    %v3717 = vpack.c.b16 %v3677, %v3673
    %v3718 = vpack.c.b16 %v3678, %v3674
    %v3719 = vpack.c.b16 %v3683, %v3679
    %v3720 = vpack.c.b16 %v3684, %v3680
    %v3721 = vpack.c.b16 %v3685, %v3681
    %v3722 = vpack.c.b16 %v3686, %v3682
    %v3723 = vpack.c.b16 %v3691, %v3687
    %v3724 = vpack.c.b16 %v3692, %v3688
    %v3725 = vpack.c.b16 %v3693, %v3689
    %v3726 = vpack.c.b16 %v3694, %v3690
    %3759 = vmatpush.bf16.msra.mxu0 %v3723
    %3760 = vmatpush.bf16.msra.mxu0 %v3719
    %3761 = vmatpush.bf16.msra.mxu0 %v3715
    %3762 = vmatpush.bf16.msra.mxu0 %v3711
    %3763 = vmatpush.bf16.msra.mxu0 %v3707
    %3764 = vmatpush.bf16.msra.mxu0 %v3703
    %3765 = vmatpush.bf16.msra.mxu0 %v3699
    %3766 = vmatpush.bf16.msra.mxu0 %v3695
    %3767 = vmatmul.bf16.gmra.mxu0 %v3566
    %v3768 = vpop.f32.mrf.mxu0
    %v3769 = vadd.f32 0.0, %v3768
    %v3770 = vpop.f32.mrf.mxu0
    %3771 = vdwg.mxu0
    %3772 = vmatpush.bf16.msra.mxu0 %v3724
    %3773 = vmatpush.bf16.msra.mxu0 %v3720
    %3774 = vmatpush.bf16.msra.mxu0 %v3716
    %3775 = vmatpush.bf16.msra.mxu0 %v3712
    %3776 = vmatpush.bf16.msra.mxu0 %v3708
    %3777 = vmatpush.bf16.msra.mxu0 %v3704
    %3778 = vmatpush.bf16.msra.mxu0 %v3700
    %3779 = vmatpush.bf16.msra.mxu0 %v3696
    %3780 = vmatmul.bf16.gmra.mxu0 %v3566
    %v3781 = vpop.f32.mrf.mxu0
    %v3782 = vadd.f32 0.0, %v3781
    %v3783 = vpop.f32.mrf.mxu0
    %3784 = vdwg.mxu0
    %3785 = vmatpush.bf16.msra.mxu0 %v3725
    %3786 = vmatpush.bf16.msra.mxu0 %v3721
    %3787 = vmatpush.bf16.msra.mxu0 %v3717
    %3788 = vmatpush.bf16.msra.mxu0 %v3713
    %3789 = vmatpush.bf16.msra.mxu0 %v3709
    %3790 = vmatpush.bf16.msra.mxu0 %v3705
    %3791 = vmatpush.bf16.msra.mxu0 %v3701
    %3792 = vmatpush.bf16.msra.mxu0 %v3697
    %3793 = vmatmul.bf16.gmra.mxu0 %v3566
    %v3794 = vpop.f32.mrf.mxu0
    %v3795 = vadd.f32 0.0, %v3794
    %v3796 = vpop.f32.mrf.mxu0
    %3797 = vdwg.mxu0
    %3798 = vmatpush.bf16.msra.mxu0 %v3726
    %3799 = vmatpush.bf16.msra.mxu0 %v3722
    %3800 = vmatpush.bf16.msra.mxu0 %v3718
    %3801 = vmatpush.bf16.msra.mxu0 %v3714
    %3802 = vmatpush.bf16.msra.mxu0 %v3710
    %3803 = vmatpush.bf16.msra.mxu0 %v3706
    %3804 = vmatpush.bf16.msra.mxu0 %v3702
    %3805 = vmatpush.bf16.msra.mxu0 %v3698
    %3806 = vmatmul.bf16.gmra.mxu0 %v3566
    %v3807 = vpop.f32.mrf.mxu0
    %v3808 = vadd.f32 0.0, %v3807
    %v3809 = vpop.f32.mrf.mxu0
    %3810 = vdwg.mxu0
    %v3811 = vadd.f32 %v3562, %v3769
    %v3812 = vadd.f32 %v3563, %v3782
    %v3813 = vadd.f32 %v3564, %v3795
    %v3814 = vadd.f32 %v3565, %v3808
    %v3815 = vxor.u32 %v3811, 2147483648
    %v3816 = vxor.u32 %v3812, 2147483648
    %v3817 = vxor.u32 %v3813, 2147483648
    %v3818 = vmul.f32 %v3815, 1.442695
    %v3819 = vpow.pop %v3818
    %v3820 = vmul.f32 %v3816, 1.442695
    %v3821 = vpow.pop %v3820
    %v3822 = vmul.f32 %v3817, 1.442695
    %v3823 = vpow.pop %v3822
    %v3824 = vadd.f32 %v3819, 1.0
    %v3825 = vadd.f32 %v3821, 1.0
    %v3826 = vadd.f32 %v3823, 1.0
    %v3827 = vrcp.pop %v3824
    %v3828 = vmul.f32 %v3824, %v3827
    %v3829 = vsub.f32 1.0, %v3828
    %v3830 = vmul.f32 %v3827, %v3829
    %v3831 = vadd.f32 %v3827, %v3830
    %vm3832 = vweird.f32 %v3824
    %vm3833 = vweird.f32 %v3827
    %vm3834 = vmor %vm3832, %vm3833
    %v3835 = vsel %vm3834, %v3827, %v3831
    %v3836 = vand.u32 2147483647, %v3824
    %vm3837 = vcmp.eq.f32.partialorder %v3836, 8.507059e+37
    %v3838 = vand.u32 %v3824, 2147483648
    %v3839 = vor.u32 1.1754944e-38, %v3838
    %v3840 = vsel %vm3837, %v3839, %v3835
    %v3841 = vmul.f32 1.0, %v3840
    %v3842 = vrcp.pop %v3825
    %v3843 = vmul.f32 %v3825, %v3842
    %v3844 = vsub.f32 1.0, %v3843
    %v3845 = vmul.f32 %v3842, %v3844
    %v3846 = vadd.f32 %v3842, %v3845
    %vm3847 = vweird.f32 %v3825
    %vm3848 = vweird.f32 %v3842
    %vm3849 = vmor %vm3847, %vm3848
    %v3850 = vsel %vm3849, %v3842, %v3846
    %v3851 = vand.u32 2147483647, %v3825
    %vm3852 = vcmp.eq.f32.partialorder %v3851, 8.507059e+37
    %v3853 = vand.u32 %v3825, 2147483648
    %v3854 = vor.u32 1.1754944e-38, %v3853
    %v3855 = vsel %vm3852, %v3854, %v3850
    %v3856 = vmul.f32 1.0, %v3855
    %v3857 = vrcp.pop %v3826
    %v3858 = vmul.f32 %v3826, %v3857
    %v3859 = vsub.f32 1.0, %v3858
    %v3860 = vmul.f32 %v3857, %v3859
    %v3861 = vadd.f32 %v3857, %v3860
    %vm3862 = vweird.f32 %v3826
    %vm3863 = vweird.f32 %v3857
    %vm3864 = vmor %vm3862, %vm3863
    %v3865 = vsel %vm3864, %v3857, %v3861
    %v3866 = vand.u32 2147483647, %v3826
    %vm3867 = vcmp.eq.f32.partialorder %v3866, 8.507059e+37
    %v3868 = vand.u32 %v3826, 2147483648
    %v3869 = vor.u32 1.1754944e-38, %v3868
    %v3870 = vsel %vm3867, %v3869, %v3865
    %v3871 = vmul.f32 1.0, %v3870
    %v3872 = vtanh.pop %v3814
    %v3873 = vmul.f32 %v3856, %v3558
    %v3874 = vmul.f32 %v3841, %v3872
    %v3875 = vadd.f32 %v3873, %v3874
    %v3876 = vtanh.pop %v3875
    %v3877 = vmul.f32 %v3871, %v3876
    %s3878 = scalar_lea.vmem %s7, 8
    %3879 = vst [vmem:[%s3878] sm:$0xff] %v3877
    %v3880 = vld [vmem:[%s953] sm:$0xff]
    %v3881 = vld [vmem:[%s953 + $0x8] sm:$0xff]
    %v3882 = vld [vmem:[%s953 + $0x10] sm:$0xff]
    %v3883 = vld [vmem:[%s953 + $0x18] sm:$0xff]
    %v3884 = vpack.c.bf16 %v3877, %v3877
    %v3885 = vld [vmem:[#allocation10] sm:$0xff]
    %v3886 = vld [vmem:[#allocation10 + $0x8] sm:$0xff]
    %v3887 = vld [vmem:[#allocation10 + $0x10] sm:$0xff]
    %v3888 = vld [vmem:[#allocation10 + $0x18] sm:$0xff]
    %v3889 = vld [vmem:[#allocation10 + $0x20] sm:$0xff]
    %v3890 = vld [vmem:[#allocation10 + $0x28] sm:$0xff]
    %v3891 = vld [vmem:[#allocation10 + $0x30] sm:$0xff]
    %v3892 = vld [vmem:[#allocation10 + $0x38] sm:$0xff]
    %v3893 = vld [vmem:[#allocation10 + $0x40] sm:$0xff]
    %v3894 = vld [vmem:[#allocation10 + $0x48] sm:$0xff]
    %v3895 = vld [vmem:[#allocation10 + $0x50] sm:$0xff]
    %v3896 = vld [vmem:[#allocation10 + $0x58] sm:$0xff]
    %v3897 = vld [vmem:[#allocation10 + $0x60] sm:$0xff]
    %v3898 = vld [vmem:[#allocation10 + $0x68] sm:$0xff]
    %v3899 = vld [vmem:[#allocation10 + $0x70] sm:$0xff]
    %v3900 = vld [vmem:[#allocation10 + $0x78] sm:$0xff]
    %v3901 = vld [vmem:[#allocation10 + $0x80] sm:$0xff]
    %v3902 = vld [vmem:[#allocation10 + $0x88] sm:$0xff]
    %v3903 = vld [vmem:[#allocation10 + $0x90] sm:$0xff]
    %v3904 = vld [vmem:[#allocation10 + $0x98] sm:$0xff]
    %v3905 = vld [vmem:[#allocation10 + $0xa0] sm:$0xff]
    %v3906 = vld [vmem:[#allocation10 + $0xa8] sm:$0xff]
    %v3907 = vld [vmem:[#allocation10 + $0xb0] sm:$0xff]
    %v3908 = vld [vmem:[#allocation10 + $0xb8] sm:$0xff]
    %v3909 = vld [vmem:[#allocation10 + $0xc0] sm:$0xff]
    %v3910 = vld [vmem:[#allocation10 + $0xc8] sm:$0xff]
    %v3911 = vld [vmem:[#allocation10 + $0xd0] sm:$0xff]
    %v3912 = vld [vmem:[#allocation10 + $0xd8] sm:$0xff]
    %v3913 = vld [vmem:[#allocation10 + $0xe0] sm:$0xff]
    %v3914 = vld [vmem:[#allocation10 + $0xe8] sm:$0xff]
    %v3915 = vld [vmem:[#allocation10 + $0xf0] sm:$0xff]
    %v3916 = vld [vmem:[#allocation10 + $0xf8] sm:$0xff]
    %v3949 = vunpack.c.l.b16 %v3885
    %v3950 = vunpack.c.h.b16 %v3885
    %v3951 = vunpack.c.l.b16 %v3886
    %v3952 = vunpack.c.h.b16 %v3886
    %v3953 = vunpack.c.l.b16 %v3887
    %v3954 = vunpack.c.h.b16 %v3887
    %v3955 = vunpack.c.l.b16 %v3888
    %v3956 = vunpack.c.h.b16 %v3888
    %v3957 = vunpack.c.l.b16 %v3889
    %v3958 = vunpack.c.h.b16 %v3889
    %v3959 = vunpack.c.l.b16 %v3890
    %v3960 = vunpack.c.h.b16 %v3890
    %v3961 = vunpack.c.l.b16 %v3891
    %v3962 = vunpack.c.h.b16 %v3891
    %v3963 = vunpack.c.l.b16 %v3892
    %v3964 = vunpack.c.h.b16 %v3892
    %v3965 = vunpack.c.l.b16 %v3893
    %v3966 = vunpack.c.h.b16 %v3893
    %v3967 = vunpack.c.l.b16 %v3894
    %v3968 = vunpack.c.h.b16 %v3894
    %v3969 = vunpack.c.l.b16 %v3895
    %v3970 = vunpack.c.h.b16 %v3895
    %v3971 = vunpack.c.l.b16 %v3896
    %v3972 = vunpack.c.h.b16 %v3896
    %v3973 = vunpack.c.l.b16 %v3897
    %v3974 = vunpack.c.h.b16 %v3897
    %v3975 = vunpack.c.l.b16 %v3898
    %v3976 = vunpack.c.h.b16 %v3898
    %v3977 = vunpack.c.l.b16 %v3899
    %v3978 = vunpack.c.h.b16 %v3899
    %v3979 = vunpack.c.l.b16 %v3900
    %v3980 = vunpack.c.h.b16 %v3900
    %v3981 = vunpack.c.l.b16 %v3901
    %v3982 = vunpack.c.h.b16 %v3901
    %v3983 = vunpack.c.l.b16 %v3902
    %v3984 = vunpack.c.h.b16 %v3902
    %v3985 = vunpack.c.l.b16 %v3903
    %v3986 = vunpack.c.h.b16 %v3903
    %v3987 = vunpack.c.l.b16 %v3904
    %v3988 = vunpack.c.h.b16 %v3904
    %v3989 = vunpack.c.l.b16 %v3905
    %v3990 = vunpack.c.h.b16 %v3905
    %v3991 = vunpack.c.l.b16 %v3906
    %v3992 = vunpack.c.h.b16 %v3906
    %v3993 = vunpack.c.l.b16 %v3907
    %v3994 = vunpack.c.h.b16 %v3907
    %v3995 = vunpack.c.l.b16 %v3908
    %v3996 = vunpack.c.h.b16 %v3908
    %v3997 = vunpack.c.l.b16 %v3909
    %v3998 = vunpack.c.h.b16 %v3909
    %v3999 = vunpack.c.l.b16 %v3910
    %v4000 = vunpack.c.h.b16 %v3910
    %v4001 = vunpack.c.l.b16 %v3911
    %v4002 = vunpack.c.h.b16 %v3911
    %v4003 = vunpack.c.l.b16 %v3912
    %v4004 = vunpack.c.h.b16 %v3912
    %v4005 = vunpack.c.l.b16 %v3913
    %v4006 = vunpack.c.h.b16 %v3913
    %v4007 = vunpack.c.l.b16 %v3914
    %v4008 = vunpack.c.h.b16 %v3914
    %v4009 = vunpack.c.l.b16 %v3915
    %v4010 = vunpack.c.h.b16 %v3915
    %v4011 = vunpack.c.l.b16 %v3916
    %v4012 = vunpack.c.h.b16 %v3916
    %v4013 = vpack.c.b16 %v3953, %v3949
    %v4014 = vpack.c.b16 %v3954, %v3950
    %v4015 = vpack.c.b16 %v3955, %v3951
    %v4016 = vpack.c.b16 %v3956, %v3952
    %v4017 = vpack.c.b16 %v3961, %v3957
    %v4018 = vpack.c.b16 %v3962, %v3958
    %v4019 = vpack.c.b16 %v3963, %v3959
    %v4020 = vpack.c.b16 %v3964, %v3960
    %v4021 = vpack.c.b16 %v3969, %v3965
    %v4022 = vpack.c.b16 %v3970, %v3966
    %v4023 = vpack.c.b16 %v3971, %v3967
    %v4024 = vpack.c.b16 %v3972, %v3968
    %v4025 = vpack.c.b16 %v3977, %v3973
    %v4026 = vpack.c.b16 %v3978, %v3974
    %v4027 = vpack.c.b16 %v3979, %v3975
    %v4028 = vpack.c.b16 %v3980, %v3976
    %v4029 = vpack.c.b16 %v3985, %v3981
    %v4030 = vpack.c.b16 %v3986, %v3982
    %v4031 = vpack.c.b16 %v3987, %v3983
    %v4032 = vpack.c.b16 %v3988, %v3984
    %v4033 = vpack.c.b16 %v3993, %v3989
    %v4034 = vpack.c.b16 %v3994, %v3990
    %v4035 = vpack.c.b16 %v3995, %v3991
    %v4036 = vpack.c.b16 %v3996, %v3992
    %v4037 = vpack.c.b16 %v4001, %v3997
    %v4038 = vpack.c.b16 %v4002, %v3998
    %v4039 = vpack.c.b16 %v4003, %v3999
    %v4040 = vpack.c.b16 %v4004, %v4000
    %v4041 = vpack.c.b16 %v4009, %v4005
    %v4042 = vpack.c.b16 %v4010, %v4006
    %v4043 = vpack.c.b16 %v4011, %v4007
    %v4044 = vpack.c.b16 %v4012, %v4008
    %4077 = vmatpush.bf16.msra.mxu0 %v4041
    %4078 = vmatpush.bf16.msra.mxu0 %v4037
    %4079 = vmatpush.bf16.msra.mxu0 %v4033
    %4080 = vmatpush.bf16.msra.mxu0 %v4029
    %4081 = vmatpush.bf16.msra.mxu0 %v4025
    %4082 = vmatpush.bf16.msra.mxu0 %v4021
    %4083 = vmatpush.bf16.msra.mxu0 %v4017
    %4084 = vmatpush.bf16.msra.mxu0 %v4013
    %4085 = vmatmul.bf16.gmra.mxu0 %v3884
    %v4086 = vpop.f32.mrf.mxu0
    %v4087 = vadd.f32 0.0, %v4086
    %v4088 = vpop.f32.mrf.mxu0
    %4089 = vdwg.mxu0
    %4090 = vmatpush.bf16.msra.mxu0 %v4042
    %4091 = vmatpush.bf16.msra.mxu0 %v4038
    %4092 = vmatpush.bf16.msra.mxu0 %v4034
    %4093 = vmatpush.bf16.msra.mxu0 %v4030
    %4094 = vmatpush.bf16.msra.mxu0 %v4026
    %4095 = vmatpush.bf16.msra.mxu0 %v4022
    %4096 = vmatpush.bf16.msra.mxu0 %v4018
    %4097 = vmatpush.bf16.msra.mxu0 %v4014
    %4098 = vmatmul.bf16.gmra.mxu0 %v3884
    %v4099 = vpop.f32.mrf.mxu0
    %v4100 = vadd.f32 0.0, %v4099
    %v4101 = vpop.f32.mrf.mxu0
    %4102 = vdwg.mxu0
    %4103 = vmatpush.bf16.msra.mxu0 %v4043
    %4104 = vmatpush.bf16.msra.mxu0 %v4039
    %4105 = vmatpush.bf16.msra.mxu0 %v4035
    %4106 = vmatpush.bf16.msra.mxu0 %v4031
    %4107 = vmatpush.bf16.msra.mxu0 %v4027
    %4108 = vmatpush.bf16.msra.mxu0 %v4023
    %4109 = vmatpush.bf16.msra.mxu0 %v4019
    %4110 = vmatpush.bf16.msra.mxu0 %v4015
    %4111 = vmatmul.bf16.gmra.mxu0 %v3884
    %v4112 = vpop.f32.mrf.mxu0
    %v4113 = vadd.f32 0.0, %v4112
    %v4114 = vpop.f32.mrf.mxu0
    %4115 = vdwg.mxu0
    %4116 = vmatpush.bf16.msra.mxu0 %v4044
    %4117 = vmatpush.bf16.msra.mxu0 %v4040
    %4118 = vmatpush.bf16.msra.mxu0 %v4036
    %4119 = vmatpush.bf16.msra.mxu0 %v4032
    %4120 = vmatpush.bf16.msra.mxu0 %v4028
    %4121 = vmatpush.bf16.msra.mxu0 %v4024
    %4122 = vmatpush.bf16.msra.mxu0 %v4020
    %4123 = vmatpush.bf16.msra.mxu0 %v4016
    %4124 = vmatmul.bf16.gmra.mxu0 %v3884
    %v4125 = vpop.f32.mrf.mxu0
    %v4126 = vadd.f32 0.0, %v4125
    %v4127 = vpop.f32.mrf.mxu0
    %4128 = vdwg.mxu0
    %v4129 = vadd.f32 %v3880, %v4087
    %v4130 = vadd.f32 %v3881, %v4100
    %v4131 = vadd.f32 %v3882, %v4113
    %v4132 = vadd.f32 %v3883, %v4126
    %v4133 = vxor.u32 %v4129, 2147483648
    %v4134 = vxor.u32 %v4130, 2147483648
    %v4135 = vxor.u32 %v4131, 2147483648
    %v4136 = vmul.f32 %v4133, 1.442695
    %v4137 = vpow.pop %v4136
    %v4138 = vmul.f32 %v4134, 1.442695
    %v4139 = vpow.pop %v4138
    %v4140 = vmul.f32 %v4135, 1.442695
    %v4141 = vpow.pop %v4140
    %v4142 = vadd.f32 %v4137, 1.0
    %v4143 = vadd.f32 %v4139, 1.0
    %v4144 = vadd.f32 %v4141, 1.0
    %v4145 = vrcp.pop %v4142
    %v4146 = vmul.f32 %v4142, %v4145
    %v4147 = vsub.f32 1.0, %v4146
    %v4148 = vmul.f32 %v4145, %v4147
    %v4149 = vadd.f32 %v4145, %v4148
    %vm4150 = vweird.f32 %v4142
    %vm4151 = vweird.f32 %v4145
    %vm4152 = vmor %vm4150, %vm4151
    %v4153 = vsel %vm4152, %v4145, %v4149
    %v4154 = vand.u32 2147483647, %v4142
    %vm4155 = vcmp.eq.f32.partialorder %v4154, 8.507059e+37
    %v4156 = vand.u32 %v4142, 2147483648
    %v4157 = vor.u32 1.1754944e-38, %v4156
    %v4158 = vsel %vm4155, %v4157, %v4153
    %v4159 = vmul.f32 1.0, %v4158
    %v4160 = vrcp.pop %v4143
    %v4161 = vmul.f32 %v4143, %v4160
    %v4162 = vsub.f32 1.0, %v4161
    %v4163 = vmul.f32 %v4160, %v4162
    %v4164 = vadd.f32 %v4160, %v4163
    %vm4165 = vweird.f32 %v4143
    %vm4166 = vweird.f32 %v4160
    %vm4167 = vmor %vm4165, %vm4166
    %v4168 = vsel %vm4167, %v4160, %v4164
    %v4169 = vand.u32 2147483647, %v4143
    %vm4170 = vcmp.eq.f32.partialorder %v4169, 8.507059e+37
    %v4171 = vand.u32 %v4143, 2147483648
    %v4172 = vor.u32 1.1754944e-38, %v4171
    %v4173 = vsel %vm4170, %v4172, %v4168
    %v4174 = vmul.f32 1.0, %v4173
    %v4175 = vrcp.pop %v4144
    %v4176 = vmul.f32 %v4144, %v4175
    %v4177 = vsub.f32 1.0, %v4176
    %v4178 = vmul.f32 %v4175, %v4177
    %v4179 = vadd.f32 %v4175, %v4178
    %vm4180 = vweird.f32 %v4144
    %vm4181 = vweird.f32 %v4175
    %vm4182 = vmor %vm4180, %vm4181
    %v4183 = vsel %vm4182, %v4175, %v4179
    %v4184 = vand.u32 2147483647, %v4144
    %vm4185 = vcmp.eq.f32.partialorder %v4184, 8.507059e+37
    %v4186 = vand.u32 %v4144, 2147483648
    %v4187 = vor.u32 1.1754944e-38, %v4186
    %v4188 = vsel %vm4185, %v4187, %v4183
    %v4189 = vmul.f32 1.0, %v4188
    %v4190 = vtanh.pop %v4132
    %v4191 = vmul.f32 %v4174, %v3875
    %v4192 = vmul.f32 %v4159, %v4190
    %v4193 = vadd.f32 %v4191, %v4192
    %v4194 = vtanh.pop %v4193
    %v4195 = vmul.f32 %v4189, %v4194
    %s4196 = scalar_lea.vmem %s7, 16
    %4197 = vst [vmem:[%s4196] sm:$0xff] %v4195
    %v4198 = vld [vmem:[%s1274] sm:$0xff]
    %v4199 = vld [vmem:[%s1274 + $0x8] sm:$0xff]
    %v4200 = vld [vmem:[%s1274 + $0x10] sm:$0xff]
    %v4201 = vld [vmem:[%s1274 + $0x18] sm:$0xff]
    %v4202 = vpack.c.bf16 %v4195, %v4195
    %v4203 = vld [vmem:[#allocation10] sm:$0xff]
    %v4204 = vld [vmem:[#allocation10 + $0x8] sm:$0xff]
    %v4205 = vld [vmem:[#allocation10 + $0x10] sm:$0xff]
    %v4206 = vld [vmem:[#allocation10 + $0x18] sm:$0xff]
    %v4207 = vld [vmem:[#allocation10 + $0x20] sm:$0xff]
    %v4208 = vld [vmem:[#allocation10 + $0x28] sm:$0xff]
    %v4209 = vld [vmem:[#allocation10 + $0x30] sm:$0xff]
    %v4210 = vld [vmem:[#allocation10 + $0x38] sm:$0xff]
    %v4211 = vld [vmem:[#allocation10 + $0x40] sm:$0xff]
    %v4212 = vld [vmem:[#allocation10 + $0x48] sm:$0xff]
    %v4213 = vld [vmem:[#allocation10 + $0x50] sm:$0xff]
    %v4214 = vld [vmem:[#allocation10 + $0x58] sm:$0xff]
    %v4215 = vld [vmem:[#allocation10 + $0x60] sm:$0xff]
    %v4216 = vld [vmem:[#allocation10 + $0x68] sm:$0xff]
    %v4217 = vld [vmem:[#allocation10 + $0x70] sm:$0xff]
    %v4218 = vld [vmem:[#allocation10 + $0x78] sm:$0xff]
    %v4219 = vld [vmem:[#allocation10 + $0x80] sm:$0xff]
    %v4220 = vld [vmem:[#allocation10 + $0x88] sm:$0xff]
    %v4221 = vld [vmem:[#allocation10 + $0x90] sm:$0xff]
    %v4222 = vld [vmem:[#allocation10 + $0x98] sm:$0xff]
    %v4223 = vld [vmem:[#allocation10 + $0xa0] sm:$0xff]
    %v4224 = vld [vmem:[#allocation10 + $0xa8] sm:$0xff]
    %v4225 = vld [vmem:[#allocation10 + $0xb0] sm:$0xff]
    %v4226 = vld [vmem:[#allocation10 + $0xb8] sm:$0xff]
    %v4227 = vld [vmem:[#allocation10 + $0xc0] sm:$0xff]
    %v4228 = vld [vmem:[#allocation10 + $0xc8] sm:$0xff]
    %v4229 = vld [vmem:[#allocation10 + $0xd0] sm:$0xff]
    %v4230 = vld [vmem:[#allocation10 + $0xd8] sm:$0xff]
    %v4231 = vld [vmem:[#allocation10 + $0xe0] sm:$0xff]
    %v4232 = vld [vmem:[#allocation10 + $0xe8] sm:$0xff]
    %v4233 = vld [vmem:[#allocation10 + $0xf0] sm:$0xff]
    %v4234 = vld [vmem:[#allocation10 + $0xf8] sm:$0xff]
    %v4267 = vunpack.c.l.b16 %v4203
    %v4268 = vunpack.c.h.b16 %v4203
    %v4269 = vunpack.c.l.b16 %v4204
    %v4270 = vunpack.c.h.b16 %v4204
    %v4271 = vunpack.c.l.b16 %v4205
    %v4272 = vunpack.c.h.b16 %v4205
    %v4273 = vunpack.c.l.b16 %v4206
    %v4274 = vunpack.c.h.b16 %v4206
    %v4275 = vunpack.c.l.b16 %v4207
    %v4276 = vunpack.c.h.b16 %v4207
    %v4277 = vunpack.c.l.b16 %v4208
    %v4278 = vunpack.c.h.b16 %v4208
    %v4279 = vunpack.c.l.b16 %v4209
    %v4280 = vunpack.c.h.b16 %v4209
    %v4281 = vunpack.c.l.b16 %v4210
    %v4282 = vunpack.c.h.b16 %v4210
    %v4283 = vunpack.c.l.b16 %v4211
    %v4284 = vunpack.c.h.b16 %v4211
    %v4285 = vunpack.c.l.b16 %v4212
    %v4286 = vunpack.c.h.b16 %v4212
    %v4287 = vunpack.c.l.b16 %v4213
    %v4288 = vunpack.c.h.b16 %v4213
    %v4289 = vunpack.c.l.b16 %v4214
    %v4290 = vunpack.c.h.b16 %v4214
    %v4291 = vunpack.c.l.b16 %v4215
    %v4292 = vunpack.c.h.b16 %v4215
    %v4293 = vunpack.c.l.b16 %v4216
    %v4294 = vunpack.c.h.b16 %v4216
    %v4295 = vunpack.c.l.b16 %v4217
    %v4296 = vunpack.c.h.b16 %v4217
    %v4297 = vunpack.c.l.b16 %v4218
    %v4298 = vunpack.c.h.b16 %v4218
    %v4299 = vunpack.c.l.b16 %v4219
    %v4300 = vunpack.c.h.b16 %v4219
    %v4301 = vunpack.c.l.b16 %v4220
    %v4302 = vunpack.c.h.b16 %v4220
    %v4303 = vunpack.c.l.b16 %v4221
    %v4304 = vunpack.c.h.b16 %v4221
    %v4305 = vunpack.c.l.b16 %v4222
    %v4306 = vunpack.c.h.b16 %v4222
    %v4307 = vunpack.c.l.b16 %v4223
    %v4308 = vunpack.c.h.b16 %v4223
    %v4309 = vunpack.c.l.b16 %v4224
    %v4310 = vunpack.c.h.b16 %v4224
    %v4311 = vunpack.c.l.b16 %v4225
    %v4312 = vunpack.c.h.b16 %v4225
    %v4313 = vunpack.c.l.b16 %v4226
    %v4314 = vunpack.c.h.b16 %v4226
    %v4315 = vunpack.c.l.b16 %v4227
    %v4316 = vunpack.c.h.b16 %v4227
    %v4317 = vunpack.c.l.b16 %v4228
    %v4318 = vunpack.c.h.b16 %v4228
    %v4319 = vunpack.c.l.b16 %v4229
    %v4320 = vunpack.c.h.b16 %v4229
    %v4321 = vunpack.c.l.b16 %v4230
    %v4322 = vunpack.c.h.b16 %v4230
    %v4323 = vunpack.c.l.b16 %v4231
    %v4324 = vunpack.c.h.b16 %v4231
    %v4325 = vunpack.c.l.b16 %v4232
    %v4326 = vunpack.c.h.b16 %v4232
    %v4327 = vunpack.c.l.b16 %v4233
    %v4328 = vunpack.c.h.b16 %v4233
    %v4329 = vunpack.c.l.b16 %v4234
    %v4330 = vunpack.c.h.b16 %v4234
    %v4331 = vpack.c.b16 %v4271, %v4267
    %v4332 = vpack.c.b16 %v4272, %v4268
    %v4333 = vpack.c.b16 %v4273, %v4269
    %v4334 = vpack.c.b16 %v4274, %v4270
    %v4335 = vpack.c.b16 %v4279, %v4275
    %v4336 = vpack.c.b16 %v4280, %v4276
    %v4337 = vpack.c.b16 %v4281, %v4277
    %v4338 = vpack.c.b16 %v4282, %v4278
    %v4339 = vpack.c.b16 %v4287, %v4283
    %v4340 = vpack.c.b16 %v4288, %v4284
    %v4341 = vpack.c.b16 %v4289, %v4285
    %v4342 = vpack.c.b16 %v4290, %v4286
    %v4343 = vpack.c.b16 %v4295, %v4291
    %v4344 = vpack.c.b16 %v4296, %v4292
    %v4345 = vpack.c.b16 %v4297, %v4293
    %v4346 = vpack.c.b16 %v4298, %v4294
    %v4347 = vpack.c.b16 %v4303, %v4299
    %v4348 = vpack.c.b16 %v4304, %v4300
    %v4349 = vpack.c.b16 %v4305, %v4301
    %v4350 = vpack.c.b16 %v4306, %v4302
    %v4351 = vpack.c.b16 %v4311, %v4307
    %v4352 = vpack.c.b16 %v4312, %v4308
    %v4353 = vpack.c.b16 %v4313, %v4309
    %v4354 = vpack.c.b16 %v4314, %v4310
    %v4355 = vpack.c.b16 %v4319, %v4315
    %v4356 = vpack.c.b16 %v4320, %v4316
    %v4357 = vpack.c.b16 %v4321, %v4317
    %v4358 = vpack.c.b16 %v4322, %v4318
    %v4359 = vpack.c.b16 %v4327, %v4323
    %v4360 = vpack.c.b16 %v4328, %v4324
    %v4361 = vpack.c.b16 %v4329, %v4325
    %v4362 = vpack.c.b16 %v4330, %v4326
    %4395 = vmatpush.bf16.msra.mxu0 %v4359
    %4396 = vmatpush.bf16.msra.mxu0 %v4355
    %4397 = vmatpush.bf16.msra.mxu0 %v4351
    %4398 = vmatpush.bf16.msra.mxu0 %v4347
    %4399 = vmatpush.bf16.msra.mxu0 %v4343
    %4400 = vmatpush.bf16.msra.mxu0 %v4339
    %4401 = vmatpush.bf16.msra.mxu0 %v4335
    %4402 = vmatpush.bf16.msra.mxu0 %v4331
    %4403 = vmatmul.bf16.gmra.mxu0 %v4202
    %v4404 = vpop.f32.mrf.mxu0
    %v4405 = vadd.f32 0.0, %v4404
    %v4406 = vpop.f32.mrf.mxu0
    %4407 = vdwg.mxu0
    %4408 = vmatpush.bf16.msra.mxu0 %v4360
    %4409 = vmatpush.bf16.msra.mxu0 %v4356
    %4410 = vmatpush.bf16.msra.mxu0 %v4352
    %4411 = vmatpush.bf16.msra.mxu0 %v4348
    %4412 = vmatpush.bf16.msra.mxu0 %v4344
    %4413 = vmatpush.bf16.msra.mxu0 %v4340
    %4414 = vmatpush.bf16.msra.mxu0 %v4336
    %4415 = vmatpush.bf16.msra.mxu0 %v4332
    %4416 = vmatmul.bf16.gmra.mxu0 %v4202
    %v4417 = vpop.f32.mrf.mxu0
    %v4418 = vadd.f32 0.0, %v4417
    %v4419 = vpop.f32.mrf.mxu0
    %4420 = vdwg.mxu0
    %4421 = vmatpush.bf16.msra.mxu0 %v4361
    %4422 = vmatpush.bf16.msra.mxu0 %v4357
    %4423 = vmatpush.bf16.msra.mxu0 %v4353
    %4424 = vmatpush.bf16.msra.mxu0 %v4349
    %4425 = vmatpush.bf16.msra.mxu0 %v4345
    %4426 = vmatpush.bf16.msra.mxu0 %v4341
    %4427 = vmatpush.bf16.msra.mxu0 %v4337
    %4428 = vmatpush.bf16.msra.mxu0 %v4333
    %4429 = vmatmul.bf16.gmra.mxu0 %v4202
    %v4430 = vpop.f32.mrf.mxu0
    %v4431 = vadd.f32 0.0, %v4430
    %v4432 = vpop.f32.mrf.mxu0
    %4433 = vdwg.mxu0
    %4434 = vmatpush.bf16.msra.mxu0 %v4362
    %4435 = vmatpush.bf16.msra.mxu0 %v4358
    %4436 = vmatpush.bf16.msra.mxu0 %v4354
    %4437 = vmatpush.bf16.msra.mxu0 %v4350
    %4438 = vmatpush.bf16.msra.mxu0 %v4346
    %4439 = vmatpush.bf16.msra.mxu0 %v4342
    %4440 = vmatpush.bf16.msra.mxu0 %v4338
    %4441 = vmatpush.bf16.msra.mxu0 %v4334
    %4442 = vmatmul.bf16.gmra.mxu0 %v4202
    %v4443 = vpop.f32.mrf.mxu0
    %v4444 = vadd.f32 0.0, %v4443
    %v4445 = vpop.f32.mrf.mxu0
    %4446 = vdwg.mxu0
    %v4447 = vadd.f32 %v4198, %v4405
    %v4448 = vadd.f32 %v4199, %v4418
    %v4449 = vadd.f32 %v4200, %v4431
    %v4450 = vadd.f32 %v4201, %v4444
    %v4451 = vxor.u32 %v4447, 2147483648
    %v4452 = vxor.u32 %v4448, 2147483648
    %v4453 = vxor.u32 %v4449, 2147483648
    %v4454 = vmul.f32 %v4451, 1.442695
    %v4455 = vpow.pop %v4454
    %v4456 = vmul.f32 %v4452, 1.442695
    %v4457 = vpow.pop %v4456
    %v4458 = vmul.f32 %v4453, 1.442695
    %v4459 = vpow.pop %v4458
    %v4460 = vadd.f32 %v4455, 1.0
    %v4461 = vadd.f32 %v4457, 1.0
    %v4462 = vadd.f32 %v4459, 1.0
    %v4463 = vrcp.pop %v4460
    %v4464 = vmul.f32 %v4460, %v4463
    %v4465 = vsub.f32 1.0, %v4464
    %v4466 = vmul.f32 %v4463, %v4465
    %v4467 = vadd.f32 %v4463, %v4466
    %vm4468 = vweird.f32 %v4460
    %vm4469 = vweird.f32 %v4463
    %vm4470 = vmor %vm4468, %vm4469
    %v4471 = vsel %vm4470, %v4463, %v4467
    %v4472 = vand.u32 2147483647, %v4460
    %vm4473 = vcmp.eq.f32.partialorder %v4472, 8.507059e+37
    %v4474 = vand.u32 %v4460, 2147483648
    %v4475 = vor.u32 1.1754944e-38, %v4474
    %v4476 = vsel %vm4473, %v4475, %v4471
    %v4477 = vmul.f32 1.0, %v4476
    %v4478 = vrcp.pop %v4461
    %v4479 = vmul.f32 %v4461, %v4478
    %v4480 = vsub.f32 1.0, %v4479
    %v4481 = vmul.f32 %v4478, %v4480
    %v4482 = vadd.f32 %v4478, %v4481
    %vm4483 = vweird.f32 %v4461
    %vm4484 = vweird.f32 %v4478
    %vm4485 = vmor %vm4483, %vm4484
    %v4486 = vsel %vm4485, %v4478, %v4482
    %v4487 = vand.u32 2147483647, %v4461
    %vm4488 = vcmp.eq.f32.partialorder %v4487, 8.507059e+37
    %v4489 = vand.u32 %v4461, 2147483648
    %v4490 = vor.u32 1.1754944e-38, %v4489
    %v4491 = vsel %vm4488, %v4490, %v4486
    %v4492 = vmul.f32 1.0, %v4491
    %v4493 = vrcp.pop %v4462
    %v4494 = vmul.f32 %v4462, %v4493
    %v4495 = vsub.f32 1.0, %v4494
    %v4496 = vmul.f32 %v4493, %v4495
    %v4497 = vadd.f32 %v4493, %v4496
    %vm4498 = vweird.f32 %v4462
    %vm4499 = vweird.f32 %v4493
    %vm4500 = vmor %vm4498, %vm4499
    %v4501 = vsel %vm4500, %v4493, %v4497
    %v4502 = vand.u32 2147483647, %v4462
    %vm4503 = vcmp.eq.f32.partialorder %v4502, 8.507059e+37
    %v4504 = vand.u32 %v4462, 2147483648
    %v4505 = vor.u32 1.1754944e-38, %v4504
    %v4506 = vsel %vm4503, %v4505, %v4501
    %v4507 = vmul.f32 1.0, %v4506
    %v4508 = vtanh.pop %v4450
    %v4509 = vmul.f32 %v4492, %v4193
    %v4510 = vmul.f32 %v4477, %v4508
    %v4511 = vadd.f32 %v4509, %v4510
    %v4512 = vtanh.pop %v4511
    %v4513 = vmul.f32 %v4507, %v4512
    %s4514 = scalar_lea.vmem %s7, 24
    %4515 = vst [vmem:[%s4514] sm:$0xff] %v4513
    %v4516 = vld [vmem:[%s1595] sm:$0xff]
    %v4517 = vld [vmem:[%s1595 + $0x8] sm:$0xff]
    %v4518 = vld [vmem:[%s1595 + $0x10] sm:$0xff]
    %v4519 = vld [vmem:[%s1595 + $0x18] sm:$0xff]
    %v4520 = vpack.c.bf16 %v4513, %v4513
    %v4521 = vld [vmem:[#allocation10] sm:$0xff]
    %v4522 = vld [vmem:[#allocation10 + $0x8] sm:$0xff]
    %v4523 = vld [vmem:[#allocation10 + $0x10] sm:$0xff]
    %v4524 = vld [vmem:[#allocation10 + $0x18] sm:$0xff]
    %v4525 = vld [vmem:[#allocation10 + $0x20] sm:$0xff]
    %v4526 = vld [vmem:[#allocation10 + $0x28] sm:$0xff]
    %v4527 = vld [vmem:[#allocation10 + $0x30] sm:$0xff]
    %v4528 = vld [vmem:[#allocation10 + $0x38] sm:$0xff]
    %v4529 = vld [vmem:[#allocation10 + $0x40] sm:$0xff]
    %v4530 = vld [vmem:[#allocation10 + $0x48] sm:$0xff]
    %v4531 = vld [vmem:[#allocation10 + $0x50] sm:$0xff]
    %v4532 = vld [vmem:[#allocation10 + $0x58] sm:$0xff]
    %v4533 = vld [vmem:[#allocation10 + $0x60] sm:$0xff]
    %v4534 = vld [vmem:[#allocation10 + $0x68] sm:$0xff]
    %v4535 = vld [vmem:[#allocation10 + $0x70] sm:$0xff]
    %v4536 = vld [vmem:[#allocation10 + $0x78] sm:$0xff]
    %v4537 = vld [vmem:[#allocation10 + $0x80] sm:$0xff]
    %v4538 = vld [vmem:[#allocation10 + $0x88] sm:$0xff]
    %v4539 = vld [vmem:[#allocation10 + $0x90] sm:$0xff]
    %v4540 = vld [vmem:[#allocation10 + $0x98] sm:$0xff]
    %v4541 = vld [vmem:[#allocation10 + $0xa0] sm:$0xff]
    %v4542 = vld [vmem:[#allocation10 + $0xa8] sm:$0xff]
    %v4543 = vld [vmem:[#allocation10 + $0xb0] sm:$0xff]
    %v4544 = vld [vmem:[#allocation10 + $0xb8] sm:$0xff]
    %v4545 = vld [vmem:[#allocation10 + $0xc0] sm:$0xff]
    %v4546 = vld [vmem:[#allocation10 + $0xc8] sm:$0xff]
    %v4547 = vld [vmem:[#allocation10 + $0xd0] sm:$0xff]
    %v4548 = vld [vmem:[#allocation10 + $0xd8] sm:$0xff]
    %v4549 = vld [vmem:[#allocation10 + $0xe0] sm:$0xff]
    %v4550 = vld [vmem:[#allocation10 + $0xe8] sm:$0xff]
    %v4551 = vld [vmem:[#allocation10 + $0xf0] sm:$0xff]
    %v4552 = vld [vmem:[#allocation10 + $0xf8] sm:$0xff]
    %v4585 = vunpack.c.l.b16 %v4521
    %v4586 = vunpack.c.h.b16 %v4521
    %v4587 = vunpack.c.l.b16 %v4522
    %v4588 = vunpack.c.h.b16 %v4522
    %v4589 = vunpack.c.l.b16 %v4523
    %v4590 = vunpack.c.h.b16 %v4523
    %v4591 = vunpack.c.l.b16 %v4524
    %v4592 = vunpack.c.h.b16 %v4524
    %v4593 = vunpack.c.l.b16 %v4525
    %v4594 = vunpack.c.h.b16 %v4525
    %v4595 = vunpack.c.l.b16 %v4526
    %v4596 = vunpack.c.h.b16 %v4526
    %v4597 = vunpack.c.l.b16 %v4527
    %v4598 = vunpack.c.h.b16 %v4527
    %v4599 = vunpack.c.l.b16 %v4528
    %v4600 = vunpack.c.h.b16 %v4528
    %v4601 = vunpack.c.l.b16 %v4529
    %v4602 = vunpack.c.h.b16 %v4529
    %v4603 = vunpack.c.l.b16 %v4530
    %v4604 = vunpack.c.h.b16 %v4530
    %v4605 = vunpack.c.l.b16 %v4531
    %v4606 = vunpack.c.h.b16 %v4531
    %v4607 = vunpack.c.l.b16 %v4532
    %v4608 = vunpack.c.h.b16 %v4532
    %v4609 = vunpack.c.l.b16 %v4533
    %v4610 = vunpack.c.h.b16 %v4533
    %v4611 = vunpack.c.l.b16 %v4534
    %v4612 = vunpack.c.h.b16 %v4534
    %v4613 = vunpack.c.l.b16 %v4535
    %v4614 = vunpack.c.h.b16 %v4535
    %v4615 = vunpack.c.l.b16 %v4536
    %v4616 = vunpack.c.h.b16 %v4536
    %v4617 = vunpack.c.l.b16 %v4537
    %v4618 = vunpack.c.h.b16 %v4537
    %v4619 = vunpack.c.l.b16 %v4538
    %v4620 = vunpack.c.h.b16 %v4538
    %v4621 = vunpack.c.l.b16 %v4539
    %v4622 = vunpack.c.h.b16 %v4539
    %v4623 = vunpack.c.l.b16 %v4540
    %v4624 = vunpack.c.h.b16 %v4540
    %v4625 = vunpack.c.l.b16 %v4541
    %v4626 = vunpack.c.h.b16 %v4541
    %v4627 = vunpack.c.l.b16 %v4542
    %v4628 = vunpack.c.h.b16 %v4542
    %v4629 = vunpack.c.l.b16 %v4543
    %v4630 = vunpack.c.h.b16 %v4543
    %v4631 = vunpack.c.l.b16 %v4544
    %v4632 = vunpack.c.h.b16 %v4544
    %v4633 = vunpack.c.l.b16 %v4545
    %v4634 = vunpack.c.h.b16 %v4545
    %v4635 = vunpack.c.l.b16 %v4546
    %v4636 = vunpack.c.h.b16 %v4546
    %v4637 = vunpack.c.l.b16 %v4547
    %v4638 = vunpack.c.h.b16 %v4547
    %v4639 = vunpack.c.l.b16 %v4548
    %v4640 = vunpack.c.h.b16 %v4548
    %v4641 = vunpack.c.l.b16 %v4549
    %v4642 = vunpack.c.h.b16 %v4549
    %v4643 = vunpack.c.l.b16 %v4550
    %v4644 = vunpack.c.h.b16 %v4550
    %v4645 = vunpack.c.l.b16 %v4551
    %v4646 = vunpack.c.h.b16 %v4551
    %v4647 = vunpack.c.l.b16 %v4552
    %v4648 = vunpack.c.h.b16 %v4552
    %v4649 = vpack.c.b16 %v4589, %v4585
    %v4650 = vpack.c.b16 %v4590, %v4586
    %v4651 = vpack.c.b16 %v4591, %v4587
    %v4652 = vpack.c.b16 %v4592, %v4588
    %v4653 = vpack.c.b16 %v4597, %v4593
    %v4654 = vpack.c.b16 %v4598, %v4594
    %v4655 = vpack.c.b16 %v4599, %v4595
    %v4656 = vpack.c.b16 %v4600, %v4596
    %v4657 = vpack.c.b16 %v4605, %v4601
    %v4658 = vpack.c.b16 %v4606, %v4602
    %v4659 = vpack.c.b16 %v4607, %v4603
    %v4660 = vpack.c.b16 %v4608, %v4604
    %v4661 = vpack.c.b16 %v4613, %v4609
    %v4662 = vpack.c.b16 %v4614, %v4610
    %v4663 = vpack.c.b16 %v4615, %v4611
    %v4664 = vpack.c.b16 %v4616, %v4612
    %v4665 = vpack.c.b16 %v4621, %v4617
    %v4666 = vpack.c.b16 %v4622, %v4618
    %v4667 = vpack.c.b16 %v4623, %v4619
    %v4668 = vpack.c.b16 %v4624, %v4620
    %v4669 = vpack.c.b16 %v4629, %v4625
    %v4670 = vpack.c.b16 %v4630, %v4626
    %v4671 = vpack.c.b16 %v4631, %v4627
    %v4672 = vpack.c.b16 %v4632, %v4628
    %v4673 = vpack.c.b16 %v4637, %v4633
    %v4674 = vpack.c.b16 %v4638, %v4634
    %v4675 = vpack.c.b16 %v4639, %v4635
    %v4676 = vpack.c.b16 %v4640, %v4636
    %v4677 = vpack.c.b16 %v4645, %v4641
    %v4678 = vpack.c.b16 %v4646, %v4642
    %v4679 = vpack.c.b16 %v4647, %v4643
    %v4680 = vpack.c.b16 %v4648, %v4644
    %4713 = vmatpush.bf16.msra.mxu0 %v4677
    %4714 = vmatpush.bf16.msra.mxu0 %v4673
    %4715 = vmatpush.bf16.msra.mxu0 %v4669
    %4716 = vmatpush.bf16.msra.mxu0 %v4665
    %4717 = vmatpush.bf16.msra.mxu0 %v4661
    %4718 = vmatpush.bf16.msra.mxu0 %v4657
    %4719 = vmatpush.bf16.msra.mxu0 %v4653
    %4720 = vmatpush.bf16.msra.mxu0 %v4649
    %4721 = vmatmul.bf16.gmra.mxu0 %v4520
    %v4722 = vpop.f32.mrf.mxu0
    %v4723 = vadd.f32 0.0, %v4722
    %v4724 = vpop.f32.mrf.mxu0
    %4725 = vdwg.mxu0
    %4726 = vmatpush.bf16.msra.mxu0 %v4678
    %4727 = vmatpush.bf16.msra.mxu0 %v4674
    %4728 = vmatpush.bf16.msra.mxu0 %v4670
    %4729 = vmatpush.bf16.msra.mxu0 %v4666
    %4730 = vmatpush.bf16.msra.mxu0 %v4662
    %4731 = vmatpush.bf16.msra.mxu0 %v4658
    %4732 = vmatpush.bf16.msra.mxu0 %v4654
    %4733 = vmatpush.bf16.msra.mxu0 %v4650
    %4734 = vmatmul.bf16.gmra.mxu0 %v4520
    %v4735 = vpop.f32.mrf.mxu0
    %v4736 = vadd.f32 0.0, %v4735
    %v4737 = vpop.f32.mrf.mxu0
    %4738 = vdwg.mxu0
    %4739 = vmatpush.bf16.msra.mxu0 %v4679
    %4740 = vmatpush.bf16.msra.mxu0 %v4675
    %4741 = vmatpush.bf16.msra.mxu0 %v4671
    %4742 = vmatpush.bf16.msra.mxu0 %v4667
    %4743 = vmatpush.bf16.msra.mxu0 %v4663
    %4744 = vmatpush.bf16.msra.mxu0 %v4659
    %4745 = vmatpush.bf16.msra.mxu0 %v4655
    %4746 = vmatpush.bf16.msra.mxu0 %v4651
    %4747 = vmatmul.bf16.gmra.mxu0 %v4520
    %v4748 = vpop.f32.mrf.mxu0
    %v4749 = vadd.f32 0.0, %v4748
    %v4750 = vpop.f32.mrf.mxu0
    %4751 = vdwg.mxu0
    %4752 = vmatpush.bf16.msra.mxu0 %v4680
    %4753 = vmatpush.bf16.msra.mxu0 %v4676
    %4754 = vmatpush.bf16.msra.mxu0 %v4672
    %4755 = vmatpush.bf16.msra.mxu0 %v4668
    %4756 = vmatpush.bf16.msra.mxu0 %v4664
    %4757 = vmatpush.bf16.msra.mxu0 %v4660
    %4758 = vmatpush.bf16.msra.mxu0 %v4656
    %4759 = vmatpush.bf16.msra.mxu0 %v4652
    %4760 = vmatmul.bf16.gmra.mxu0 %v4520
    %v4761 = vpop.f32.mrf.mxu0
    %v4762 = vadd.f32 0.0, %v4761
    %v4763 = vpop.f32.mrf.mxu0
    %4764 = vdwg.mxu0
    %v4765 = vadd.f32 %v4516, %v4723
    %v4766 = vadd.f32 %v4517, %v4736
    %v4767 = vadd.f32 %v4518, %v4749
    %v4768 = vadd.f32 %v4519, %v4762
    %v4769 = vxor.u32 %v4765, 2147483648
    %v4770 = vxor.u32 %v4766, 2147483648
    %v4771 = vxor.u32 %v4767, 2147483648
    %v4772 = vmul.f32 %v4769, 1.442695
    %v4773 = vpow.pop %v4772
    %v4774 = vmul.f32 %v4770, 1.442695
    %v4775 = vpow.pop %v4774
    %v4776 = vmul.f32 %v4771, 1.442695
    %v4777 = vpow.pop %v4776
    %v4778 = vadd.f32 %v4773, 1.0
    %v4779 = vadd.f32 %v4775, 1.0
    %v4780 = vadd.f32 %v4777, 1.0
    %v4781 = vrcp.pop %v4778
    %v4782 = vmul.f32 %v4778, %v4781
    %v4783 = vsub.f32 1.0, %v4782
    %v4784 = vmul.f32 %v4781, %v4783
    %v4785 = vadd.f32 %v4781, %v4784
    %vm4786 = vweird.f32 %v4778
    %vm4787 = vweird.f32 %v4781
    %vm4788 = vmor %vm4786, %vm4787
    %v4789 = vsel %vm4788, %v4781, %v4785
    %v4790 = vand.u32 2147483647, %v4778
    %vm4791 = vcmp.eq.f32.partialorder %v4790, 8.507059e+37
    %v4792 = vand.u32 %v4778, 2147483648
    %v4793 = vor.u32 1.1754944e-38, %v4792
    %v4794 = vsel %vm4791, %v4793, %v4789
    %v4795 = vmul.f32 1.0, %v4794
    %v4796 = vrcp.pop %v4779
    %v4797 = vmul.f32 %v4779, %v4796
    %v4798 = vsub.f32 1.0, %v4797
    %v4799 = vmul.f32 %v4796, %v4798
    %v4800 = vadd.f32 %v4796, %v4799
    %vm4801 = vweird.f32 %v4779
    %vm4802 = vweird.f32 %v4796
    %vm4803 = vmor %vm4801, %vm4802
    %v4804 = vsel %vm4803, %v4796, %v4800
    %v4805 = vand.u32 2147483647, %v4779
    %vm4806 = vcmp.eq.f32.partialorder %v4805, 8.507059e+37
    %v4807 = vand.u32 %v4779, 2147483648
    %v4808 = vor.u32 1.1754944e-38, %v4807
    %v4809 = vsel %vm4806, %v4808, %v4804
    %v4810 = vmul.f32 1.0, %v4809
    %v4811 = vrcp.pop %v4780
    %v4812 = vmul.f32 %v4780, %v4811
    %v4813 = vsub.f32 1.0, %v4812
    %v4814 = vmul.f32 %v4811, %v4813
    %v4815 = vadd.f32 %v4811, %v4814
    %vm4816 = vweird.f32 %v4780
    %vm4817 = vweird.f32 %v4811
    %vm4818 = vmor %vm4816, %vm4817
    %v4819 = vsel %vm4818, %v4811, %v4815
    %v4820 = vand.u32 2147483647, %v4780
    %vm4821 = vcmp.eq.f32.partialorder %v4820, 8.507059e+37
    %v4822 = vand.u32 %v4780, 2147483648
    %v4823 = vor.u32 1.1754944e-38, %v4822
    %v4824 = vsel %vm4821, %v4823, %v4819
    %v4825 = vmul.f32 1.0, %v4824
    %v4826 = vtanh.pop %v4768
    %v4827 = vmul.f32 %v4810, %v4511
    %v4828 = vmul.f32 %v4795, %v4826
    %v4829 = vadd.f32 %v4827, %v4828
    %v4830 = vtanh.pop %v4829
    %v4831 = vmul.f32 %v4825, %v4830
    %s4832 = scalar_lea.vmem %s7, 32
    %4833 = vst [vmem:[%s4832] sm:$0xff] %v4831
    %v4834 = vld [vmem:[%s1916] sm:$0xff]
    %v4835 = vld [vmem:[%s1916 + $0x8] sm:$0xff]
    %v4836 = vld [vmem:[%s1916 + $0x10] sm:$0xff]
    %v4837 = vld [vmem:[%s1916 + $0x18] sm:$0xff]
    %v4838 = vpack.c.bf16 %v4831, %v4831
    %v4839 = vld [vmem:[#allocation10] sm:$0xff]
    %v4840 = vld [vmem:[#allocation10 + $0x8] sm:$0xff]
    %v4841 = vld [vmem:[#allocation10 + $0x10] sm:$0xff]
    %v4842 = vld [vmem:[#allocation10 + $0x18] sm:$0xff]
    %v4843 = vld [vmem:[#allocation10 + $0x20] sm:$0xff]
    %v4844 = vld [vmem:[#allocation10 + $0x28] sm:$0xff]
    %v4845 = vld [vmem:[#allocation10 + $0x30] sm:$0xff]
    %v4846 = vld [vmem:[#allocation10 + $0x38] sm:$0xff]
    %v4847 = vld [vmem:[#allocation10 + $0x40] sm:$0xff]
    %v4848 = vld [vmem:[#allocation10 + $0x48] sm:$0xff]
    %v4849 = vld [vmem:[#allocation10 + $0x50] sm:$0xff]
    %v4850 = vld [vmem:[#allocation10 + $0x58] sm:$0xff]
    %v4851 = vld [vmem:[#allocation10 + $0x60] sm:$0xff]
    %v4852 = vld [vmem:[#allocation10 + $0x68] sm:$0xff]
    %v4853 = vld [vmem:[#allocation10 + $0x70] sm:$0xff]
    %v4854 = vld [vmem:[#allocation10 + $0x78] sm:$0xff]
    %v4855 = vld [vmem:[#allocation10 + $0x80] sm:$0xff]
    %v4856 = vld [vmem:[#allocation10 + $0x88] sm:$0xff]
    %v4857 = vld [vmem:[#allocation10 + $0x90] sm:$0xff]
    %v4858 = vld [vmem:[#allocation10 + $0x98] sm:$0xff]
    %v4859 = vld [vmem:[#allocation10 + $0xa0] sm:$0xff]
    %v4860 = vld [vmem:[#allocation10 + $0xa8] sm:$0xff]
    %v4861 = vld [vmem:[#allocation10 + $0xb0] sm:$0xff]
    %v4862 = vld [vmem:[#allocation10 + $0xb8] sm:$0xff]
    %v4863 = vld [vmem:[#allocation10 + $0xc0] sm:$0xff]
    %v4864 = vld [vmem:[#allocation10 + $0xc8] sm:$0xff]
    %v4865 = vld [vmem:[#allocation10 + $0xd0] sm:$0xff]
    %v4866 = vld [vmem:[#allocation10 + $0xd8] sm:$0xff]
    %v4867 = vld [vmem:[#allocation10 + $0xe0] sm:$0xff]
    %v4868 = vld [vmem:[#allocation10 + $0xe8] sm:$0xff]
    %v4869 = vld [vmem:[#allocation10 + $0xf0] sm:$0xff]
    %v4870 = vld [vmem:[#allocation10 + $0xf8] sm:$0xff]
    %v4903 = vunpack.c.l.b16 %v4839
    %v4904 = vunpack.c.h.b16 %v4839
    %v4905 = vunpack.c.l.b16 %v4840
    %v4906 = vunpack.c.h.b16 %v4840
    %v4907 = vunpack.c.l.b16 %v4841
    %v4908 = vunpack.c.h.b16 %v4841
    %v4909 = vunpack.c.l.b16 %v4842
    %v4910 = vunpack.c.h.b16 %v4842
    %v4911 = vunpack.c.l.b16 %v4843
    %v4912 = vunpack.c.h.b16 %v4843
    %v4913 = vunpack.c.l.b16 %v4844
    %v4914 = vunpack.c.h.b16 %v4844
    %v4915 = vunpack.c.l.b16 %v4845
    %v4916 = vunpack.c.h.b16 %v4845
    %v4917 = vunpack.c.l.b16 %v4846
    %v4918 = vunpack.c.h.b16 %v4846
    %v4919 = vunpack.c.l.b16 %v4847
    %v4920 = vunpack.c.h.b16 %v4847
    %v4921 = vunpack.c.l.b16 %v4848
    %v4922 = vunpack.c.h.b16 %v4848
    %v4923 = vunpack.c.l.b16 %v4849
    %v4924 = vunpack.c.h.b16 %v4849
    %v4925 = vunpack.c.l.b16 %v4850
    %v4926 = vunpack.c.h.b16 %v4850
    %v4927 = vunpack.c.l.b16 %v4851
    %v4928 = vunpack.c.h.b16 %v4851
    %v4929 = vunpack.c.l.b16 %v4852
    %v4930 = vunpack.c.h.b16 %v4852
    %v4931 = vunpack.c.l.b16 %v4853
    %v4932 = vunpack.c.h.b16 %v4853
    %v4933 = vunpack.c.l.b16 %v4854
    %v4934 = vunpack.c.h.b16 %v4854
    %v4935 = vunpack.c.l.b16 %v4855
    %v4936 = vunpack.c.h.b16 %v4855
    %v4937 = vunpack.c.l.b16 %v4856
    %v4938 = vunpack.c.h.b16 %v4856
    %v4939 = vunpack.c.l.b16 %v4857
    %v4940 = vunpack.c.h.b16 %v4857
    %v4941 = vunpack.c.l.b16 %v4858
    %v4942 = vunpack.c.h.b16 %v4858
    %v4943 = vunpack.c.l.b16 %v4859
    %v4944 = vunpack.c.h.b16 %v4859
    %v4945 = vunpack.c.l.b16 %v4860
    %v4946 = vunpack.c.h.b16 %v4860
    %v4947 = vunpack.c.l.b16 %v4861
    %v4948 = vunpack.c.h.b16 %v4861
    %v4949 = vunpack.c.l.b16 %v4862
    %v4950 = vunpack.c.h.b16 %v4862
    %v4951 = vunpack.c.l.b16 %v4863
    %v4952 = vunpack.c.h.b16 %v4863
    %v4953 = vunpack.c.l.b16 %v4864
    %v4954 = vunpack.c.h.b16 %v4864
    %v4955 = vunpack.c.l.b16 %v4865
    %v4956 = vunpack.c.h.b16 %v4865
    %v4957 = vunpack.c.l.b16 %v4866
    %v4958 = vunpack.c.h.b16 %v4866
    %v4959 = vunpack.c.l.b16 %v4867
    %v4960 = vunpack.c.h.b16 %v4867
    %v4961 = vunpack.c.l.b16 %v4868
    %v4962 = vunpack.c.h.b16 %v4868
    %v4963 = vunpack.c.l.b16 %v4869
    %v4964 = vunpack.c.h.b16 %v4869
    %v4965 = vunpack.c.l.b16 %v4870
    %v4966 = vunpack.c.h.b16 %v4870
    %v4967 = vpack.c.b16 %v4907, %v4903
    %v4968 = vpack.c.b16 %v4908, %v4904
    %v4969 = vpack.c.b16 %v4909, %v4905
    %v4970 = vpack.c.b16 %v4910, %v4906
    %v4971 = vpack.c.b16 %v4915, %v4911
    %v4972 = vpack.c.b16 %v4916, %v4912
    %v4973 = vpack.c.b16 %v4917, %v4913
    %v4974 = vpack.c.b16 %v4918, %v4914
    %v4975 = vpack.c.b16 %v4923, %v4919
    %v4976 = vpack.c.b16 %v4924, %v4920
    %v4977 = vpack.c.b16 %v4925, %v4921
    %v4978 = vpack.c.b16 %v4926, %v4922
    %v4979 = vpack.c.b16 %v4931, %v4927
    %v4980 = vpack.c.b16 %v4932, %v4928
    %v4981 = vpack.c.b16 %v4933, %v4929
    %v4982 = vpack.c.b16 %v4934, %v4930
    %v4983 = vpack.c.b16 %v4939, %v4935
    %v4984 = vpack.c.b16 %v4940, %v4936
    %v4985 = vpack.c.b16 %v4941, %v4937
    %v4986 = vpack.c.b16 %v4942, %v4938
    %v4987 = vpack.c.b16 %v4947, %v4943
    %v4988 = vpack.c.b16 %v4948, %v4944
    %v4989 = vpack.c.b16 %v4949, %v4945
    %v4990 = vpack.c.b16 %v4950, %v4946
    %v4991 = vpack.c.b16 %v4955, %v4951
    %v4992 = vpack.c.b16 %v4956, %v4952
    %v4993 = vpack.c.b16 %v4957, %v4953
    %v4994 = vpack.c.b16 %v4958, %v4954
    %v4995 = vpack.c.b16 %v4963, %v4959
    %v4996 = vpack.c.b16 %v4964, %v4960
    %v4997 = vpack.c.b16 %v4965, %v4961
    %v4998 = vpack.c.b16 %v4966, %v4962
    %5031 = vmatpush.bf16.msra.mxu0 %v4995
    %5032 = vmatpush.bf16.msra.mxu0 %v4991
    %5033 = vmatpush.bf16.msra.mxu0 %v4987
    %5034 = vmatpush.bf16.msra.mxu0 %v4983
    %5035 = vmatpush.bf16.msra.mxu0 %v4979
    %5036 = vmatpush.bf16.msra.mxu0 %v4975
    %5037 = vmatpush.bf16.msra.mxu0 %v4971
    %5038 = vmatpush.bf16.msra.mxu0 %v4967
    %5039 = vmatmul.bf16.gmra.mxu0 %v4838
    %v5040 = vpop.f32.mrf.mxu0
    %v5041 = vadd.f32 0.0, %v5040
    %v5042 = vpop.f32.mrf.mxu0
    %5043 = vdwg.mxu0
    %5044 = vmatpush.bf16.msra.mxu0 %v4996
    %5045 = vmatpush.bf16.msra.mxu0 %v4992
    %5046 = vmatpush.bf16.msra.mxu0 %v4988
    %5047 = vmatpush.bf16.msra.mxu0 %v4984
    %5048 = vmatpush.bf16.msra.mxu0 %v4980
    %5049 = vmatpush.bf16.msra.mxu0 %v4976
    %5050 = vmatpush.bf16.msra.mxu0 %v4972
    %5051 = vmatpush.bf16.msra.mxu0 %v4968
    %5052 = vmatmul.bf16.gmra.mxu0 %v4838
    %v5053 = vpop.f32.mrf.mxu0
    %v5054 = vadd.f32 0.0, %v5053
    %v5055 = vpop.f32.mrf.mxu0
    %5056 = vdwg.mxu0
    %5057 = vmatpush.bf16.msra.mxu0 %v4997
    %5058 = vmatpush.bf16.msra.mxu0 %v4993
    %5059 = vmatpush.bf16.msra.mxu0 %v4989
    %5060 = vmatpush.bf16.msra.mxu0 %v4985
    %5061 = vmatpush.bf16.msra.mxu0 %v4981
    %5062 = vmatpush.bf16.msra.mxu0 %v4977
    %5063 = vmatpush.bf16.msra.mxu0 %v4973
    %5064 = vmatpush.bf16.msra.mxu0 %v4969
    %5065 = vmatmul.bf16.gmra.mxu0 %v4838
    %v5066 = vpop.f32.mrf.mxu0
    %v5067 = vadd.f32 0.0, %v5066
    %v5068 = vpop.f32.mrf.mxu0
    %5069 = vdwg.mxu0
    %5070 = vmatpush.bf16.msra.mxu0 %v4998
    %5071 = vmatpush.bf16.msra.mxu0 %v4994
    %5072 = vmatpush.bf16.msra.mxu0 %v4990
    %5073 = vmatpush.bf16.msra.mxu0 %v4986
    %5074 = vmatpush.bf16.msra.mxu0 %v4982
    %5075 = vmatpush.bf16.msra.mxu0 %v4978
    %5076 = vmatpush.bf16.msra.mxu0 %v4974
    %5077 = vmatpush.bf16.msra.mxu0 %v4970
    %5078 = vmatmul.bf16.gmra.mxu0 %v4838
    %v5079 = vpop.f32.mrf.mxu0
    %v5080 = vadd.f32 0.0, %v5079
    %v5081 = vpop.f32.mrf.mxu0
    %5082 = vdwg.mxu0
    %v5083 = vadd.f32 %v4834, %v5041
    %v5084 = vadd.f32 %v4835, %v5054
    %v5085 = vadd.f32 %v4836, %v5067
    %v5086 = vadd.f32 %v4837, %v5080
    %v5087 = vxor.u32 %v5083, 2147483648
    %v5088 = vxor.u32 %v5084, 2147483648
    %v5089 = vxor.u32 %v5085, 2147483648
    %v5090 = vmul.f32 %v5087, 1.442695
    %v5091 = vpow.pop %v5090
    %v5092 = vmul.f32 %v5088, 1.442695
    %v5093 = vpow.pop %v5092
    %v5094 = vmul.f32 %v5089, 1.442695
    %v5095 = vpow.pop %v5094
    %v5096 = vadd.f32 %v5091, 1.0
    %v5097 = vadd.f32 %v5093, 1.0
    %v5098 = vadd.f32 %v5095, 1.0
    %v5099 = vrcp.pop %v5096
    %v5100 = vmul.f32 %v5096, %v5099
    %v5101 = vsub.f32 1.0, %v5100
    %v5102 = vmul.f32 %v5099, %v5101
    %v5103 = vadd.f32 %v5099, %v5102
    %vm5104 = vweird.f32 %v5096
    %vm5105 = vweird.f32 %v5099
    %vm5106 = vmor %vm5104, %vm5105
    %v5107 = vsel %vm5106, %v5099, %v5103
    %v5108 = vand.u32 2147483647, %v5096
    %vm5109 = vcmp.eq.f32.partialorder %v5108, 8.507059e+37
    %v5110 = vand.u32 %v5096, 2147483648
    %v5111 = vor.u32 1.1754944e-38, %v5110
    %v5112 = vsel %vm5109, %v5111, %v5107
    %v5113 = vmul.f32 1.0, %v5112
    %v5114 = vrcp.pop %v5097
    %v5115 = vmul.f32 %v5097, %v5114
    %v5116 = vsub.f32 1.0, %v5115
    %v5117 = vmul.f32 %v5114, %v5116
    %v5118 = vadd.f32 %v5114, %v5117
    %vm5119 = vweird.f32 %v5097
    %vm5120 = vweird.f32 %v5114
    %vm5121 = vmor %vm5119, %vm5120
    %v5122 = vsel %vm5121, %v5114, %v5118
    %v5123 = vand.u32 2147483647, %v5097
    %vm5124 = vcmp.eq.f32.partialorder %v5123, 8.507059e+37
    %v5125 = vand.u32 %v5097, 2147483648
    %v5126 = vor.u32 1.1754944e-38, %v5125
    %v5127 = vsel %vm5124, %v5126, %v5122
    %v5128 = vmul.f32 1.0, %v5127
    %v5129 = vrcp.pop %v5098
    %v5130 = vmul.f32 %v5098, %v5129
    %v5131 = vsub.f32 1.0, %v5130
    %v5132 = vmul.f32 %v5129, %v5131
    %v5133 = vadd.f32 %v5129, %v5132
    %vm5134 = vweird.f32 %v5098
    %vm5135 = vweird.f32 %v5129
    %vm5136 = vmor %vm5134, %vm5135
    %v5137 = vsel %vm5136, %v5129, %v5133
    %v5138 = vand.u32 2147483647, %v5098
    %vm5139 = vcmp.eq.f32.partialorder %v5138, 8.507059e+37
    %v5140 = vand.u32 %v5098, 2147483648
    %v5141 = vor.u32 1.1754944e-38, %v5140
    %v5142 = vsel %vm5139, %v5141, %v5137
    %v5143 = vmul.f32 1.0, %v5142
    %v5144 = vtanh.pop %v5086
    %v5145 = vmul.f32 %v5128, %v4829
    %v5146 = vmul.f32 %v5113, %v5144
    %v5147 = vadd.f32 %v5145, %v5146
    %v5148 = vtanh.pop %v5147
    %v5149 = vmul.f32 %v5143, %v5148
    %s5150 = scalar_lea.vmem %s7, 40
    %5151 = vst [vmem:[%s5150] sm:$0xff] %v5149
    %v5152 = vld [vmem:[%s2237] sm:$0xff]
    %v5153 = vld [vmem:[%s2237 + $0x8] sm:$0xff]
    %v5154 = vld [vmem:[%s2237 + $0x10] sm:$0xff]
    %v5155 = vld [vmem:[%s2237 + $0x18] sm:$0xff]
    %v5156 = vpack.c.bf16 %v5149, %v5149
    %v5157 = vld [vmem:[#allocation10] sm:$0xff]
    %v5158 = vld [vmem:[#allocation10 + $0x8] sm:$0xff]
    %v5159 = vld [vmem:[#allocation10 + $0x10] sm:$0xff]
    %v5160 = vld [vmem:[#allocation10 + $0x18] sm:$0xff]
    %v5161 = vld [vmem:[#allocation10 + $0x20] sm:$0xff]
    %v5162 = vld [vmem:[#allocation10 + $0x28] sm:$0xff]
    %v5163 = vld [vmem:[#allocation10 + $0x30] sm:$0xff]
    %v5164 = vld [vmem:[#allocation10 + $0x38] sm:$0xff]
    %v5165 = vld [vmem:[#allocation10 + $0x40] sm:$0xff]
    %v5166 = vld [vmem:[#allocation10 + $0x48] sm:$0xff]
    %v5167 = vld [vmem:[#allocation10 + $0x50] sm:$0xff]
    %v5168 = vld [vmem:[#allocation10 + $0x58] sm:$0xff]
    %v5169 = vld [vmem:[#allocation10 + $0x60] sm:$0xff]
    %v5170 = vld [vmem:[#allocation10 + $0x68] sm:$0xff]
    %v5171 = vld [vmem:[#allocation10 + $0x70] sm:$0xff]
    %v5172 = vld [vmem:[#allocation10 + $0x78] sm:$0xff]
    %v5173 = vld [vmem:[#allocation10 + $0x80] sm:$0xff]
    %v5174 = vld [vmem:[#allocation10 + $0x88] sm:$0xff]
    %v5175 = vld [vmem:[#allocation10 + $0x90] sm:$0xff]
    %v5176 = vld [vmem:[#allocation10 + $0x98] sm:$0xff]
    %v5177 = vld [vmem:[#allocation10 + $0xa0] sm:$0xff]
    %v5178 = vld [vmem:[#allocation10 + $0xa8] sm:$0xff]
    %v5179 = vld [vmem:[#allocation10 + $0xb0] sm:$0xff]
    %v5180 = vld [vmem:[#allocation10 + $0xb8] sm:$0xff]
    %v5181 = vld [vmem:[#allocation10 + $0xc0] sm:$0xff]
    %v5182 = vld [vmem:[#allocation10 + $0xc8] sm:$0xff]
    %v5183 = vld [vmem:[#allocation10 + $0xd0] sm:$0xff]
    %v5184 = vld [vmem:[#allocation10 + $0xd8] sm:$0xff]
    %v5185 = vld [vmem:[#allocation10 + $0xe0] sm:$0xff]
    %v5186 = vld [vmem:[#allocation10 + $0xe8] sm:$0xff]
    %v5187 = vld [vmem:[#allocation10 + $0xf0] sm:$0xff]
    %v5188 = vld [vmem:[#allocation10 + $0xf8] sm:$0xff]
    %v5221 = vunpack.c.l.b16 %v5157
    %v5222 = vunpack.c.h.b16 %v5157
    %v5223 = vunpack.c.l.b16 %v5158
    %v5224 = vunpack.c.h.b16 %v5158
    %v5225 = vunpack.c.l.b16 %v5159
    %v5226 = vunpack.c.h.b16 %v5159
    %v5227 = vunpack.c.l.b16 %v5160
    %v5228 = vunpack.c.h.b16 %v5160
    %v5229 = vunpack.c.l.b16 %v5161
    %v5230 = vunpack.c.h.b16 %v5161
    %v5231 = vunpack.c.l.b16 %v5162
    %v5232 = vunpack.c.h.b16 %v5162
    %v5233 = vunpack.c.l.b16 %v5163
    %v5234 = vunpack.c.h.b16 %v5163
    %v5235 = vunpack.c.l.b16 %v5164
    %v5236 = vunpack.c.h.b16 %v5164
    %v5237 = vunpack.c.l.b16 %v5165
    %v5238 = vunpack.c.h.b16 %v5165
    %v5239 = vunpack.c.l.b16 %v5166
    %v5240 = vunpack.c.h.b16 %v5166
    %v5241 = vunpack.c.l.b16 %v5167
    %v5242 = vunpack.c.h.b16 %v5167
    %v5243 = vunpack.c.l.b16 %v5168
    %v5244 = vunpack.c.h.b16 %v5168
    %v5245 = vunpack.c.l.b16 %v5169
    %v5246 = vunpack.c.h.b16 %v5169
    %v5247 = vunpack.c.l.b16 %v5170
    %v5248 = vunpack.c.h.b16 %v5170
    %v5249 = vunpack.c.l.b16 %v5171
    %v5250 = vunpack.c.h.b16 %v5171
    %v5251 = vunpack.c.l.b16 %v5172
    %v5252 = vunpack.c.h.b16 %v5172
    %v5253 = vunpack.c.l.b16 %v5173
    %v5254 = vunpack.c.h.b16 %v5173
    %v5255 = vunpack.c.l.b16 %v5174
    %v5256 = vunpack.c.h.b16 %v5174
    %v5257 = vunpack.c.l.b16 %v5175
    %v5258 = vunpack.c.h.b16 %v5175
    %v5259 = vunpack.c.l.b16 %v5176
    %v5260 = vunpack.c.h.b16 %v5176
    %v5261 = vunpack.c.l.b16 %v5177
    %v5262 = vunpack.c.h.b16 %v5177
    %v5263 = vunpack.c.l.b16 %v5178
    %v5264 = vunpack.c.h.b16 %v5178
    %v5265 = vunpack.c.l.b16 %v5179
    %v5266 = vunpack.c.h.b16 %v5179
    %v5267 = vunpack.c.l.b16 %v5180
    %v5268 = vunpack.c.h.b16 %v5180
    %v5269 = vunpack.c.l.b16 %v5181
    %v5270 = vunpack.c.h.b16 %v5181
    %v5271 = vunpack.c.l.b16 %v5182
    %v5272 = vunpack.c.h.b16 %v5182
    %v5273 = vunpack.c.l.b16 %v5183
    %v5274 = vunpack.c.h.b16 %v5183
    %v5275 = vunpack.c.l.b16 %v5184
    %v5276 = vunpack.c.h.b16 %v5184
    %v5277 = vunpack.c.l.b16 %v5185
    %v5278 = vunpack.c.h.b16 %v5185
    %v5279 = vunpack.c.l.b16 %v5186
    %v5280 = vunpack.c.h.b16 %v5186
    %v5281 = vunpack.c.l.b16 %v5187
    %v5282 = vunpack.c.h.b16 %v5187
    %v5283 = vunpack.c.l.b16 %v5188
    %v5284 = vunpack.c.h.b16 %v5188
    %v5285 = vpack.c.b16 %v5225, %v5221
    %v5286 = vpack.c.b16 %v5226, %v5222
    %v5287 = vpack.c.b16 %v5227, %v5223
    %v5288 = vpack.c.b16 %v5228, %v5224
    %v5289 = vpack.c.b16 %v5233, %v5229
    %v5290 = vpack.c.b16 %v5234, %v5230
    %v5291 = vpack.c.b16 %v5235, %v5231
    %v5292 = vpack.c.b16 %v5236, %v5232
    %v5293 = vpack.c.b16 %v5241, %v5237
    %v5294 = vpack.c.b16 %v5242, %v5238
    %v5295 = vpack.c.b16 %v5243, %v5239
    %v5296 = vpack.c.b16 %v5244, %v5240
    %v5297 = vpack.c.b16 %v5249, %v5245
    %v5298 = vpack.c.b16 %v5250, %v5246
    %v5299 = vpack.c.b16 %v5251, %v5247
    %v5300 = vpack.c.b16 %v5252, %v5248
    %v5301 = vpack.c.b16 %v5257, %v5253
    %v5302 = vpack.c.b16 %v5258, %v5254
    %v5303 = vpack.c.b16 %v5259, %v5255
    %v5304 = vpack.c.b16 %v5260, %v5256
    %v5305 = vpack.c.b16 %v5265, %v5261
    %v5306 = vpack.c.b16 %v5266, %v5262
    %v5307 = vpack.c.b16 %v5267, %v5263
    %v5308 = vpack.c.b16 %v5268, %v5264
    %v5309 = vpack.c.b16 %v5273, %v5269
    %v5310 = vpack.c.b16 %v5274, %v5270
    %v5311 = vpack.c.b16 %v5275, %v5271
    %v5312 = vpack.c.b16 %v5276, %v5272
    %v5313 = vpack.c.b16 %v5281, %v5277
    %v5314 = vpack.c.b16 %v5282, %v5278
    %v5315 = vpack.c.b16 %v5283, %v5279
    %v5316 = vpack.c.b16 %v5284, %v5280
    %5349 = vmatpush.bf16.msra.mxu0 %v5313
    %5350 = vmatpush.bf16.msra.mxu0 %v5309
    %5351 = vmatpush.bf16.msra.mxu0 %v5305
    %5352 = vmatpush.bf16.msra.mxu0 %v5301
    %5353 = vmatpush.bf16.msra.mxu0 %v5297
    %5354 = vmatpush.bf16.msra.mxu0 %v5293
    %5355 = vmatpush.bf16.msra.mxu0 %v5289
    %5356 = vmatpush.bf16.msra.mxu0 %v5285
    %5357 = vmatmul.bf16.gmra.mxu0 %v5156
    %v5358 = vpop.f32.mrf.mxu0
    %v5359 = vadd.f32 0.0, %v5358
    %v5360 = vpop.f32.mrf.mxu0
    %5361 = vdwg.mxu0
    %5362 = vmatpush.bf16.msra.mxu0 %v5314
    %5363 = vmatpush.bf16.msra.mxu0 %v5310
    %5364 = vmatpush.bf16.msra.mxu0 %v5306
    %5365 = vmatpush.bf16.msra.mxu0 %v5302
    %5366 = vmatpush.bf16.msra.mxu0 %v5298
    %5367 = vmatpush.bf16.msra.mxu0 %v5294
    %5368 = vmatpush.bf16.msra.mxu0 %v5290
    %5369 = vmatpush.bf16.msra.mxu0 %v5286
    %5370 = vmatmul.bf16.gmra.mxu0 %v5156
    %v5371 = vpop.f32.mrf.mxu0
    %v5372 = vadd.f32 0.0, %v5371
    %v5373 = vpop.f32.mrf.mxu0
    %5374 = vdwg.mxu0
    %5375 = vmatpush.bf16.msra.mxu0 %v5315
    %5376 = vmatpush.bf16.msra.mxu0 %v5311
    %5377 = vmatpush.bf16.msra.mxu0 %v5307
    %5378 = vmatpush.bf16.msra.mxu0 %v5303
    %5379 = vmatpush.bf16.msra.mxu0 %v5299
    %5380 = vmatpush.bf16.msra.mxu0 %v5295
    %5381 = vmatpush.bf16.msra.mxu0 %v5291
    %5382 = vmatpush.bf16.msra.mxu0 %v5287
    %5383 = vmatmul.bf16.gmra.mxu0 %v5156
    %v5384 = vpop.f32.mrf.mxu0
    %v5385 = vadd.f32 0.0, %v5384
    %v5386 = vpop.f32.mrf.mxu0
    %5387 = vdwg.mxu0
    %5388 = vmatpush.bf16.msra.mxu0 %v5316
    %5389 = vmatpush.bf16.msra.mxu0 %v5312
    %5390 = vmatpush.bf16.msra.mxu0 %v5308
    %5391 = vmatpush.bf16.msra.mxu0 %v5304
    %5392 = vmatpush.bf16.msra.mxu0 %v5300
    %5393 = vmatpush.bf16.msra.mxu0 %v5296
    %5394 = vmatpush.bf16.msra.mxu0 %v5292
    %5395 = vmatpush.bf16.msra.mxu0 %v5288
    %5396 = vmatmul.bf16.gmra.mxu0 %v5156
    %v5397 = vpop.f32.mrf.mxu0
    %v5398 = vadd.f32 0.0, %v5397
    %v5399 = vpop.f32.mrf.mxu0
    %5400 = vdwg.mxu0
    %v5401 = vadd.f32 %v5152, %v5359
    %v5402 = vadd.f32 %v5153, %v5372
    %v5403 = vadd.f32 %v5154, %v5385
    %v5404 = vadd.f32 %v5155, %v5398
    %v5405 = vxor.u32 %v5401, 2147483648
    %v5406 = vxor.u32 %v5402, 2147483648
    %v5407 = vxor.u32 %v5403, 2147483648
    %v5408 = vmul.f32 %v5405, 1.442695
    %v5409 = vpow.pop %v5408
    %v5410 = vmul.f32 %v5406, 1.442695
    %v5411 = vpow.pop %v5410
    %v5412 = vmul.f32 %v5407, 1.442695
    %v5413 = vpow.pop %v5412
    %v5414 = vadd.f32 %v5409, 1.0
    %v5415 = vadd.f32 %v5411, 1.0
    %v5416 = vadd.f32 %v5413, 1.0
    %v5417 = vrcp.pop %v5414
    %v5418 = vmul.f32 %v5414, %v5417
    %v5419 = vsub.f32 1.0, %v5418
    %v5420 = vmul.f32 %v5417, %v5419
    %v5421 = vadd.f32 %v5417, %v5420
    %vm5422 = vweird.f32 %v5414
    %vm5423 = vweird.f32 %v5417
    %vm5424 = vmor %vm5422, %vm5423
    %v5425 = vsel %vm5424, %v5417, %v5421
    %v5426 = vand.u32 2147483647, %v5414
    %vm5427 = vcmp.eq.f32.partialorder %v5426, 8.507059e+37
    %v5428 = vand.u32 %v5414, 2147483648
    %v5429 = vor.u32 1.1754944e-38, %v5428
    %v5430 = vsel %vm5427, %v5429, %v5425
    %v5431 = vmul.f32 1.0, %v5430
    %v5432 = vrcp.pop %v5415
    %v5433 = vmul.f32 %v5415, %v5432
    %v5434 = vsub.f32 1.0, %v5433
    %v5435 = vmul.f32 %v5432, %v5434
    %v5436 = vadd.f32 %v5432, %v5435
    %vm5437 = vweird.f32 %v5415
    %vm5438 = vweird.f32 %v5432
    %vm5439 = vmor %vm5437, %vm5438
    %v5440 = vsel %vm5439, %v5432, %v5436
    %v5441 = vand.u32 2147483647, %v5415
    %vm5442 = vcmp.eq.f32.partialorder %v5441, 8.507059e+37
    %v5443 = vand.u32 %v5415, 2147483648
    %v5444 = vor.u32 1.1754944e-38, %v5443
    %v5445 = vsel %vm5442, %v5444, %v5440
    %v5446 = vmul.f32 1.0, %v5445
    %v5447 = vrcp.pop %v5416
    %v5448 = vmul.f32 %v5416, %v5447
    %v5449 = vsub.f32 1.0, %v5448
    %v5450 = vmul.f32 %v5447, %v5449
    %v5451 = vadd.f32 %v5447, %v5450
    %vm5452 = vweird.f32 %v5416
    %vm5453 = vweird.f32 %v5447
    %vm5454 = vmor %vm5452, %vm5453
    %v5455 = vsel %vm5454, %v5447, %v5451
    %v5456 = vand.u32 2147483647, %v5416
    %vm5457 = vcmp.eq.f32.partialorder %v5456, 8.507059e+37
    %v5458 = vand.u32 %v5416, 2147483648
    %v5459 = vor.u32 1.1754944e-38, %v5458
    %v5460 = vsel %vm5457, %v5459, %v5455
    %v5461 = vmul.f32 1.0, %v5460
    %v5462 = vtanh.pop %v5404
    %v5463 = vmul.f32 %v5446, %v5147
    %v5464 = vmul.f32 %v5431, %v5462
    %v5465 = vadd.f32 %v5463, %v5464
    %v5466 = vtanh.pop %v5465
    %v5467 = vmul.f32 %v5461, %v5466
    %s5468 = scalar_lea.vmem %s7, 48
    %5469 = vst [vmem:[%s5468] sm:$0xff] %v5467
    %v5470 = vld [vmem:[%s2558] sm:$0xff]
    %v5471 = vld [vmem:[%s2558 + $0x8] sm:$0xff]
    %v5472 = vld [vmem:[%s2558 + $0x10] sm:$0xff]
    %v5473 = vld [vmem:[%s2558 + $0x18] sm:$0xff]
    %v5474 = vpack.c.bf16 %v5467, %v5467
    %v5475 = vld [vmem:[#allocation10] sm:$0xff]
    %v5476 = vld [vmem:[#allocation10 + $0x8] sm:$0xff]
    %v5477 = vld [vmem:[#allocation10 + $0x10] sm:$0xff]
    %v5478 = vld [vmem:[#allocation10 + $0x18] sm:$0xff]
    %v5479 = vld [vmem:[#allocation10 + $0x20] sm:$0xff]
    %v5480 = vld [vmem:[#allocation10 + $0x28] sm:$0xff]
    %v5481 = vld [vmem:[#allocation10 + $0x30] sm:$0xff]
    %v5482 = vld [vmem:[#allocation10 + $0x38] sm:$0xff]
    %v5483 = vld [vmem:[#allocation10 + $0x40] sm:$0xff]
    %v5484 = vld [vmem:[#allocation10 + $0x48] sm:$0xff]
    %v5485 = vld [vmem:[#allocation10 + $0x50] sm:$0xff]
    %v5486 = vld [vmem:[#allocation10 + $0x58] sm:$0xff]
    %v5487 = vld [vmem:[#allocation10 + $0x60] sm:$0xff]
    %v5488 = vld [vmem:[#allocation10 + $0x68] sm:$0xff]
    %v5489 = vld [vmem:[#allocation10 + $0x70] sm:$0xff]
    %v5490 = vld [vmem:[#allocation10 + $0x78] sm:$0xff]
    %v5491 = vld [vmem:[#allocation10 + $0x80] sm:$0xff]
    %v5492 = vld [vmem:[#allocation10 + $0x88] sm:$0xff]
    %v5493 = vld [vmem:[#allocation10 + $0x90] sm:$0xff]
    %v5494 = vld [vmem:[#allocation10 + $0x98] sm:$0xff]
    %v5495 = vld [vmem:[#allocation10 + $0xa0] sm:$0xff]
    %v5496 = vld [vmem:[#allocation10 + $0xa8] sm:$0xff]
    %v5497 = vld [vmem:[#allocation10 + $0xb0] sm:$0xff]
    %v5498 = vld [vmem:[#allocation10 + $0xb8] sm:$0xff]
    %v5499 = vld [vmem:[#allocation10 + $0xc0] sm:$0xff]
    %v5500 = vld [vmem:[#allocation10 + $0xc8] sm:$0xff]
    %v5501 = vld [vmem:[#allocation10 + $0xd0] sm:$0xff]
    %v5502 = vld [vmem:[#allocation10 + $0xd8] sm:$0xff]
    %v5503 = vld [vmem:[#allocation10 + $0xe0] sm:$0xff]
    %v5504 = vld [vmem:[#allocation10 + $0xe8] sm:$0xff]
    %v5505 = vld [vmem:[#allocation10 + $0xf0] sm:$0xff]
    %v5506 = vld [vmem:[#allocation10 + $0xf8] sm:$0xff]
    %v5539 = vunpack.c.l.b16 %v5475
    %v5540 = vunpack.c.h.b16 %v5475
    %v5541 = vunpack.c.l.b16 %v5476
    %v5542 = vunpack.c.h.b16 %v5476
    %v5543 = vunpack.c.l.b16 %v5477
    %v5544 = vunpack.c.h.b16 %v5477
    %v5545 = vunpack.c.l.b16 %v5478
    %v5546 = vunpack.c.h.b16 %v5478
    %v5547 = vunpack.c.l.b16 %v5479
    %v5548 = vunpack.c.h.b16 %v5479
    %v5549 = vunpack.c.l.b16 %v5480
    %v5550 = vunpack.c.h.b16 %v5480
    %v5551 = vunpack.c.l.b16 %v5481
    %v5552 = vunpack.c.h.b16 %v5481
    %v5553 = vunpack.c.l.b16 %v5482
    %v5554 = vunpack.c.h.b16 %v5482
    %v5555 = vunpack.c.l.b16 %v5483
    %v5556 = vunpack.c.h.b16 %v5483
    %v5557 = vunpack.c.l.b16 %v5484
    %v5558 = vunpack.c.h.b16 %v5484
    %v5559 = vunpack.c.l.b16 %v5485
    %v5560 = vunpack.c.h.b16 %v5485
    %v5561 = vunpack.c.l.b16 %v5486
    %v5562 = vunpack.c.h.b16 %v5486
    %v5563 = vunpack.c.l.b16 %v5487
    %v5564 = vunpack.c.h.b16 %v5487
    %v5565 = vunpack.c.l.b16 %v5488
    %v5566 = vunpack.c.h.b16 %v5488
    %v5567 = vunpack.c.l.b16 %v5489
    %v5568 = vunpack.c.h.b16 %v5489
    %v5569 = vunpack.c.l.b16 %v5490
    %v5570 = vunpack.c.h.b16 %v5490
    %v5571 = vunpack.c.l.b16 %v5491
    %v5572 = vunpack.c.h.b16 %v5491
    %v5573 = vunpack.c.l.b16 %v5492
    %v5574 = vunpack.c.h.b16 %v5492
    %v5575 = vunpack.c.l.b16 %v5493
    %v5576 = vunpack.c.h.b16 %v5493
    %v5577 = vunpack.c.l.b16 %v5494
    %v5578 = vunpack.c.h.b16 %v5494
    %v5579 = vunpack.c.l.b16 %v5495
    %v5580 = vunpack.c.h.b16 %v5495
    %v5581 = vunpack.c.l.b16 %v5496
    %v5582 = vunpack.c.h.b16 %v5496
    %v5583 = vunpack.c.l.b16 %v5497
    %v5584 = vunpack.c.h.b16 %v5497
    %v5585 = vunpack.c.l.b16 %v5498
    %v5586 = vunpack.c.h.b16 %v5498
    %v5587 = vunpack.c.l.b16 %v5499
    %v5588 = vunpack.c.h.b16 %v5499
    %v5589 = vunpack.c.l.b16 %v5500
    %v5590 = vunpack.c.h.b16 %v5500
    %v5591 = vunpack.c.l.b16 %v5501
    %v5592 = vunpack.c.h.b16 %v5501
    %v5593 = vunpack.c.l.b16 %v5502
    %v5594 = vunpack.c.h.b16 %v5502
    %v5595 = vunpack.c.l.b16 %v5503
    %v5596 = vunpack.c.h.b16 %v5503
    %v5597 = vunpack.c.l.b16 %v5504
    %v5598 = vunpack.c.h.b16 %v5504
    %v5599 = vunpack.c.l.b16 %v5505
    %v5600 = vunpack.c.h.b16 %v5505
    %v5601 = vunpack.c.l.b16 %v5506
    %v5602 = vunpack.c.h.b16 %v5506
    %v5603 = vpack.c.b16 %v5543, %v5539
    %v5604 = vpack.c.b16 %v5544, %v5540
    %v5605 = vpack.c.b16 %v5545, %v5541
    %v5606 = vpack.c.b16 %v5546, %v5542
    %v5607 = vpack.c.b16 %v5551, %v5547
    %v5608 = vpack.c.b16 %v5552, %v5548
    %v5609 = vpack.c.b16 %v5553, %v5549
    %v5610 = vpack.c.b16 %v5554, %v5550
    %v5611 = vpack.c.b16 %v5559, %v5555
    %v5612 = vpack.c.b16 %v5560, %v5556
    %v5613 = vpack.c.b16 %v5561, %v5557
    %v5614 = vpack.c.b16 %v5562, %v5558
    %v5615 = vpack.c.b16 %v5567, %v5563
    %v5616 = vpack.c.b16 %v5568, %v5564
    %v5617 = vpack.c.b16 %v5569, %v5565
    %v5618 = vpack.c.b16 %v5570, %v5566
    %v5619 = vpack.c.b16 %v5575, %v5571
    %v5620 = vpack.c.b16 %v5576, %v5572
    %v5621 = vpack.c.b16 %v5577, %v5573
    %v5622 = vpack.c.b16 %v5578, %v5574
    %v5623 = vpack.c.b16 %v5583, %v5579
    %v5624 = vpack.c.b16 %v5584, %v5580
    %v5625 = vpack.c.b16 %v5585, %v5581
    %v5626 = vpack.c.b16 %v5586, %v5582
    %v5627 = vpack.c.b16 %v5591, %v5587
    %v5628 = vpack.c.b16 %v5592, %v5588
    %v5629 = vpack.c.b16 %v5593, %v5589
    %v5630 = vpack.c.b16 %v5594, %v5590
    %v5631 = vpack.c.b16 %v5599, %v5595
    %v5632 = vpack.c.b16 %v5600, %v5596
    %v5633 = vpack.c.b16 %v5601, %v5597
    %v5634 = vpack.c.b16 %v5602, %v5598
    %5667 = vmatpush.bf16.msra.mxu0 %v5631
    %5668 = vmatpush.bf16.msra.mxu0 %v5627
    %5669 = vmatpush.bf16.msra.mxu0 %v5623
    %5670 = vmatpush.bf16.msra.mxu0 %v5619
    %5671 = vmatpush.bf16.msra.mxu0 %v5615
    %5672 = vmatpush.bf16.msra.mxu0 %v5611
    %5673 = vmatpush.bf16.msra.mxu0 %v5607
    %5674 = vmatpush.bf16.msra.mxu0 %v5603
    %5675 = vmatmul.bf16.gmra.mxu0 %v5474
    %v5676 = vpop.f32.mrf.mxu0
    %v5677 = vadd.f32 0.0, %v5676
    %v5678 = vpop.f32.mrf.mxu0
    %5679 = vdwg.mxu0
    %5680 = vmatpush.bf16.msra.mxu0 %v5632
    %5681 = vmatpush.bf16.msra.mxu0 %v5628
    %5682 = vmatpush.bf16.msra.mxu0 %v5624
    %5683 = vmatpush.bf16.msra.mxu0 %v5620
    %5684 = vmatpush.bf16.msra.mxu0 %v5616
    %5685 = vmatpush.bf16.msra.mxu0 %v5612
    %5686 = vmatpush.bf16.msra.mxu0 %v5608
    %5687 = vmatpush.bf16.msra.mxu0 %v5604
    %5688 = vmatmul.bf16.gmra.mxu0 %v5474
    %v5689 = vpop.f32.mrf.mxu0
    %v5690 = vadd.f32 0.0, %v5689
    %v5691 = vpop.f32.mrf.mxu0
    %5692 = vdwg.mxu0
    %5693 = vmatpush.bf16.msra.mxu0 %v5633
    %5694 = vmatpush.bf16.msra.mxu0 %v5629
    %5695 = vmatpush.bf16.msra.mxu0 %v5625
    %5696 = vmatpush.bf16.msra.mxu0 %v5621
    %5697 = vmatpush.bf16.msra.mxu0 %v5617
    %5698 = vmatpush.bf16.msra.mxu0 %v5613
    %5699 = vmatpush.bf16.msra.mxu0 %v5609
    %5700 = vmatpush.bf16.msra.mxu0 %v5605
    %5701 = vmatmul.bf16.gmra.mxu0 %v5474
    %v5702 = vpop.f32.mrf.mxu0
    %v5703 = vadd.f32 0.0, %v5702
    %v5704 = vpop.f32.mrf.mxu0
    %5705 = vdwg.mxu0
    %5706 = vmatpush.bf16.msra.mxu0 %v5634
    %5707 = vmatpush.bf16.msra.mxu0 %v5630
    %5708 = vmatpush.bf16.msra.mxu0 %v5626
    %5709 = vmatpush.bf16.msra.mxu0 %v5622
    %5710 = vmatpush.bf16.msra.mxu0 %v5618
    %5711 = vmatpush.bf16.msra.mxu0 %v5614
    %5712 = vmatpush.bf16.msra.mxu0 %v5610
    %5713 = vmatpush.bf16.msra.mxu0 %v5606
    %5714 = vmatmul.bf16.gmra.mxu0 %v5474
    %v5715 = vpop.f32.mrf.mxu0
    %v5716 = vadd.f32 0.0, %v5715
    %v5717 = vpop.f32.mrf.mxu0
    %5718 = vdwg.mxu0
    %v5719 = vadd.f32 %v5470, %v5677
    %v5720 = vadd.f32 %v5471, %v5690
    %v5721 = vadd.f32 %v5472, %v5703
    %v5722 = vadd.f32 %v5473, %v5716
    %v5723 = vxor.u32 %v5719, 2147483648
    %v5724 = vxor.u32 %v5720, 2147483648
    %v5725 = vxor.u32 %v5721, 2147483648
    %v5726 = vmul.f32 %v5723, 1.442695
    %v5727 = vpow.pop %v5726
    %v5728 = vmul.f32 %v5724, 1.442695
    %v5729 = vpow.pop %v5728
    %v5730 = vmul.f32 %v5725, 1.442695
    %v5731 = vpow.pop %v5730
    %v5732 = vadd.f32 %v5727, 1.0
    %v5733 = vadd.f32 %v5729, 1.0
    %v5734 = vadd.f32 %v5731, 1.0
    %v5735 = vrcp.pop %v5732
    %v5736 = vmul.f32 %v5732, %v5735
    %v5737 = vsub.f32 1.0, %v5736
    %v5738 = vmul.f32 %v5735, %v5737
    %v5739 = vadd.f32 %v5735, %v5738
    %vm5740 = vweird.f32 %v5732
    %vm5741 = vweird.f32 %v5735
    %vm5742 = vmor %vm5740, %vm5741
    %v5743 = vsel %vm5742, %v5735, %v5739
    %v5744 = vand.u32 2147483647, %v5732
    %vm5745 = vcmp.eq.f32.partialorder %v5744, 8.507059e+37
    %v5746 = vand.u32 %v5732, 2147483648
    %v5747 = vor.u32 1.1754944e-38, %v5746
    %v5748 = vsel %vm5745, %v5747, %v5743
    %v5749 = vmul.f32 1.0, %v5748
    %v5750 = vrcp.pop %v5733
    %v5751 = vmul.f32 %v5733, %v5750
    %v5752 = vsub.f32 1.0, %v5751
    %v5753 = vmul.f32 %v5750, %v5752
    %v5754 = vadd.f32 %v5750, %v5753
    %vm5755 = vweird.f32 %v5733
    %vm5756 = vweird.f32 %v5750
    %vm5757 = vmor %vm5755, %vm5756
    %v5758 = vsel %vm5757, %v5750, %v5754
    %v5759 = vand.u32 2147483647, %v5733
    %vm5760 = vcmp.eq.f32.partialorder %v5759, 8.507059e+37
    %v5761 = vand.u32 %v5733, 2147483648
    %v5762 = vor.u32 1.1754944e-38, %v5761
    %v5763 = vsel %vm5760, %v5762, %v5758
    %v5764 = vmul.f32 1.0, %v5763
    %v5765 = vrcp.pop %v5734
    %v5766 = vmul.f32 %v5734, %v5765
    %v5767 = vsub.f32 1.0, %v5766
    %v5768 = vmul.f32 %v5765, %v5767
    %v5769 = vadd.f32 %v5765, %v5768
    %vm5770 = vweird.f32 %v5734
    %vm5771 = vweird.f32 %v5765
    %vm5772 = vmor %vm5770, %vm5771
    %v5773 = vsel %vm5772, %v5765, %v5769
    %v5774 = vand.u32 2147483647, %v5734
    %vm5775 = vcmp.eq.f32.partialorder %v5774, 8.507059e+37
    %v5776 = vand.u32 %v5734, 2147483648
    %v5777 = vor.u32 1.1754944e-38, %v5776
    %v5778 = vsel %vm5775, %v5777, %v5773
    %v5779 = vmul.f32 1.0, %v5778
    %v5780 = vtanh.pop %v5722
    %v5781 = vmul.f32 %v5764, %v5465
    %v5782 = vmul.f32 %v5749, %v5780
    %v5783 = vadd.f32 %v5781, %v5782
    %v5784 = vtanh.pop %v5783
    %v5785 = vmul.f32 %v5779, %v5784
    %s5786 = scalar_lea.vmem %s7, 56
    %5787 = vst [vmem:[%s5786] sm:$0xff] %v5785
    %5788 = vst [vmem:[%s2879] sm:$0xff] %v5785
    %5789 = vst [vmem:[%s2881] sm:$0xff] %v5783
    // Predicated region
    $region46: #{a_call__.1} parent=1 // pred_check
      %p5790 = pneg %p77
    $region47: #{a_call__.1} parent=1 // pred_check_branch
      %5792 = sbr.rel (%p5790) target = $region49
    $region48: #{a_call__.1} parent=1 // pred_region
      %v5793 = vld [vmem:[#allocation2] sm:$0xff]
      %v5794 = vld [vmem:[#allocation2 + $0x8] sm:$0xff]
      %5795 = vst [vmem:[%s8] sm:$0xff] %v5793
      %5796 = vst [vmem:[%s8 + $0x8] sm:$0xff] %v5794
      %v5797 = vld [vmem:[#allocation3] sm:$0xff]
      %v5798 = vld [vmem:[#allocation3 + $0x8] sm:$0xff]
      %5799 = vst [vmem:[%s9] sm:$0xff] %v5797
      %5800 = vst [vmem:[%s9 + $0x8] sm:$0xff] %v5798
    $region49: #{a_call__.1} parent=1 // pred_fallthru
      _
    // Predicated region
    $region50: #{a_call__.1} parent=1 // pred_check
      _
    $region51: #{a_call__.1} parent=1 // pred_check_branch
      %5802 = sbr.rel (0) target = $region53
    $region52: #{a_call__.1} parent=1 // pred_region
      _
    $region53: #{a_call__.1} parent=1 // pred_fallthru
      _
    // Predicated region
    $region54: #{a_call__.1} parent=1 // pred_check
      _
    $region55: #{a_call__.1} parent=1 // pred_check_branch
      %5804 = sbr.rel (0) target = $region57
    $region56: #{a_call__.1} parent=1 // pred_region
      _
    $region57: #{a_call__.1} parent=1 // pred_fallthru
      _
    // Predicated region
    $region58: #{a_call__.1} parent=1 // pred_check
      _
    $region59: #{a_call__.1} parent=1 // pred_check_branch
      %5806 = sbr.rel (0) target = $region61
    $region60: #{a_call__.1} parent=1 // pred_region
      _
    $region61: #{a_call__.1} parent=1 // pred_fallthru
      _
    // Predicated region
    $region62: #{a_call__.1} parent=1 // pred_check
      _
    $region63: #{a_call__.1} parent=1 // pred_check_branch
      %5808 = sbr.rel (0) target = $region65
    $region64: #{a_call__.1} parent=1 // pred_region
      _
    $region65: #{a_call__.1} parent=1 // pred_fallthru
      _
    // Predicated region
    $region66: #{a_call__.1} parent=1 // pred_check
      _
    $region67: #{a_call__.1} parent=1 // pred_check_branch
      %5810 = sbr.rel (0) target = $region69
    $region68: #{a_call__.1} parent=1 // pred_region
      _
    $region69: #{a_call__.1} parent=1 // pred_fallthru
      _
    // Predicated region
    $region70: #{a_call__.1} parent=1 // pred_check
      _
    $region71: #{a_call__.1} parent=1 // pred_check_branch
      %5812 = sbr.rel (0) target = $region73
    $region72: #{a_call__.1} parent=1 // pred_region
      _
    $region73: #{a_call__.1} parent=1 // pred_fallthru
      _
    %5813 = vsyncpa [#allocation7], 1
    %5814 = vsyncpa [#allocation9], 1

</llo_original>
